<compile_context>
chip_gen: v5e
topology: v5e:2x2
jax: 0.10.0
libtpu: 0.0.40
codegen_flags: <defaults>
</compile_context>

<pallas_src>
import functools

import numpy as np
import jax
import jax.numpy as jnp
from jax.experimental import pallas as pl
from jax.experimental.pallas import tpu as pltpu

NEG_SLOPE = 0.01  # nn.LeakyReLU() default


# ----------------------------- Pallas kernels ------------------------------ #
def _conv_stage_kernel(x1_ref, x2_ref, w1_ref, w2_ref, b1_ref, b2_ref, o_ref,
                       *, T, R):
    """Fused Conv7s4+LeakyReLU + Conv3s2+LeakyReLU + add for T output rows.

    x1_ref : (16, C, (T+2)*R) bf16  stride-4 phase slabs of padded FF
    x2_ref : ( 4, C, (T+2)*R) bf16  stride-2 phase slabs of padded Fq
    w1_ref : (49, C, C) bf16   W1[:, :, kh, kw] at index kh*7+kw
    w2_ref : ( 9, C, C) bf16
    b*_ref : (C, 1) f32
    o_ref  : (C, T*R) bf16     conv sum, channels-major (lane dim = spatial)
    """
    C = o_ref.shape[0]
    L = T * R

    acc1 = jnp.zeros((C, L), jnp.float32)
    for kh in range(7):
        for kw in range(7):
            ph = (kh % 4) * 4 + (kw % 4)
            off = (kh // 4) * R + (kw // 4)
            acc1 = acc1 + jnp.dot(w1_ref[kh * 7 + kw],
                                  x1_ref[ph, :, off:off + L],
                                  preferred_element_type=jnp.float32)
    acc1 = acc1 + b1_ref[...]
    acc1 = jnp.maximum(acc1, NEG_SLOPE * acc1)            # LeakyReLU

    acc2 = jnp.zeros((C, L), jnp.float32)
    for kh in range(3):
        for kw in range(3):
            ph = (kh % 2) * 2 + (kw % 2)
            off = (kh // 2) * R + (kw // 2)
            acc2 = acc2 + jnp.dot(w2_ref[kh * 3 + kw],
                                  x2_ref[ph, :, off:off + L],
                                  preferred_element_type=jnp.float32)
    acc2 = acc2 + b2_ref[...]
    acc2 = jnp.maximum(acc2, NEG_SLOPE * acc2)

    o_ref[...] = (acc1 + acc2).astype(o_ref.dtype)


def _upsample_sep_kernel(x_ref, uwt_ref, uh_ref, o_ref, *, c_t, ohp):
    """Separable bilinear x8 upsample for one (batch, channel-tile) block.

    x_ref   : (c_t*OHp, R) bf16   conv output rows, channel-major
    uwt_ref : (R, WO)   bf16      width operator (dead column row is zero)
    uh_ref  : (HO, OHp) bf16      height operator (dead row cols are zero)
    o_ref   : (c_t, HO, WO)       out dtype
    """
    # Width first: one flat 2-D GEMM, uwt stays the stationary MXU operand.
    t1 = jnp.dot(x_ref[...], uwt_ref[...],
                 preferred_element_type=jnp.float32)       # (c_t*OHp, WO)
    t1 = t1.astype(jnp.bfloat16)
    # Height: per-channel 2-D GEMMs; no broadcast_to of the operator.
    for c in range(c_t):
        o_ref[c] = jnp.dot(uh_ref[...], t1[c * ohp:(c + 1) * ohp, :],
                           preferred_element_type=jnp.float32).astype(o_ref.dtype)


def _upsample_kron_kernel(x_ref, k_ref, o_ref):
    """Small-map fast path: the whole x8 bilinear upsample as a single GEMM.

    x_ref : (N*C, OHp*R) bf16, k_ref : (OHp*R, HO*WO) bf16,
    o_ref : (N*C, HO*WO)  -- fully lane-dense output stores.
    """
    o_ref[...] = jnp.dot(x_ref[...], k_ref[...],
                         preferred_element_type=jnp.float32).astype(o_ref.dtype)


# ------------------------------- glue (JAX) -------------------------------- #
def _phase_slabs(x, stride, pad, OH_pad, OW, T, n_t):
    """Zero-pad + space-to-depth + OH-tile (2-row halo) an NCHW input.

    Returns (N, n_t, stride*stride, C, (T+2)*(OW+1)) bf16 where
    slab[n, i, rh*stride+rw, c, r*(OW+1)+q] == padded_x[n, c,
    stride*(i*T+r)+rh, stride*q+rw].  Conv tap (kh, kw) then only needs the
    contiguous lane slice starting at (kh//stride)*(OW+1) + kw//stride.
    Total size ~= raw input size (vs. 49x for materialized im2col).
    """
    N, C, H, W = x.shape
    R = OW + 1
    Hq = OH_pad + 2
    Hp = stride * Hq
    Wp = stride * R
    xp = jnp.pad(x, ((0, 0), (0, 0), (pad, Hp - H - pad), (pad, Wp - W - pad)))
    xs = xp.reshape(N, C, Hq, stride, R, stride).transpose(0, 3, 5, 1, 2, 4)
    tiles = [xs[:, :, :, :, i * T:i * T + T + 2, :] for i in range(n_t)]
    xt = jnp.stack(tiles, axis=1)                   # (N, n_t, s, s, C, T+2, R)
    return xt.reshape(N, n_t, stride * stride, C, (T + 2) * R).astype(jnp.bfloat16)


@functools.lru_cache(maxsize=None)
def _upsample_matrix(in_size, scale):
    """Dense 1-D bilinear upsample operator (out, in), PyTorch align_corners=False."""
    out_size = in_size * scale
    U = np.zeros((out_size, in_size), np.float32)
    ratio = float(in_size) / float(out_size)
    for o in range(out_size):
        src = ratio * (o + 0.5) - 0.5
        if src < 0.0:
            src = 0.0
        i0 = int(src)
        i1 = i0 + 1 if i0 < in_size - 1 else i0
        l1 = src - i0
        U[o, i0] += 1.0 - l1
        U[o, i1] += l1
    return U


def safa_forward(FF, Fq, params, *, scale=8, out_dtype=jnp.float32,
                 oh_tile=None, c_tile=None, force_separable=False):
    N, C, H, W = FF.shape
    _, _, H2, W2 = Fq.shape
    OH = (H + 4 - 7) // 4 + 1
    OW = (W + 4 - 7) // 4 + 1
    OH2 = (H2 + 2 - 3) // 2 + 1
    OW2 = (W2 + 2 - 3) // 2 + 1
    assert (OH, OW) == (OH2, OW2), "F1 and Fq1 spatial sizes must match"
    R = OW + 1                       # slab row width; column OW is dead
    HO, WO = OH * scale, OW * scale
    osize = np.dtype(out_dtype).itemsize

    # ---- stage-1 OH tiling (bounds VMEM; 2 halo slab rows per tile) ----
    if oh_tile is None:
        per_row = (16 + 4) * C * R * 2            # both slab sets, bf16
        T = int(max(1, min(OH, (8 << 20) // per_row - 2)))
    else:
        T = int(max(1, min(oh_tile, OH)))
    n_t = -(-OH // T)
    T = -(-OH // n_t)
    OH_pad = n_t * T                 # rows >= OH are dead (zero weight later)

    x1f = _phase_slabs(FF, 4, 2, OH_pad, OW, T, n_t)   # (N, n_t, 16, C, (T+2)R)
    x2f = _phase_slabs(Fq, 2, 1, OH_pad, OW, T, n_t)   # (N, n_t,  4, C, (T+2)R)
    w1t = jnp.transpose(params["w1"], (2, 3, 0, 1)).reshape(49, C, C).astype(jnp.bfloat16)
    w2t = jnp.transpose(params["w2"], (2, 3, 0, 1)).reshape(9, C, C).astype(jnp.bfloat16)
    b1 = params["b1"].reshape(C, 1).astype(jnp.float32)
    b2 = params["b2"].reshape(C, 1).astype(jnp.float32)

    L1b = (T + 2) * R
    Lt = T * R

    est1 = (2 * (16 + 4) * C * L1b * 2 + 2 * C * Lt * 2
            + 2 * (w1t.size + w2t.size) * 2 + 3 * C * Lt * 4 + 2 * C * 4)
    vmem1 = int(min(max(2 * est1, 32 << 20), 100 << 20))
    flops1 = 2 * N * n_t * 58 * C * C * Lt
    bytes1 = int((x1f.size + x2f.size + w1t.size + w2t.size) * 2
                 + (b1.size + b2.size) * 4 + N * n_t * C * Lt * 2)

    # ---- stage 1: fused in-kernel-im2col conv GEMMs + bias + LeakyReLU + add
    conv = pl.pallas_call(
        functools.partial(_conv_stage_kernel, T=T, R=R),
        out_shape=jax.ShapeDtypeStruct((N, n_t, C, Lt), jnp.bfloat16),
        grid=(N, n_t),
        in_specs=[
            pl.BlockSpec((None, None, 16, C, L1b), lambda n, i: (n, i, 0, 0, 0)),
            pl.BlockSpec((None, None, 4, C, L1b), lambda n, i: (n, i, 0, 0, 0)),
            pl.BlockSpec((49, C, C), lambda n, i: (0, 0, 0)),
            pl.BlockSpec((9, C, C), lambda n, i: (0, 0, 0)),
            pl.BlockSpec((C, 1), lambda n, i: (0, 0)),
            pl.BlockSpec((C, 1), lambda n, i: (0, 0)),
        ],
        out_specs=pl.BlockSpec((None, None, C, Lt), lambda n, i: (n, i, 0, 0)),
        compiler_params=pltpu.CompilerParams(
            dimension_semantics=("parallel", "parallel"),
            vmem_limit_bytes=vmem1),
        cost_estimate=pl.CostEstimate(flops=flops1, transcendentals=0,
                                      bytes_accessed=bytes1),
    )(x1f, x2f, w1t, w2t, b1, b2)

    # (N, n_t, C, T*R) -> (N, C, OH_pad, R): tiny bf16 intermediate;
    # the transpose is a no-op when n_t == 1.
    x = jnp.transpose(conv, (0, 2, 1, 3)).reshape(N, C, OH_pad, R)

    # ---- bilinear x8 operators (exact in bf16: all weights are k/16) ----
    uh_np = np.zeros((HO, OH_pad), np.float32)
    uh_np[:, :OH] = _upsample_matrix(OH, scale)
    uwt_np = np.zeros((R, WO), np.float32)
    uwt_np[:OW, :] = _upsample_matrix(OW, scale).T

    kron_bytes = (OH_pad * R) * (HO * WO) * 2
    io_bytes = N * C * (OH_pad * R * 2 + HO * WO * osize)
    use_kron = (not force_separable) and kron_bytes <= (2 << 20) \
        and io_bytes <= (8 << 20)

    if use_kron:
        # Small-map fast path: batch folded into the GEMM M dim, lane-dense
        # (HO*WO-wide) output stores even though WO < 128 at toy sizes.
        K = jnp.asarray(
            (uh_np.T[:, None, :, None] * uwt_np[None, :, None, :])
            .reshape(OH_pad * R, HO * WO), jnp.bfloat16)
        x2d = x.reshape(N * C, OH_pad * R)
        flops2 = 2 * N * C * (OH_pad * R) * (HO * WO)
        bytes2 = int(x2d.size * 2 + K.size * 2 + N * C * HO * WO * osize)
        out_flat = pl.pallas_call(
            _upsample_kron_kernel,
            out_shape=jax.ShapeDtypeStruct((N * C, HO * WO), out_dtype),
            grid=(1,),
            in_specs=[pl.BlockSpec((N * C, OH_pad * R), lambda i: (0, 0)),
                      pl.BlockSpec((OH_pad * R, HO * WO), lambda i: (0, 0))],
            out_specs=pl.BlockSpec((N * C, HO * WO), lambda i: (0, 0)),
            compiler_params=pltpu.CompilerParams(
                dimension_semantics=("arbitrary",),
                vmem_limit_bytes=32 << 20),
            cost_estimate=pl.CostEstimate(flops=flops2, transcendentals=0,
                                          bytes_accessed=bytes2),
        )(x2d, K)
        return out_flat.reshape(N, C, HO, WO)

    # ---- general path: C-tiled separable upsample (flat 2-D GEMMs) ----
    if c_tile is None:
        per_c = OH_pad * R * 2 + HO * WO * osize + OH_pad * WO * 4
        cmax = min(max(1, (12 << 20) // per_c), 16, C)
        c_t = max(d for d in range(1, cmax + 1) if C % d == 0)
    else:
        c_t = int(c_tile)
        assert C % c_t == 0, "c_tile must divide the channel count"
    n_c = C // c_t

    x5 = x.reshape(N, n_c, c_t * OH_pad, R)        # metadata-only reshape
    uh = jnp.asarray(uh_np, jnp.bfloat16)
    uwt = jnp.asarray(uwt_np, jnp.bfloat16)

    est2 = (2 * (c_t * OH_pad * R * 2 + c_t * HO * WO * osize)
            + 2 * (uh.size + uwt.size) * 2 + 2 * c_t * OH_pad * WO * 4)
    vmem2 = int(min(max(2 * est2, 32 << 20), 100 << 20))
    flops2 = 2 * N * C * OH_pad * WO * (R + HO)
    bytes2 = int(x5.size * 2 + (uh.size + uwt.size) * 2 + N * C * HO * WO * osize)

    out = pl.pallas_call(
        functools.partial(_upsample_sep_kernel, c_t=c_t, ohp=OH_pad),
        out_shape=jax.ShapeDtypeStruct((N, C, HO, WO), out_dtype),
        grid=(N, n_c),
        in_specs=[
            pl.BlockSpec((None, None, c_t * OH_pad, R), lambda n, j: (n, j, 0, 0)),
            pl.BlockSpec((R, WO), lambda n, j: (0, 0)),
            pl.BlockSpec((HO, OH_pad), lambda n, j: (0, 0)),
        ],
        out_specs=pl.BlockSpec((None, c_t, HO, WO), lambda n, j: (n, j, 0, 0)),
        compiler_params=pltpu.CompilerParams(
            dimension_semantics=("parallel", "parallel"),
            vmem_limit_bytes=vmem2),
        cost_estimate=pl.CostEstimate(flops=flops2, transcendentals=0,
                                      bytes_accessed=bytes2),
    )(x5, uwt, uh)
    return out                                       # NCHW: (N, C, HO, WO)


# --------------------------- pure-JAX reference ---------------------------- #
def _leaky(x):
    return jnp.where(x > 0, x, NEG_SLOPE * x)


def safa_reference(FF, Fq, params, scale=8):
    f1 = jax.lax.conv_general_dilated(
        FF, params["w1"], (4, 4), ((2, 2), (2, 2)),
        dimension_numbers=("NCHW", "OIHW", "NCHW"),
        precision=jax.lax.Precision.HIGHEST)
    f1 = _leaky(f1 + params["b1"][None, :, None, None])
    fq1 = jax.lax.conv_general_dilated(
        Fq, params["w2"], (2, 2), ((1, 1), (1, 1)),
        dimension_numbers=("NCHW", "OIHW", "NCHW"),
        precision=jax.lax.Precision.HIGHEST)
    fq1 = _leaky(fq1 + params["b2"][None, :, None, None])
    fqk = f1 + fq1
    uh = jnp.asarray(_upsample_matrix(fqk.shape[2], scale))
    uw = jnp.asarray(_upsample_matrix(fqk.shape[3], scale))
    return jnp.einsum("oi,ncij,pj->ncop", uh, fqk, uw,
                      precision=jax.lax.Precision.HIGHEST)


# ----------------------------------- main ---------------------------------- #
if __name__ == "__main__":
    key = jax.random.PRNGKey(0)
    kx, kq, kw1, kb1, kw2, kb2 = jax.random.split(key, 6)
    N, C = 2, 4
    # FF at 16x16, Fq at 8x8 -> both convs produce 4x4 so F1 + Fq1 is valid.
    FF = jax.random.normal(kx, (N, C, 16, 16), jnp.float32)
    Fq = jax.random.normal(kq, (N, C, 8, 8), jnp.float32)
    params = {
        "w1": jax.random.normal(kw1, (C, C, 7, 7), jnp.float32) * 0.05,
        "b1": jax.random.normal(kb1, (C,), jnp.float32) * 0.05,
        "w2": jax.random.normal(kw2, (C, C, 3, 3), jnp.float32) * 0.05,
        "b2": jax.random.normal(kb2, (C,), jnp.float32) * 0.05,
    }

    ref = safa_reference(FF, Fq, params)

    # Default path: in-kernel im2col conv stage + lane-dense Kronecker upsample.
    out = jax.block_until_ready(safa_forward(FF, Fq, params))
    assert out.shape == (N, C, 32, 32), out.shape
    np.testing.assert_allclose(np.asarray(out, np.float32), np.asarray(ref),
                               atol=3e-2, rtol=3e-2)

    # Exercise the large-map code paths on the same small problem: multi-tile
    # OH grid in stage 1, C-tiled separable upsample, bf16 output option.
    out2 = jax.block_until_ready(
        safa_forward(FF, Fq, params, oh_tile=2, c_tile=2,
                     force_separable=True, out_dtype=jnp.bfloat16))
    assert out2.shape == (N, C, 32, 32), out2.shape
    np.testing.assert_allclose(np.asarray(out2.astype(jnp.float32)),
                               np.asarray(ref), atol=3e-2, rtol=3e-2)

    print("KERNEL_OK")
</pallas_src>

<mosaic_0001>
module attributes {stable_mosaic.version = 11 : i64} {
  func.func @_conv_stage_kernel(%arg0: i32, %arg1: i32, %arg2: memref<1x1x16x4x30xbf16, #tpu.memory_space<vmem>>, %arg3: memref<1x1x4x4x30xbf16, #tpu.memory_space<vmem>>, %arg4: memref<49x4x4xbf16, #tpu.memory_space<vmem>>, %arg5: memref<9x4x4xbf16, #tpu.memory_space<vmem>>, %arg6: memref<4x1xf32, #tpu.memory_space<vmem>>, %arg7: memref<4x1xf32, #tpu.memory_space<vmem>>, %arg8: memref<1x1x4x20xbf16, #tpu.memory_space<vmem>>) attributes {dimension_semantics = [#tpu.dimension_semantics<parallel>, #tpu.dimension_semantics<parallel>], iteration_bounds = array<i64: 2, 1>, scalar_prefetch = 0 : i64, scratch_operands = 0 : i64, tpu.core_type = #tpu.core_type<tc>, window_params = [{transform_indices = @transform_0, window_bounds = array<i64: 1, 1, 16, 4, 30>}, {transform_indices = @transform_1, window_bounds = array<i64: 1, 1, 4, 4, 30>}, {pipeline_mode = #tpu.pipeline_mode<synchronous>, transform_indices = @transform_2, window_bounds = array<i64: 49, 4, 4>}, {pipeline_mode = #tpu.pipeline_mode<synchronous>, transform_indices = @transform_3, window_bounds = array<i64: 9, 4, 4>}, {pipeline_mode = #tpu.pipeline_mode<synchronous>, transform_indices = @transform_4, window_bounds = array<i64: 4, 1>}, {pipeline_mode = #tpu.pipeline_mode<synchronous>, transform_indices = @transform_5, window_bounds = array<i64: 4, 1>}, {transform_indices = @transform_6, window_bounds = array<i64: 1, 1, 4, 20>}]} {
    %cst = arith.constant 0.000000e+00 : f32
    %0 = vector.broadcast %cst : f32 to vector<4x20xf32>
    %c0 = arith.constant 0 : index
    %c0_0 = arith.constant 0 : index
    %c0_1 = arith.constant 0 : index
    %1 = vector.load %arg4[%c0, %c0_0, %c0_1] : memref<49x4x4xbf16, #tpu.memory_space<vmem>>, vector<1x4x4xbf16>
    %2 = vector.shape_cast %1 : vector<1x4x4xbf16> to vector<4x4xbf16>
    %c0_2 = arith.constant 0 : index
    %c0_3 = arith.constant 0 : index
    %c0_4 = arith.constant 0 : index
    %c0_5 = arith.constant 0 : index
    %c0_6 = arith.constant 0 : index
    %3 = vector.load %arg2[%c0_2, %c0_3, %c0_4, %c0_5, %c0_6] : memref<1x1x16x4x30xbf16, #tpu.memory_space<vmem>>, vector<1x1x1x4x20xbf16>
    %4 = vector.shape_cast %3 : vector<1x1x1x4x20xbf16> to vector<4x20xbf16>
    %cst_7 = arith.constant dense<0.000000e+00> : vector<4x20xf32>
    %5 = tpu.matmul %2, %4, %cst_7 {dimension_numbers = #tpu.dot_dimension_numbers<[1], [0], [0], [1], [0, 0, 1, 1], [], []>} : vector<4x4xbf16>, vector<4x20xbf16>, vector<4x20xf32> -> vector<4x20xf32>
    %6 = arith.addf %0, %5 : vector<4x20xf32>
    %c1 = arith.constant 1 : index
    %c0_8 = arith.constant 0 : index
    %c0_9 = arith.constant 0 : index
    %7 = vector.load %arg4[%c1, %c0_8, %c0_9] : memref<49x4x4xbf16, #tpu.memory_space<vmem>>, vector<1x4x4xbf16>
    %8 = vector.shape_cast %7 : vector<1x4x4xbf16> to vector<4x4xbf16>
    %c0_10 = arith.constant 0 : index
    %c0_11 = arith.constant 0 : index
    %c1_12 = arith.constant 1 : index
    %c0_13 = arith.constant 0 : index
    %c0_14 = arith.constant 0 : index
    %9 = vector.load %arg2[%c0_10, %c0_11, %c1_12, %c0_13, %c0_14] : memref<1x1x16x4x30xbf16, #tpu.memory_space<vmem>>, vector<1x1x1x4x20xbf16>
    %10 = vector.shape_cast %9 : vector<1x1x1x4x20xbf16> to vector<4x20xbf16>
    %cst_15 = arith.constant dense<0.000000e+00> : vector<4x20xf32>
    %11 = tpu.matmul %8, %10, %cst_15 {dimension_numbers = #tpu.dot_dimension_numbers<[1], [0], [0], [1], [0, 0, 1, 1], [], []>} : vector<4x4xbf16>, vector<4x20xbf16>, vector<4x20xf32> -> vector<4x20xf32>
    %12 = arith.addf %6, %11 : vector<4x20xf32>
    %c2 = arith.constant 2 : index
    %c0_16 = arith.constant 0 : index
    %c0_17 = arith.constant 0 : index
    %13 = vector.load %arg4[%c2, %c0_16, %c0_17] : memref<49x4x4xbf16, #tpu.memory_space<vmem>>, vector<1x4x4xbf16>
    %14 = vector.shape_cast %13 : vector<1x4x4xbf16> to vector<4x4xbf16>
    %c0_18 = arith.constant 0 : index
    %c0_19 = arith.constant 0 : index
    %c2_20 = arith.constant 2 : index
    %c0_21 = arith.constant 0 : index
    %c0_22 = arith.constant 0 : index
    %15 = vector.load %arg2[%c0_18, %c0_19, %c2_20, %c0_21, %c0_22] : memref<1x1x16x4x30xbf16, #tpu.memory_space<vmem>>, vector<1x1x1x4x20xbf16>
    %16 = vector.shape_cast %15 : vector<1x1x1x4x20xbf16> to vector<4x20xbf16>
    %cst_23 = arith.constant dense<0.000000e+00> : vector<4x20xf32>
    %17 = tpu.matmul %14, %16, %cst_23 {dimension_numbers = #tpu.dot_dimension_numbers<[1], [0], [0], [1], [0, 0, 1, 1], [], []>} : vector<4x4xbf16>, vector<4x20xbf16>, vector<4x20xf32> -> vector<4x20xf32>
    %18 = arith.addf %12, %17 : vector<4x20xf32>
    %c3 = arith.constant 3 : index
    %c0_24 = arith.constant 0 : index
    %c0_25 = arith.constant 0 : index
    %19 = vector.load %arg4[%c3, %c0_24, %c0_25] : memref<49x4x4xbf16, #tpu.memory_space<vmem>>, vector<1x4x4xbf16>
    %20 = vector.shape_cast %19 : vector<1x4x4xbf16> to vector<4x4xbf16>
    %c0_26 = arith.constant 0 : index
    %c0_27 = arith.constant 0 : index
    %c3_28 = arith.constant 3 : index
    %c0_29 = arith.constant 0 : index
    %c0_30 = arith.constant 0 : index
    %21 = vector.load %arg2[%c0_26, %c0_27, %c3_28, %c0_29, %c0_30] : memref<1x1x16x4x30xbf16, #tpu.memory_space<vmem>>, vector<1x1x1x4x20xbf16>
    %22 = vector.shape_cast %21 : vector<1x1x1x4x20xbf16> to vector<4x20xbf16>
    %cst_31 = arith.constant dense<0.000000e+00> : vector<4x20xf32>
    %23 = tpu.matmul %20, %22, %cst_31 {dimension_numbers = #tpu.dot_dimension_numbers<[1], [0], [0], [1], [0, 0, 1, 1], [], []>} : vector<4x4xbf16>, vector<4x20xbf16>, vector<4x20xf32> -> vector<4x20xf32>
    %24 = arith.addf %18, %23 : vector<4x20xf32>
    %c4 = arith.constant 4 : index
    %c0_32 = arith.constant 0 : index
    %c0_33 = arith.constant 0 : index
    %25 = vector.load %arg4[%c4, %c0_32, %c0_33] : memref<49x4x4xbf16, #tpu.memory_space<vmem>>, vector<1x4x4xbf16>
    %26 = vector.shape_cast %25 : vector<1x4x4xbf16> to vector<4x4xbf16>
    %c0_34 = arith.constant 0 : index
    %c0_35 = arith.constant 0 : index
    %c0_36 = arith.constant 0 : index
    %c0_37 = arith.constant 0 : index
    %c1_38 = arith.constant 1 : index
    %27 = vector.load %arg2[%c0_34, %c0_35, %c0_36, %c0_37, %c1_38] : memref<1x1x16x4x30xbf16, #tpu.memory_space<vmem>>, vector<1x1x1x4x20xbf16>
    %28 = vector.shape_cast %27 : vector<1x1x1x4x20xbf16> to vector<4x20xbf16>
    %cst_39 = arith.constant dense<0.000000e+00> : vector<4x20xf32>
    %29 = tpu.matmul %26, %28, %cst_39 {dimension_numbers = #tpu.dot_dimension_numbers<[1], [0], [0], [1], [0, 0, 1, 1], [], []>} : vector<4x4xbf16>, vector<4x20xbf16>, vector<4x20xf32> -> vector<4x20xf32>
    %30 = arith.addf %24, %29 : vector<4x20xf32>
    %c5 = arith.constant 5 : index
    %c0_40 = arith.constant 0 : index
    %c0_41 = arith.constant 0 : index
    %31 = vector.load %arg4[%c5, %c0_40, %c0_41] : memref<49x4x4xbf16, #tpu.memory_space<vmem>>, vector<1x4x4xbf16>
    %32 = vector.shape_cast %31 : vector<1x4x4xbf16> to vector<4x4xbf16>
    %c0_42 = arith.constant 0 : index
    %c0_43 = arith.constant 0 : index
    %c1_44 = arith.constant 1 : index
    %c0_45 = arith.constant 0 : index
    %c1_46 = arith.constant 1 : index
    %33 = vector.load %arg2[%c0_42, %c0_43, %c1_44, %c0_45, %c1_46] : memref<1x1x16x4x30xbf16, #tpu.memory_space<vmem>>, vector<1x1x1x4x20xbf16>
    %34 = vector.shape_cast %33 : vector<1x1x1x4x20xbf16> to vector<4x20xbf16>
    %cst_47 = arith.constant dense<0.000000e+00> : vector<4x20xf32>
    %35 = tpu.matmul %32, %34, %cst_47 {dimension_numbers = #tpu.dot_dimension_numbers<[1], [0], [0], [1], [0, 0, 1, 1], [], []>} : vector<4x4xbf16>, vector<4x20xbf16>, vector<4x20xf32> -> vector<4x20xf32>
    %36 = arith.addf %30, %35 : vector<4x20xf32>
    %c6 = arith.constant 6 : index
    %c0_48 = arith.constant 0 : index
    %c0_49 = arith.constant 0 : index
    %37 = vector.load %arg4[%c6, %c0_48, %c0_49] : memref<49x4x4xbf16, #tpu.memory_space<vmem>>, vector<1x4x4xbf16>
    %38 = vector.shape_cast %37 : vector<1x4x4xbf16> to vector<4x4xbf16>
    %c0_50 = arith.constant 0 : index
    %c0_51 = arith.constant 0 : index
    %c2_52 = arith.constant 2 : index
    %c0_53 = arith.constant 0 : index
    %c1_54 = arith.constant 1 : index
    %39 = vector.load %arg2[%c0_50, %c0_51, %c2_52, %c0_53, %c1_54] : memref<1x1x16x4x30xbf16, #tpu.memory_space<vmem>>, vector<1x1x1x4x20xbf16>
    %40 = vector.shape_cast %39 : vector<1x1x1x4x20xbf16> to vector<4x20xbf16>
    %cst_55 = arith.constant dense<0.000000e+00> : vector<4x20xf32>
    %41 = tpu.matmul %38, %40, %cst_55 {dimension_numbers = #tpu.dot_dimension_numbers<[1], [0], [0], [1], [0, 0, 1, 1], [], []>} : vector<4x4xbf16>, vector<4x20xbf16>, vector<4x20xf32> -> vector<4x20xf32>
    %42 = arith.addf %36, %41 : vector<4x20xf32>
    %c7 = arith.constant 7 : index
    %c0_56 = arith.constant 0 : index
    %c0_57 = arith.constant 0 : index
    %43 = vector.load %arg4[%c7, %c0_56, %c0_57] : memref<49x4x4xbf16, #tpu.memory_space<vmem>>, vector<1x4x4xbf16>
    %44 = vector.shape_cast %43 : vector<1x4x4xbf16> to vector<4x4xbf16>
    %c0_58 = arith.constant 0 : index
    %c0_59 = arith.constant 0 : index
    %c4_60 = arith.constant 4 : index
    %c0_61 = arith.constant 0 : index
    %c0_62 = arith.constant 0 : index
    %45 = vector.load %arg2[%c0_58, %c0_59, %c4_60, %c0_61, %c0_62] : memref<1x1x16x4x30xbf16, #tpu.memory_space<vmem>>, vector<1x1x1x4x20xbf16>
    %46 = vector.shape_cast %45 : vector<1x1x1x4x20xbf16> to vector<4x20xbf16>
    %cst_63 = arith.constant dense<0.000000e+00> : vector<4x20xf32>
    %47 = tpu.matmul %44, %46, %cst_63 {dimension_numbers = #tpu.dot_dimension_numbers<[1], [0], [0], [1], [0, 0, 1, 1], [], []>} : vector<4x4xbf16>, vector<4x20xbf16>, vector<4x20xf32> -> vector<4x20xf32>
    %48 = arith.addf %42, %47 : vector<4x20xf32>
    %c8 = arith.constant 8 : index
    %c0_64 = arith.constant 0 : index
    %c0_65 = arith.constant 0 : index
    %49 = vector.load %arg4[%c8, %c0_64, %c0_65] : memref<49x4x4xbf16, #tpu.memory_space<vmem>>, vector<1x4x4xbf16>
    %50 = vector.shape_cast %49 : vector<1x4x4xbf16> to vector<4x4xbf16>
    %c0_66 = arith.constant 0 : index
    %c0_67 = arith.constant 0 : index
    %c5_68 = arith.constant 5 : index
    %c0_69 = arith.constant 0 : index
    %c0_70 = arith.constant 0 : index
    %51 = vector.load %arg2[%c0_66, %c0_67, %c5_68, %c0_69, %c0_70] : memref<1x1x16x4x30xbf16, #tpu.memory_space<vmem>>, vector<1x1x1x4x20xbf16>
    %52 = vector.shape_cast %51 : vector<1x1x1x4x20xbf16> to vector<4x20xbf16>
    %cst_71 = arith.constant dense<0.000000e+00> : vector<4x20xf32>
    %53 = tpu.matmul %50, %52, %cst_71 {dimension_numbers = #tpu.dot_dimension_numbers<[1], [0], [0], [1], [0, 0, 1, 1], [], []>} : vector<4x4xbf16>, vector<4x20xbf16>, vector<4x20xf32> -> vector<4x20xf32>
    %54 = arith.addf %48, %53 : vector<4x20xf32>
    %c9 = arith.constant 9 : index
    %c0_72 = arith.constant 0 : index
    %c0_73 = arith.constant 0 : index
    %55 = vector.load %arg4[%c9, %c0_72, %c0_73] : memref<49x4x4xbf16, #tpu.memory_space<vmem>>, vector<1x4x4xbf16>
    %56 = vector.shape_cast %55 : vector<1x4x4xbf16> to vector<4x4xbf16>
    %c0_74 = arith.constant 0 : index
    %c0_75 = arith.constant 0 : index
    %c6_76 = arith.constant 6 : index
    %c0_77 = arith.constant 0 : index
    %c0_78 = arith.constant 0 : index
    %57 = vector.load %arg2[%c0_74, %c0_75, %c6_76, %c0_77, %c0_78] : memref<1x1x16x4x30xbf16, #tpu.memory_space<vmem>>, vector<1x1x1x4x20xbf16>
    %58 = vector.shape_cast %57 : vector<1x1x1x4x20xbf16> to vector<4x20xbf16>
    %cst_79 = arith.constant dense<0.000000e+00> : vector<4x20xf32>
    %59 = tpu.matmul %56, %58, %cst_79 {dimension_numbers = #tpu.dot_dimension_numbers<[1], [0], [0], [1], [0, 0, 1, 1], [], []>} : vector<4x4xbf16>, vector<4x20xbf16>, vector<4x20xf32> -> vector<4x20xf32>
    %60 = arith.addf %54, %59 : vector<4x20xf32>
    %c10 = arith.constant 10 : index
    %c0_80 = arith.constant 0 : index
    %c0_81 = arith.constant 0 : index
    %61 = vector.load %arg4[%c10, %c0_80, %c0_81] : memref<49x4x4xbf16, #tpu.memory_space<vmem>>, vector<1x4x4xbf16>
    %62 = vector.shape_cast %61 : vector<1x4x4xbf16> to vector<4x4xbf16>
    %c0_82 = arith.constant 0 : index
    %c0_83 = arith.constant 0 : index
    %c7_84 = arith.constant 7 : index
    %c0_85 = arith.constant 0 : index
    %c0_86 = arith.constant 0 : index
    %63 = vector.load %arg2[%c0_82, %c0_83, %c7_84, %c0_85, %c0_86] : memref<1x1x16x4x30xbf16, #tpu.memory_space<vmem>>, vector<1x1x1x4x20xbf16>
    %64 = vector.shape_cast %63 : vector<1x1x1x4x20xbf16> to vector<4x20xbf16>
    %cst_87 = arith.constant dense<0.000000e+00> : vector<4x20xf32>
    %65 = tpu.matmul %62, %64, %cst_87 {dimension_numbers = #tpu.dot_dimension_numbers<[1], [0], [0], [1], [0, 0, 1, 1], [], []>} : vector<4x4xbf16>, vector<4x20xbf16>, vector<4x20xf32> -> vector<4x20xf32>
    %66 = arith.addf %60, %65 : vector<4x20xf32>
    %c11 = arith.constant 11 : index
    %c0_88 = arith.constant 0 : index
    %c0_89 = arith.constant 0 : index
    %67 = vector.load %arg4[%c11, %c0_88, %c0_89] : memref<49x4x4xbf16, #tpu.memory_space<vmem>>, vector<1x4x4xbf16>
    %68 = vector.shape_cast %67 : vector<1x4x4xbf16> to vector<4x4xbf16>
    %c0_90 = arith.constant 0 : index
    %c0_91 = arith.constant 0 : index
    %c4_92 = arith.constant 4 : index
    %c0_93 = arith.constant 0 : index
    %c1_94 = arith.constant 1 : index
    %69 = vector.load %arg2[%c0_90, %c0_91, %c4_92, %c0_93, %c1_94] : memref<1x1x16x4x30xbf16, #tpu.memory_space<vmem>>, vector<1x1x1x4x20xbf16>
    %70 = vector.shape_cast %69 : vector<1x1x1x4x20xbf16> to vector<4x20xbf16>
    %cst_95 = arith.constant dense<0.000000e+00> : vector<4x20xf32>
    %71 = tpu.matmul %68, %70, %cst_95 {dimension_numbers = #tpu.dot_dimension_numbers<[1], [0], [0], [1], [0, 0, 1, 1], [], []>} : vector<4x4xbf16>, vector<4x20xbf16>, vector<4x20xf32> -> vector<4x20xf32>
    %72 = arith.addf %66, %71 : vector<4x20xf32>
    %c12 = arith.constant 12 : index
    %c0_96 = arith.constant 0 : index
    %c0_97 = arith.constant 0 : index
    %73 = vector.load %arg4[%c12, %c0_96, %c0_97] : memref<49x4x4xbf16, #tpu.memory_space<vmem>>, vector<1x4x4xbf16>
    %74 = vector.shape_cast %73 : vector<1x4x4xbf16> to vector<4x4xbf16>
    %c0_98 = arith.constant 0 : index
    %c0_99 = arith.constant 0 : index
    %c5_100 = arith.constant 5 : index
    %c0_101 = arith.constant 0 : index
    %c1_102 = arith.constant 1 : index
    %75 = vector.load %arg2[%c0_98, %c0_99, %c5_100, %c0_101, %c1_102] : memref<1x1x16x4x30xbf16, #tpu.memory_space<vmem>>, vector<1x1x1x4x20xbf16>
    %76 = vector.shape_cast %75 : vector<1x1x1x4x20xbf16> to vector<4x20xbf16>
    %cst_103 = arith.constant dense<0.000000e+00> : vector<4x20xf32>
    %77 = tpu.matmul %74, %76, %cst_103 {dimension_numbers = #tpu.dot_dimension_numbers<[1], [0], [0], [1], [0, 0, 1, 1], [], []>} : vector<4x4xbf16>, vector<4x20xbf16>, vector<4x20xf32> -> vector<4x20xf32>
    %78 = arith.addf %72, %77 : vector<4x20xf32>
    %c13 = arith.constant 13 : index
    %c0_104 = arith.constant 0 : index
    %c0_105 = arith.constant 0 : index
    %79 = vector.load %arg4[%c13, %c0_104, %c0_105] : memref<49x4x4xbf16, #tpu.memory_space<vmem>>, vector<1x4x4xbf16>
    %80 = vector.shape_cast %79 : vector<1x4x4xbf16> to vector<4x4xbf16>
    %c0_106 = arith.constant 0 : index
    %c0_107 = arith.constant 0 : index
    %c6_108 = arith.constant 6 : index
    %c0_109 = arith.constant 0 : index
    %c1_110 = arith.constant 1 : index
    %81 = vector.load %arg2[%c0_106, %c0_107, %c6_108, %c0_109, %c1_110] : memref<1x1x16x4x30xbf16, #tpu.memory_space<vmem>>, vector<1x1x1x4x20xbf16>
    %82 = vector.shape_cast %81 : vector<1x1x1x4x20xbf16> to vector<4x20xbf16>
    %cst_111 = arith.constant dense<0.000000e+00> : vector<4x20xf32>
    %83 = tpu.matmul %80, %82, %cst_111 {dimension_numbers = #tpu.dot_dimension_numbers<[1], [0], [0], [1], [0, 0, 1, 1], [], []>} : vector<4x4xbf16>, vector<4x20xbf16>, vector<4x20xf32> -> vector<4x20xf32>
    %84 = arith.addf %78, %83 : vector<4x20xf32>
    %c14 = arith.constant 14 : index
    %c0_112 = arith.constant 0 : index
    %c0_113 = arith.constant 0 : index
    %85 = vector.load %arg4[%c14, %c0_112, %c0_113] : memref<49x4x4xbf16, #tpu.memory_space<vmem>>, vector<1x4x4xbf16>
    %86 = vector.shape_cast %85 : vector<1x4x4xbf16> to vector<4x4xbf16>
    %c0_114 = arith.constant 0 : index
    %c0_115 = arith.constant 0 : index
    %c8_116 = arith.constant 8 : index
    %c0_117 = arith.constant 0 : index
    %c0_118 = arith.constant 0 : index
    %87 = vector.load %arg2[%c0_114, %c0_115, %c8_116, %c0_117, %c0_118] : memref<1x1x16x4x30xbf16, #tpu.memory_space<vmem>>, vector<1x1x1x4x20xbf16>
    %88 = vector.shape_cast %87 : vector<1x1x1x4x20xbf16> to vector<4x20xbf16>
    %cst_119 = arith.constant dense<0.000000e+00> : vector<4x20xf32>
    %89 = tpu.matmul %86, %88, %cst_119 {dimension_numbers = #tpu.dot_dimension_numbers<[1], [0], [0], [1], [0, 0, 1, 1], [], []>} : vector<4x4xbf16>, vector<4x20xbf16>, vector<4x20xf32> -> vector<4x20xf32>
    %90 = arith.addf %84, %89 : vector<4x20xf32>
    %c15 = arith.constant 15 : index
    %c0_120 = arith.constant 0 : index
    %c0_121 = arith.constant 0 : index
    %91 = vector.load %arg4[%c15, %c0_120, %c0_121] : memref<49x4x4xbf16, #tpu.memory_space<vmem>>, vector<1x4x4xbf16>
    %92 = vector.shape_cast %91 : vector<1x4x4xbf16> to vector<4x4xbf16>
    %c0_122 = arith.constant 0 : index
    %c0_123 = arith.constant 0 : index
    %c9_124 = arith.constant 9 : index
    %c0_125 = arith.constant 0 : index
    %c0_126 = arith.constant 0 : index
    %93 = vector.load %arg2[%c0_122, %c0_123, %c9_124, %c0_125, %c0_126] : memref<1x1x16x4x30xbf16, #tpu.memory_space<vmem>>, vector<1x1x1x4x20xbf16>
    %94 = vector.shape_cast %93 : vector<1x1x1x4x20xbf16> to vector<4x20xbf16>
    %cst_127 = arith.constant dense<0.000000e+00> : vector<4x20xf32>
    %95 = tpu.matmul %92, %94, %cst_127 {dimension_numbers = #tpu.dot_dimension_numbers<[1], [0], [0], [1], [0, 0, 1, 1], [], []>} : vector<4x4xbf16>, vector<4x20xbf16>, vector<4x20xf32> -> vector<4x20xf32>
    %96 = arith.addf %90, %95 : vector<4x20xf32>
    %c16 = arith.constant 16 : index
    %c0_128 = arith.constant 0 : index
    %c0_129 = arith.constant 0 : index
    %97 = vector.load %arg4[%c16, %c0_128, %c0_129] : memref<49x4x4xbf16, #tpu.memory_space<vmem>>, vector<1x4x4xbf16>
    %98 = vector.shape_cast %97 : vector<1x4x4xbf16> to vector<4x4xbf16>
    %c0_130 = arith.constant 0 : index
    %c0_131 = arith.constant 0 : index
    %c10_132 = arith.constant 10 : index
    %c0_133 = arith.constant 0 : index
    %c0_134 = arith.constant 0 : index
    %99 = vector.load %arg2[%c0_130, %c0_131, %c10_132, %c0_133, %c0_134] : memref<1x1x16x4x30xbf16, #tpu.memory_space<vmem>>, vector<1x1x1x4x20xbf16>
    %100 = vector.shape_cast %99 : vector<1x1x1x4x20xbf16> to vector<4x20xbf16>
    %cst_135 = arith.constant dense<0.000000e+00> : vector<4x20xf32>
    %101 = tpu.matmul %98, %100, %cst_135 {dimension_numbers = #tpu.dot_dimension_numbers<[1], [0], [0], [1], [0, 0, 1, 1], [], []>} : vector<4x4xbf16>, vector<4x20xbf16>, vector<4x20xf32> -> vector<4x20xf32>
    %102 = arith.addf %96, %101 : vector<4x20xf32>
    %c17 = arith.constant 17 : index
    %c0_136 = arith.constant 0 : index
    %c0_137 = arith.constant 0 : index
    %103 = vector.load %arg4[%c17, %c0_136, %c0_137] : memref<49x4x4xbf16, #tpu.memory_space<vmem>>, vector<1x4x4xbf16>
    %104 = vector.shape_cast %103 : vector<1x4x4xbf16> to vector<4x4xbf16>
    %c0_138 = arith.constant 0 : index
    %c0_139 = arith.constant 0 : index
    %c11_140 = arith.constant 11 : index
    %c0_141 = arith.constant 0 : index
    %c0_142 = arith.constant 0 : index
    %105 = vector.load %arg2[%c0_138, %c0_139, %c11_140, %c0_141, %c0_142] : memref<1x1x16x4x30xbf16, #tpu.memory_space<vmem>>, vector<1x1x1x4x20xbf16>
    %106 = vector.shape_cast %105 : vector<1x1x1x4x20xbf16> to vector<4x20xbf16>
    %cst_143 = arith.constant dense<0.000000e+00> : vector<4x20xf32>
    %107 = tpu.matmul %104, %106, %cst_143 {dimension_numbers = #tpu.dot_dimension_numbers<[1], [0], [0], [1], [0, 0, 1, 1], [], []>} : vector<4x4xbf16>, vector<4x20xbf16>, vector<4x20xf32> -> vector<4x20xf32>
    %108 = arith.addf %102, %107 : vector<4x20xf32>
    %c18 = arith.constant 18 : index
    %c0_144 = arith.constant 0 : index
    %c0_145 = arith.constant 0 : index
    %109 = vector.load %arg4[%c18, %c0_144, %c0_145] : memref<49x4x4xbf16, #tpu.memory_space<vmem>>, vector<1x4x4xbf16>
    %110 = vector.shape_cast %109 : vector<1x4x4xbf16> to vector<4x4xbf16>
    %c0_146 = arith.constant 0 : index
    %c0_147 = arith.constant 0 : index
    %c8_148 = arith.constant 8 : index
    %c0_149 = arith.constant 0 : index
    %c1_150 = arith.constant 1 : index
    %111 = vector.load %arg2[%c0_146, %c0_147, %c8_148, %c0_149, %c1_150] : memref<1x1x16x4x30xbf16, #tpu.memory_space<vmem>>, vector<1x1x1x4x20xbf16>
    %112 = vector.shape_cast %111 : vector<1x1x1x4x20xbf16> to vector<4x20xbf16>
    %cst_151 = arith.constant dense<0.000000e+00> : vector<4x20xf32>
    %113 = tpu.matmul %110, %112, %cst_151 {dimension_numbers = #tpu.dot_dimension_numbers<[1], [0], [0], [1], [0, 0, 1, 1], [], []>} : vector<4x4xbf16>, vector<4x20xbf16>, vector<4x20xf32> -> vector<4x20xf32>
    %114 = arith.addf %108, %113 : vector<4x20xf32>
    %c19 = arith.constant 19 : index
    %c0_152 = arith.constant 0 : index
    %c0_153 = arith.constant 0 : index
    %115 = vector.load %arg4[%c19, %c0_152, %c0_153] : memref<49x4x4xbf16, #tpu.memory_space<vmem>>, vector<1x4x4xbf16>
    %116 = vector.shape_cast %115 : vector<1x4x4xbf16> to vector<4x4xbf16>
    %c0_154 = arith.constant 0 : index
    %c0_155 = arith.constant 0 : index
    %c9_156 = arith.constant 9 : index
    %c0_157 = arith.constant 0 : index
    %c1_158 = arith.constant 1 : index
    %117 = vector.load %arg2[%c0_154, %c0_155, %c9_156, %c0_157, %c1_158] : memref<1x1x16x4x30xbf16, #tpu.memory_space<vmem>>, vector<1x1x1x4x20xbf16>
    %118 = vector.shape_cast %117 : vector<1x1x1x4x20xbf16> to vector<4x20xbf16>
    %cst_159 = arith.constant dense<0.000000e+00> : vector<4x20xf32>
    %119 = tpu.matmul %116, %118, %cst_159 {dimension_numbers = #tpu.dot_dimension_numbers<[1], [0], [0], [1], [0, 0, 1, 1], [], []>} : vector<4x4xbf16>, vector<4x20xbf16>, vector<4x20xf32> -> vector<4x20xf32>
    %120 = arith.addf %114, %119 : vector<4x20xf32>
    %c20 = arith.constant 20 : index
    %c0_160 = arith.constant 0 : index
    %c0_161 = arith.constant 0 : index
    %121 = vector.load %arg4[%c20, %c0_160, %c0_161] : memref<49x4x4xbf16, #tpu.memory_space<vmem>>, vector<1x4x4xbf16>
    %122 = vector.shape_cast %121 : vector<1x4x4xbf16> to vector<4x4xbf16>
    %c0_162 = arith.constant 0 : index
    %c0_163 = arith.constant 0 : index
    %c10_164 = arith.constant 10 : index
    %c0_165 = arith.constant 0 : index
    %c1_166 = arith.constant 1 : index
    %123 = vector.load %arg2[%c0_162, %c0_163, %c10_164, %c0_165, %c1_166] : memref<1x1x16x4x30xbf16, #tpu.memory_space<vmem>>, vector<1x1x1x4x20xbf16>
    %124 = vector.shape_cast %123 : vector<1x1x1x4x20xbf16> to vector<4x20xbf16>
    %cst_167 = arith.constant dense<0.000000e+00> : vector<4x20xf32>
    %125 = tpu.matmul %122, %124, %cst_167 {dimension_numbers = #tpu.dot_dimension_numbers<[1], [0], [0], [1], [0, 0, 1, 1], [], []>} : vector<4x4xbf16>, vector<4x20xbf16>, vector<4x20xf32> -> vector<4x20xf32>
    %126 = arith.addf %120, %125 : vector<4x20xf32>
    %c21 = arith.constant 21 : index
    %c0_168 = arith.constant 0 : index
    %c0_169 = arith.constant 0 : index
    %127 = vector.load %arg4[%c21, %c0_168, %c0_169] : memref<49x4x4xbf16, #tpu.memory_space<vmem>>, vector<1x4x4xbf16>
    %128 = vector.shape_cast %127 : vector<1x4x4xbf16> to vector<4x4xbf16>
    %c0_170 = arith.constant 0 : index
    %c0_171 = arith.constant 0 : index
    %c12_172 = arith.constant 12 : index
    %c0_173 = arith.constant 0 : index
    %c0_174 = arith.constant 0 : index
    %129 = vector.load %arg2[%c0_170, %c0_171, %c12_172, %c0_173, %c0_174] : memref<1x1x16x4x30xbf16, #tpu.memory_space<vmem>>, vector<1x1x1x4x20xbf16>
    %130 = vector.shape_cast %129 : vector<1x1x1x4x20xbf16> to vector<4x20xbf16>
    %cst_175 = arith.constant dense<0.000000e+00> : vector<4x20xf32>
    %131 = tpu.matmul %128, %130, %cst_175 {dimension_numbers = #tpu.dot_dimension_numbers<[1], [0], [0], [1], [0, 0, 1, 1], [], []>} : vector<4x4xbf16>, vector<4x20xbf16>, vector<4x20xf32> -> vector<4x20xf32>
    %132 = arith.addf %126, %131 : vector<4x20xf32>
    %c22 = arith.constant 22 : index
    %c0_176 = arith.constant 0 : index
    %c0_177 = arith.constant 0 : index
    %133 = vector.load %arg4[%c22, %c0_176, %c0_177] : memref<49x4x4xbf16, #tpu.memory_space<vmem>>, vector<1x4x4xbf16>
    %134 = vector.shape_cast %133 : vector<1x4x4xbf16> to vector<4x4xbf16>
    %c0_178 = arith.constant 0 : index
    %c0_179 = arith.constant 0 : index
    %c13_180 = arith.constant 13 : index
    %c0_181 = arith.constant 0 : index
    %c0_182 = arith.constant 0 : index
    %135 = vector.load %arg2[%c0_178, %c0_179, %c13_180, %c0_181, %c0_182] : memref<1x1x16x4x30xbf16, #tpu.memory_space<vmem>>, vector<1x1x1x4x20xbf16>
    %136 = vector.shape_cast %135 : vector<1x1x1x4x20xbf16> to vector<4x20xbf16>
    %cst_183 = arith.constant dense<0.000000e+00> : vector<4x20xf32>
    %137 = tpu.matmul %134, %136, %cst_183 {dimension_numbers = #tpu.dot_dimension_numbers<[1], [0], [0], [1], [0, 0, 1, 1], [], []>} : vector<4x4xbf16>, vector<4x20xbf16>, vector<4x20xf32> -> vector<4x20xf32>
    %138 = arith.addf %132, %137 : vector<4x20xf32>
    %c23 = arith.constant 23 : index
    %c0_184 = arith.constant 0 : index
    %c0_185 = arith.constant 0 : index
    %139 = vector.load %arg4[%c23, %c0_184, %c0_185] : memref<49x4x4xbf16, #tpu.memory_space<vmem>>, vector<1x4x4xbf16>
    %140 = vector.shape_cast %139 : vector<1x4x4xbf16> to vector<4x4xbf16>
    %c0_186 = arith.constant 0 : index
    %c0_187 = arith.constant 0 : index
    %c14_188 = arith.constant 14 : index
    %c0_189 = arith.constant 0 : index
    %c0_190 = arith.constant 0 : index
    %141 = vector.load %arg2[%c0_186, %c0_187, %c14_188, %c0_189, %c0_190] : memref<1x1x16x4x30xbf16, #tpu.memory_space<vmem>>, vector<1x1x1x4x20xbf16>
    %142 = vector.shape_cast %141 : vector<1x1x1x4x20xbf16> to vector<4x20xbf16>
    %cst_191 = arith.constant dense<0.000000e+00> : vector<4x20xf32>
    %143 = tpu.matmul %140, %142, %cst_191 {dimension_numbers = #tpu.dot_dimension_numbers<[1], [0], [0], [1], [0, 0, 1, 1], [], []>} : vector<4x4xbf16>, vector<4x20xbf16>, vector<4x20xf32> -> vector<4x20xf32>
    %144 = arith.addf %138, %143 : vector<4x20xf32>
    %c24 = arith.constant 24 : index
    %c0_192 = arith.constant 0 : index
    %c0_193 = arith.constant 0 : index
    %145 = vector.load %arg4[%c24, %c0_192, %c0_193] : memref<49x4x4xbf16, #tpu.memory_space<vmem>>, vector<1x4x4xbf16>
    %146 = vector.shape_cast %145 : vector<1x4x4xbf16> to vector<4x4xbf16>
    %c0_194 = arith.constant 0 : index
    %c0_195 = arith.constant 0 : index
    %c15_196 = arith.constant 15 : index
    %c0_197 = arith.constant 0 : index
    %c0_198 = arith.constant 0 : index
    %147 = vector.load %arg2[%c0_194, %c0_195, %c15_196, %c0_197, %c0_198] : memref<1x1x16x4x30xbf16, #tpu.memory_space<vmem>>, vector<1x1x1x4x20xbf16>
    %148 = vector.shape_cast %147 : vector<1x1x1x4x20xbf16> to vector<4x20xbf16>
    %cst_199 = arith.constant dense<0.000000e+00> : vector<4x20xf32>
    %149 = tpu.matmul %146, %148, %cst_199 {dimension_numbers = #tpu.dot_dimension_numbers<[1], [0], [0], [1], [0, 0, 1, 1], [], []>} : vector<4x4xbf16>, vector<4x20xbf16>, vector<4x20xf32> -> vector<4x20xf32>
    %150 = arith.addf %144, %149 : vector<4x20xf32>
    %c25 = arith.constant 25 : index
    %c0_200 = arith.constant 0 : index
    %c0_201 = arith.constant 0 : index
    %151 = vector.load %arg4[%c25, %c0_200, %c0_201] : memref<49x4x4xbf16, #tpu.memory_space<vmem>>, vector<1x4x4xbf16>
    %152 = vector.shape_cast %151 : vector<1x4x4xbf16> to vector<4x4xbf16>
    %c0_202 = arith.constant 0 : index
    %c0_203 = arith.constant 0 : index
    %c12_204 = arith.constant 12 : index
    %c0_205 = arith.constant 0 : index
    %c1_206 = arith.constant 1 : index
    %153 = vector.load %arg2[%c0_202, %c0_203, %c12_204, %c0_205, %c1_206] : memref<1x1x16x4x30xbf16, #tpu.memory_space<vmem>>, vector<1x1x1x4x20xbf16>
    %154 = vector.shape_cast %153 : vector<1x1x1x4x20xbf16> to vector<4x20xbf16>
    %cst_207 = arith.constant dense<0.000000e+00> : vector<4x20xf32>
    %155 = tpu.matmul %152, %154, %cst_207 {dimension_numbers = #tpu.dot_dimension_numbers<[1], [0], [0], [1], [0, 0, 1, 1], [], []>} : vector<4x4xbf16>, vector<4x20xbf16>, vector<4x20xf32> -> vector<4x20xf32>
    %156 = arith.addf %150, %155 : vector<4x20xf32>
    %c26 = arith.constant 26 : index
    %c0_208 = arith.constant 0 : index
    %c0_209 = arith.constant 0 : index
    %157 = vector.load %arg4[%c26, %c0_208, %c0_209] : memref<49x4x4xbf16, #tpu.memory_space<vmem>>, vector<1x4x4xbf16>
    %158 = vector.shape_cast %157 : vector<1x4x4xbf16> to vector<4x4xbf16>
    %c0_210 = arith.constant 0 : index
    %c0_211 = arith.constant 0 : index
    %c13_212 = arith.constant 13 : index
    %c0_213 = arith.constant 0 : index
    %c1_214 = arith.constant 1 : index
    %159 = vector.load %arg2[%c0_210, %c0_211, %c13_212, %c0_213, %c1_214] : memref<1x1x16x4x30xbf16, #tpu.memory_space<vmem>>, vector<1x1x1x4x20xbf16>
    %160 = vector.shape_cast %159 : vector<1x1x1x4x20xbf16> to vector<4x20xbf16>
    %cst_215 = arith.constant dense<0.000000e+00> : vector<4x20xf32>
    %161 = tpu.matmul %158, %160, %cst_215 {dimension_numbers = #tpu.dot_dimension_numbers<[1], [0], [0], [1], [0, 0, 1, 1], [], []>} : vector<4x4xbf16>, vector<4x20xbf16>, vector<4x20xf32> -> vector<4x20xf32>
    %162 = arith.addf %156, %161 : vector<4x20xf32>
    %c27 = arith.constant 27 : index
    %c0_216 = arith.constant 0 : index
    %c0_217 = arith.constant 0 : index
    %163 = vector.load %arg4[%c27, %c0_216, %c0_217] : memref<49x4x4xbf16, #tpu.memory_space<vmem>>, vector<1x4x4xbf16>
    %164 = vector.shape_cast %163 : vector<1x4x4xbf16> to vector<4x4xbf16>
    %c0_218 = arith.constant 0 : index
    %c0_219 = arith.constant 0 : index
    %c14_220 = arith.constant 14 : index
    %c0_221 = arith.constant 0 : index
    %c1_222 = arith.constant 1 : index
    %165 = vector.load %arg2[%c0_218, %c0_219, %c14_220, %c0_221, %c1_222] : memref<1x1x16x4x30xbf16, #tpu.memory_space<vmem>>, vector<1x1x1x4x20xbf16>
    %166 = vector.shape_cast %165 : vector<1x1x1x4x20xbf16> to vector<4x20xbf16>
    %cst_223 = arith.constant dense<0.000000e+00> : vector<4x20xf32>
    %167 = tpu.matmul %164, %166, %cst_223 {dimension_numbers = #tpu.dot_dimension_numbers<[1], [0], [0], [1], [0, 0, 1, 1], [], []>} : vector<4x4xbf16>, vector<4x20xbf16>, vector<4x20xf32> -> vector<4x20xf32>
    %168 = arith.addf %162, %167 : vector<4x20xf32>
    %c28 = arith.constant 28 : index
    %c0_224 = arith.constant 0 : index
    %c0_225 = arith.constant 0 : index
    %169 = vector.load %arg4[%c28, %c0_224, %c0_225] : memref<49x4x4xbf16, #tpu.memory_space<vmem>>, vector<1x4x4xbf16>
    %170 = vector.shape_cast %169 : vector<1x4x4xbf16> to vector<4x4xbf16>
    %c0_226 = arith.constant 0 : index
    %c0_227 = arith.constant 0 : index
    %c0_228 = arith.constant 0 : index
    %c0_229 = arith.constant 0 : index
    %c5_230 = arith.constant 5 : index
    %171 = vector.load %arg2[%c0_226, %c0_227, %c0_228, %c0_229, %c5_230] : memref<1x1x16x4x30xbf16, #tpu.memory_space<vmem>>, vector<1x1x1x4x20xbf16>
    %172 = vector.shape_cast %171 : vector<1x1x1x4x20xbf16> to vector<4x20xbf16>
    %cst_231 = arith.constant dense<0.000000e+00> : vector<4x20xf32>
    %173 = tpu.matmul %170, %172, %cst_231 {dimension_numbers = #tpu.dot_dimension_numbers<[1], [0], [0], [1], [0, 0, 1, 1], [], []>} : vector<4x4xbf16>, vector<4x20xbf16>, vector<4x20xf32> -> vector<4x20xf32>
    %174 = arith.addf %168, %173 : vector<4x20xf32>
    %c29 = arith.constant 29 : index
    %c0_232 = arith.constant 0 : index
    %c0_233 = arith.constant 0 : index
    %175 = vector.load %arg4[%c29, %c0_232, %c0_233] : memref<49x4x4xbf16, #tpu.memory_space<vmem>>, vector<1x4x4xbf16>
    %176 = vector.shape_cast %175 : vector<1x4x4xbf16> to vector<4x4xbf16>
    %c0_234 = arith.constant 0 : index
    %c0_235 = arith.constant 0 : index
    %c1_236 = arith.constant 1 : index
    %c0_237 = arith.constant 0 : index
    %c5_238 = arith.constant 5 : index
    %177 = vector.load %arg2[%c0_234, %c0_235, %c1_236, %c0_237, %c5_238] : memref<1x1x16x4x30xbf16, #tpu.memory_space<vmem>>, vector<1x1x1x4x20xbf16>
    %178 = vector.shape_cast %177 : vector<1x1x1x4x20xbf16> to vector<4x20xbf16>
    %cst_239 = arith.constant dense<0.000000e+00> : vector<4x20xf32>
    %179 = tpu.matmul %176, %178, %cst_239 {dimension_numbers = #tpu.dot_dimension_numbers<[1], [0], [0], [1], [0, 0, 1, 1], [], []>} : vector<4x4xbf16>, vector<4x20xbf16>, vector<4x20xf32> -> vector<4x20xf32>
    %180 = arith.addf %174, %179 : vector<4x20xf32>
    %c30 = arith.constant 30 : index
    %c0_240 = arith.constant 0 : index
    %c0_241 = arith.constant 0 : index
    %181 = vector.load %arg4[%c30, %c0_240, %c0_241] : memref<49x4x4xbf16, #tpu.memory_space<vmem>>, vector<1x4x4xbf16>
    %182 = vector.shape_cast %181 : vector<1x4x4xbf16> to vector<4x4xbf16>
    %c0_242 = arith.constant 0 : index
    %c0_243 = arith.constant 0 : index
    %c2_244 = arith.constant 2 : index
    %c0_245 = arith.constant 0 : index
    %c5_246 = arith.constant 5 : index
    %183 = vector.load %arg2[%c0_242, %c0_243, %c2_244, %c0_245, %c5_246] : memref<1x1x16x4x30xbf16, #tpu.memory_space<vmem>>, vector<1x1x1x4x20xbf16>
    %184 = vector.shape_cast %183 : vector<1x1x1x4x20xbf16> to vector<4x20xbf16>
    %cst_247 = arith.constant dense<0.000000e+00> : vector<4x20xf32>
    %185 = tpu.matmul %182, %184, %cst_247 {dimension_numbers = #tpu.dot_dimension_numbers<[1], [0], [0], [1], [0, 0, 1, 1], [], []>} : vector<4x4xbf16>, vector<4x20xbf16>, vector<4x20xf32> -> vector<4x20xf32>
    %186 = arith.addf %180, %185 : vector<4x20xf32>
    %c31 = arith.constant 31 : index
    %c0_248 = arith.constant 0 : index
    %c0_249 = arith.constant 0 : index
    %187 = vector.load %arg4[%c31, %c0_248, %c0_249] : memref<49x4x4xbf16, #tpu.memory_space<vmem>>, vector<1x4x4xbf16>
    %188 = vector.shape_cast %187 : vector<1x4x4xbf16> to vector<4x4xbf16>
    %c0_250 = arith.constant 0 : index
    %c0_251 = arith.constant 0 : index
    %c3_252 = arith.constant 3 : index
    %c0_253 = arith.constant 0 : index
    %c5_254 = arith.constant 5 : index
    %189 = vector.load %arg2[%c0_250, %c0_251, %c3_252, %c0_253, %c5_254] : memref<1x1x16x4x30xbf16, #tpu.memory_space<vmem>>, vector<1x1x1x4x20xbf16>
    %190 = vector.shape_cast %189 : vector<1x1x1x4x20xbf16> to vector<4x20xbf16>
    %cst_255 = arith.constant dense<0.000000e+00> : vector<4x20xf32>
    %191 = tpu.matmul %188, %190, %cst_255 {dimension_numbers = #tpu.dot_dimension_numbers<[1], [0], [0], [1], [0, 0, 1, 1], [], []>} : vector<4x4xbf16>, vector<4x20xbf16>, vector<4x20xf32> -> vector<4x20xf32>
    %192 = arith.addf %186, %191 : vector<4x20xf32>
    %c32 = arith.constant 32 : index
    %c0_256 = arith.constant 0 : index
    %c0_257 = arith.constant 0 : index
    %193 = vector.load %arg4[%c32, %c0_256, %c0_257] : memref<49x4x4xbf16, #tpu.memory_space<vmem>>, vector<1x4x4xbf16>
    %194 = vector.shape_cast %193 : vector<1x4x4xbf16> to vector<4x4xbf16>
    %c0_258 = arith.constant 0 : index
    %c0_259 = arith.constant 0 : index
    %c0_260 = arith.constant 0 : index
    %c0_261 = arith.constant 0 : index
    %c6_262 = arith.constant 6 : index
    %195 = vector.load %arg2[%c0_258, %c0_259, %c0_260, %c0_261, %c6_262] : memref<1x1x16x4x30xbf16, #tpu.memory_space<vmem>>, vector<1x1x1x4x20xbf16>
    %196 = vector.shape_cast %195 : vector<1x1x1x4x20xbf16> to vector<4x20xbf16>
    %cst_263 = arith.constant dense<0.000000e+00> : vector<4x20xf32>
    %197 = tpu.matmul %194, %196, %cst_263 {dimension_numbers = #tpu.dot_dimension_numbers<[1], [0], [0], [1], [0, 0, 1, 1], [], []>} : vector<4x4xbf16>, vector<4x20xbf16>, vector<4x20xf32> -> vector<4x20xf32>
    %198 = arith.addf %192, %197 : vector<4x20xf32>
    %c33 = arith.constant 33 : index
    %c0_264 = arith.constant 0 : index
    %c0_265 = arith.constant 0 : index
    %199 = vector.load %arg4[%c33, %c0_264, %c0_265] : memref<49x4x4xbf16, #tpu.memory_space<vmem>>, vector<1x4x4xbf16>
    %200 = vector.shape_cast %199 : vector<1x4x4xbf16> to vector<4x4xbf16>
    %c0_266 = arith.constant 0 : index
    %c0_267 = arith.constant 0 : index
    %c1_268 = arith.constant 1 : index
    %c0_269 = arith.constant 0 : index
    %c6_270 = arith.constant 6 : index
    %201 = vector.load %arg2[%c0_266, %c0_267, %c1_268, %c0_269, %c6_270] : memref<1x1x16x4x30xbf16, #tpu.memory_space<vmem>>, vector<1x1x1x4x20xbf16>
    %202 = vector.shape_cast %201 : vector<1x1x1x4x20xbf16> to vector<4x20xbf16>
    %cst_271 = arith.constant dense<0.000000e+00> : vector<4x20xf32>
    %203 = tpu.matmul %200, %202, %cst_271 {dimension_numbers = #tpu.dot_dimension_numbers<[1], [0], [0], [1], [0, 0, 1, 1], [], []>} : vector<4x4xbf16>, vector<4x20xbf16>, vector<4x20xf32> -> vector<4x20xf32>
    %204 = arith.addf %198, %203 : vector<4x20xf32>
    %c34 = arith.constant 34 : index
    %c0_272 = arith.constant 0 : index
    %c0_273 = arith.constant 0 : index
    %205 = vector.load %arg4[%c34, %c0_272, %c0_273] : memref<49x4x4xbf16, #tpu.memory_space<vmem>>, vector<1x4x4xbf16>
    %206 = vector.shape_cast %205 : vector<1x4x4xbf16> to vector<4x4xbf16>
    %c0_274 = arith.constant 0 : index
    %c0_275 = arith.constant 0 : index
    %c2_276 = arith.constant 2 : index
    %c0_277 = arith.constant 0 : index
    %c6_278 = arith.constant 6 : index
    %207 = vector.load %arg2[%c0_274, %c0_275, %c2_276, %c0_277, %c6_278] : memref<1x1x16x4x30xbf16, #tpu.memory_space<vmem>>, vector<1x1x1x4x20xbf16>
    %208 = vector.shape_cast %207 : vector<1x1x1x4x20xbf16> to vector<4x20xbf16>
    %cst_279 = arith.constant dense<0.000000e+00> : vector<4x20xf32>
    %209 = tpu.matmul %206, %208, %cst_279 {dimension_numbers = #tpu.dot_dimension_numbers<[1], [0], [0], [1], [0, 0, 1, 1], [], []>} : vector<4x4xbf16>, vector<4x20xbf16>, vector<4x20xf32> -> vector<4x20xf32>
    %210 = arith.addf %204, %209 : vector<4x20xf32>
    %c35 = arith.constant 35 : index
    %c0_280 = arith.constant 0 : index
    %c0_281 = arith.constant 0 : index
    %211 = vector.load %arg4[%c35, %c0_280, %c0_281] : memref<49x4x4xbf16, #tpu.memory_space<vmem>>, vector<1x4x4xbf16>
    %212 = vector.shape_cast %211 : vector<1x4x4xbf16> to vector<4x4xbf16>
    %c0_282 = arith.constant 0 : index
    %c0_283 = arith.constant 0 : index
    %c4_284 = arith.constant 4 : index
    %c0_285 = arith.constant 0 : index
    %c5_286 = arith.constant 5 : index
    %213 = vector.load %arg2[%c0_282, %c0_283, %c4_284, %c0_285, %c5_286] : memref<1x1x16x4x30xbf16, #tpu.memory_space<vmem>>, vector<1x1x1x4x20xbf16>
    %214 = vector.shape_cast %213 : vector<1x1x1x4x20xbf16> to vector<4x20xbf16>
    %cst_287 = arith.constant dense<0.000000e+00> : vector<4x20xf32>
    %215 = tpu.matmul %212, %214, %cst_287 {dimension_numbers = #tpu.dot_dimension_numbers<[1], [0], [0], [1], [0, 0, 1, 1], [], []>} : vector<4x4xbf16>, vector<4x20xbf16>, vector<4x20xf32> -> vector<4x20xf32>
    %216 = arith.addf %210, %215 : vector<4x20xf32>
    %c36 = arith.constant 36 : index
    %c0_288 = arith.constant 0 : index
    %c0_289 = arith.constant 0 : index
    %217 = vector.load %arg4[%c36, %c0_288, %c0_289] : memref<49x4x4xbf16, #tpu.memory_space<vmem>>, vector<1x4x4xbf16>
    %218 = vector.shape_cast %217 : vector<1x4x4xbf16> to vector<4x4xbf16>
    %c0_290 = arith.constant 0 : index
    %c0_291 = arith.constant 0 : index
    %c5_292 = arith.constant 5 : index
    %c0_293 = arith.constant 0 : index
    %c5_294 = arith.constant 5 : index
    %219 = vector.load %arg2[%c0_290, %c0_291, %c5_292, %c0_293, %c5_294] : memref<1x1x16x4x30xbf16, #tpu.memory_space<vmem>>, vector<1x1x1x4x20xbf16>
    %220 = vector.shape_cast %219 : vector<1x1x1x4x20xbf16> to vector<4x20xbf16>
    %cst_295 = arith.constant dense<0.000000e+00> : vector<4x20xf32>
    %221 = tpu.matmul %218, %220, %cst_295 {dimension_numbers = #tpu.dot_dimension_numbers<[1], [0], [0], [1], [0, 0, 1, 1], [], []>} : vector<4x4xbf16>, vector<4x20xbf16>, vector<4x20xf32> -> vector<4x20xf32>
    %222 = arith.addf %216, %221 : vector<4x20xf32>
    %c37 = arith.constant 37 : index
    %c0_296 = arith.constant 0 : index
    %c0_297 = arith.constant 0 : index
    %223 = vector.load %arg4[%c37, %c0_296, %c0_297] : memref<49x4x4xbf16, #tpu.memory_space<vmem>>, vector<1x4x4xbf16>
    %224 = vector.shape_cast %223 : vector<1x4x4xbf16> to vector<4x4xbf16>
    %c0_298 = arith.constant 0 : index
    %c0_299 = arith.constant 0 : index
    %c6_300 = arith.constant 6 : index
    %c0_301 = arith.constant 0 : index
    %c5_302 = arith.constant 5 : index
    %225 = vector.load %arg2[%c0_298, %c0_299, %c6_300, %c0_301, %c5_302] : memref<1x1x16x4x30xbf16, #tpu.memory_space<vmem>>, vector<1x1x1x4x20xbf16>
    %226 = vector.shape_cast %225 : vector<1x1x1x4x20xbf16> to vector<4x20xbf16>
    %cst_303 = arith.constant dense<0.000000e+00> : vector<4x20xf32>
    %227 = tpu.matmul %224, %226, %cst_303 {dimension_numbers = #tpu.dot_dimension_numbers<[1], [0], [0], [1], [0, 0, 1, 1], [], []>} : vector<4x4xbf16>, vector<4x20xbf16>, vector<4x20xf32> -> vector<4x20xf32>
    %228 = arith.addf %222, %227 : vector<4x20xf32>
    %c38 = arith.constant 38 : index
    %c0_304 = arith.constant 0 : index
    %c0_305 = arith.constant 0 : index
    %229 = vector.load %arg4[%c38, %c0_304, %c0_305] : memref<49x4x4xbf16, #tpu.memory_space<vmem>>, vector<1x4x4xbf16>
    %230 = vector.shape_cast %229 : vector<1x4x4xbf16> to vector<4x4xbf16>
    %c0_306 = arith.constant 0 : index
    %c0_307 = arith.constant 0 : index
    %c7_308 = arith.constant 7 : index
    %c0_309 = arith.constant 0 : index
    %c5_310 = arith.constant 5 : index
    %231 = vector.load %arg2[%c0_306, %c0_307, %c7_308, %c0_309, %c5_310] : memref<1x1x16x4x30xbf16, #tpu.memory_space<vmem>>, vector<1x1x1x4x20xbf16>
    %232 = vector.shape_cast %231 : vector<1x1x1x4x20xbf16> to vector<4x20xbf16>
    %cst_311 = arith.constant dense<0.000000e+00> : vector<4x20xf32>
    %233 = tpu.matmul %230, %232, %cst_311 {dimension_numbers = #tpu.dot_dimension_numbers<[1], [0], [0], [1], [0, 0, 1, 1], [], []>} : vector<4x4xbf16>, vector<4x20xbf16>, vector<4x20xf32> -> vector<4x20xf32>
    %234 = arith.addf %228, %233 : vector<4x20xf32>
    %c39 = arith.constant 39 : index
    %c0_312 = arith.constant 0 : index
    %c0_313 = arith.constant 0 : index
    %235 = vector.load %arg4[%c39, %c0_312, %c0_313] : memref<49x4x4xbf16, #tpu.memory_space<vmem>>, vector<1x4x4xbf16>
    %236 = vector.shape_cast %235 : vector<1x4x4xbf16> to vector<4x4xbf16>
    %c0_314 = arith.constant 0 : index
    %c0_315 = arith.constant 0 : index
    %c4_316 = arith.constant 4 : index
    %c0_317 = arith.constant 0 : index
    %c6_318 = arith.constant 6 : index
    %237 = vector.load %arg2[%c0_314, %c0_315, %c4_316, %c0_317, %c6_318] : memref<1x1x16x4x30xbf16, #tpu.memory_space<vmem>>, vector<1x1x1x4x20xbf16>
    %238 = vector.shape_cast %237 : vector<1x1x1x4x20xbf16> to vector<4x20xbf16>
    %cst_319 = arith.constant dense<0.000000e+00> : vector<4x20xf32>
    %239 = tpu.matmul %236, %238, %cst_319 {dimension_numbers = #tpu.dot_dimension_numbers<[1], [0], [0], [1], [0, 0, 1, 1], [], []>} : vector<4x4xbf16>, vector<4x20xbf16>, vector<4x20xf32> -> vector<4x20xf32>
    %240 = arith.addf %234, %239 : vector<4x20xf32>
    %c40 = arith.constant 40 : index
    %c0_320 = arith.constant 0 : index
    %c0_321 = arith.constant 0 : index
    %241 = vector.load %arg4[%c40, %c0_320, %c0_321] : memref<49x4x4xbf16, #tpu.memory_space<vmem>>, vector<1x4x4xbf16>
    %242 = vector.shape_cast %241 : vector<1x4x4xbf16> to vector<4x4xbf16>
    %c0_322 = arith.constant 0 : index
    %c0_323 = arith.constant 0 : index
    %c5_324 = arith.constant 5 : index
    %c0_325 = arith.constant 0 : index
    %c6_326 = arith.constant 6 : index
    %243 = vector.load %arg2[%c0_322, %c0_323, %c5_324, %c0_325, %c6_326] : memref<1x1x16x4x30xbf16, #tpu.memory_space<vmem>>, vector<1x1x1x4x20xbf16>
    %244 = vector.shape_cast %243 : vector<1x1x1x4x20xbf16> to vector<4x20xbf16>
    %cst_327 = arith.constant dense<0.000000e+00> : vector<4x20xf32>
    %245 = tpu.matmul %242, %244, %cst_327 {dimension_numbers = #tpu.dot_dimension_numbers<[1], [0], [0], [1], [0, 0, 1, 1], [], []>} : vector<4x4xbf16>, vector<4x20xbf16>, vector<4x20xf32> -> vector<4x20xf32>
    %246 = arith.addf %240, %245 : vector<4x20xf32>
    %c41 = arith.constant 41 : index
    %c0_328 = arith.constant 0 : index
    %c0_329 = arith.constant 0 : index
    %247 = vector.load %arg4[%c41, %c0_328, %c0_329] : memref<49x4x4xbf16, #tpu.memory_space<vmem>>, vector<1x4x4xbf16>
    %248 = vector.shape_cast %247 : vector<1x4x4xbf16> to vector<4x4xbf16>
    %c0_330 = arith.constant 0 : index
    %c0_331 = arith.constant 0 : index
    %c6_332 = arith.constant 6 : index
    %c0_333 = arith.constant 0 : index
    %c6_334 = arith.constant 6 : index
    %249 = vector.load %arg2[%c0_330, %c0_331, %c6_332, %c0_333, %c6_334] : memref<1x1x16x4x30xbf16, #tpu.memory_space<vmem>>, vector<1x1x1x4x20xbf16>
    %250 = vector.shape_cast %249 : vector<1x1x1x4x20xbf16> to vector<4x20xbf16>
    %cst_335 = arith.constant dense<0.000000e+00> : vector<4x20xf32>
    %251 = tpu.matmul %248, %250, %cst_335 {dimension_numbers = #tpu.dot_dimension_numbers<[1], [0], [0], [1], [0, 0, 1, 1], [], []>} : vector<4x4xbf16>, vector<4x20xbf16>, vector<4x20xf32> -> vector<4x20xf32>
    %252 = arith.addf %246, %251 : vector<4x20xf32>
    %c42 = arith.constant 42 : index
    %c0_336 = arith.constant 0 : index
    %c0_337 = arith.constant 0 : index
    %253 = vector.load %arg4[%c42, %c0_336, %c0_337] : memref<49x4x4xbf16, #tpu.memory_space<vmem>>, vector<1x4x4xbf16>
    %254 = vector.shape_cast %253 : vector<1x4x4xbf16> to vector<4x4xbf16>
    %c0_338 = arith.constant 0 : index
    %c0_339 = arith.constant 0 : index
    %c8_340 = arith.constant 8 : index
    %c0_341 = arith.constant 0 : index
    %c5_342 = arith.constant 5 : index
    %255 = vector.load %arg2[%c0_338, %c0_339, %c8_340, %c0_341, %c5_342] : memref<1x1x16x4x30xbf16, #tpu.memory_space<vmem>>, vector<1x1x1x4x20xbf16>
    %256 = vector.shape_cast %255 : vector<1x1x1x4x20xbf16> to vector<4x20xbf16>
    %cst_343 = arith.constant dense<0.000000e+00> : vector<4x20xf32>
    %257 = tpu.matmul %254, %256, %cst_343 {dimension_numbers = #tpu.dot_dimension_numbers<[1], [0], [0], [1], [0, 0, 1, 1], [], []>} : vector<4x4xbf16>, vector<4x20xbf16>, vector<4x20xf32> -> vector<4x20xf32>
    %258 = arith.addf %252, %257 : vector<4x20xf32>
    %c43 = arith.constant 43 : index
    %c0_344 = arith.constant 0 : index
    %c0_345 = arith.constant 0 : index
    %259 = vector.load %arg4[%c43, %c0_344, %c0_345] : memref<49x4x4xbf16, #tpu.memory_space<vmem>>, vector<1x4x4xbf16>
    %260 = vector.shape_cast %259 : vector<1x4x4xbf16> to vector<4x4xbf16>
    %c0_346 = arith.constant 0 : index
    %c0_347 = arith.constant 0 : index
    %c9_348 = arith.constant 9 : index
    %c0_349 = arith.constant 0 : index
    %c5_350 = arith.constant 5 : index
    %261 = vector.load %arg2[%c0_346, %c0_347, %c9_348, %c0_349, %c5_350] : memref<1x1x16x4x30xbf16, #tpu.memory_space<vmem>>, vector<1x1x1x4x20xbf16>
    %262 = vector.shape_cast %261 : vector<1x1x1x4x20xbf16> to vector<4x20xbf16>
    %cst_351 = arith.constant dense<0.000000e+00> : vector<4x20xf32>
    %263 = tpu.matmul %260, %262, %cst_351 {dimension_numbers = #tpu.dot_dimension_numbers<[1], [0], [0], [1], [0, 0, 1, 1], [], []>} : vector<4x4xbf16>, vector<4x20xbf16>, vector<4x20xf32> -> vector<4x20xf32>
    %264 = arith.addf %258, %263 : vector<4x20xf32>
    %c44 = arith.constant 44 : index
    %c0_352 = arith.constant 0 : index
    %c0_353 = arith.constant 0 : index
    %265 = vector.load %arg4[%c44, %c0_352, %c0_353] : memref<49x4x4xbf16, #tpu.memory_space<vmem>>, vector<1x4x4xbf16>
    %266 = vector.shape_cast %265 : vector<1x4x4xbf16> to vector<4x4xbf16>
    %c0_354 = arith.constant 0 : index
    %c0_355 = arith.constant 0 : index
    %c10_356 = arith.constant 10 : index
    %c0_357 = arith.constant 0 : index
    %c5_358 = arith.constant 5 : index
    %267 = vector.load %arg2[%c0_354, %c0_355, %c10_356, %c0_357, %c5_358] : memref<1x1x16x4x30xbf16, #tpu.memory_space<vmem>>, vector<1x1x1x4x20xbf16>
    %268 = vector.shape_cast %267 : vector<1x1x1x4x20xbf16> to vector<4x20xbf16>
    %cst_359 = arith.constant dense<0.000000e+00> : vector<4x20xf32>
    %269 = tpu.matmul %266, %268, %cst_359 {dimension_numbers = #tpu.dot_dimension_numbers<[1], [0], [0], [1], [0, 0, 1, 1], [], []>} : vector<4x4xbf16>, vector<4x20xbf16>, vector<4x20xf32> -> vector<4x20xf32>
    %270 = arith.addf %264, %269 : vector<4x20xf32>
    %c45 = arith.constant 45 : index
    %c0_360 = arith.constant 0 : index
    %c0_361 = arith.constant 0 : index
    %271 = vector.load %arg4[%c45, %c0_360, %c0_361] : memref<49x4x4xbf16, #tpu.memory_space<vmem>>, vector<1x4x4xbf16>
    %272 = vector.shape_cast %271 : vector<1x4x4xbf16> to vector<4x4xbf16>
    %c0_362 = arith.constant 0 : index
    %c0_363 = arith.constant 0 : index
    %c11_364 = arith.constant 11 : index
    %c0_365 = arith.constant 0 : index
    %c5_366 = arith.constant 5 : index
    %273 = vector.load %arg2[%c0_362, %c0_363, %c11_364, %c0_365, %c5_366] : memref<1x1x16x4x30xbf16, #tpu.memory_space<vmem>>, vector<1x1x1x4x20xbf16>
    %274 = vector.shape_cast %273 : vector<1x1x1x4x20xbf16> to vector<4x20xbf16>
    %cst_367 = arith.constant dense<0.000000e+00> : vector<4x20xf32>
    %275 = tpu.matmul %272, %274, %cst_367 {dimension_numbers = #tpu.dot_dimension_numbers<[1], [0], [0], [1], [0, 0, 1, 1], [], []>} : vector<4x4xbf16>, vector<4x20xbf16>, vector<4x20xf32> -> vector<4x20xf32>
    %276 = arith.addf %270, %275 : vector<4x20xf32>
    %c46 = arith.constant 46 : index
    %c0_368 = arith.constant 0 : index
    %c0_369 = arith.constant 0 : index
    %277 = vector.load %arg4[%c46, %c0_368, %c0_369] : memref<49x4x4xbf16, #tpu.memory_space<vmem>>, vector<1x4x4xbf16>
    %278 = vector.shape_cast %277 : vector<1x4x4xbf16> to vector<4x4xbf16>
    %c0_370 = arith.constant 0 : index
    %c0_371 = arith.constant 0 : index
    %c8_372 = arith.constant 8 : index
    %c0_373 = arith.constant 0 : index
    %c6_374 = arith.constant 6 : index
    %279 = vector.load %arg2[%c0_370, %c0_371, %c8_372, %c0_373, %c6_374] : memref<1x1x16x4x30xbf16, #tpu.memory_space<vmem>>, vector<1x1x1x4x20xbf16>
    %280 = vector.shape_cast %279 : vector<1x1x1x4x20xbf16> to vector<4x20xbf16>
    %cst_375 = arith.constant dense<0.000000e+00> : vector<4x20xf32>
    %281 = tpu.matmul %278, %280, %cst_375 {dimension_numbers = #tpu.dot_dimension_numbers<[1], [0], [0], [1], [0, 0, 1, 1], [], []>} : vector<4x4xbf16>, vector<4x20xbf16>, vector<4x20xf32> -> vector<4x20xf32>
    %282 = arith.addf %276, %281 : vector<4x20xf32>
    %c47 = arith.constant 47 : index
    %c0_376 = arith.constant 0 : index
    %c0_377 = arith.constant 0 : index
    %283 = vector.load %arg4[%c47, %c0_376, %c0_377] : memref<49x4x4xbf16, #tpu.memory_space<vmem>>, vector<1x4x4xbf16>
    %284 = vector.shape_cast %283 : vector<1x4x4xbf16> to vector<4x4xbf16>
    %c0_378 = arith.constant 0 : index
    %c0_379 = arith.constant 0 : index
    %c9_380 = arith.constant 9 : index
    %c0_381 = arith.constant 0 : index
    %c6_382 = arith.constant 6 : index
    %285 = vector.load %arg2[%c0_378, %c0_379, %c9_380, %c0_381, %c6_382] : memref<1x1x16x4x30xbf16, #tpu.memory_space<vmem>>, vector<1x1x1x4x20xbf16>
    %286 = vector.shape_cast %285 : vector<1x1x1x4x20xbf16> to vector<4x20xbf16>
    %cst_383 = arith.constant dense<0.000000e+00> : vector<4x20xf32>
    %287 = tpu.matmul %284, %286, %cst_383 {dimension_numbers = #tpu.dot_dimension_numbers<[1], [0], [0], [1], [0, 0, 1, 1], [], []>} : vector<4x4xbf16>, vector<4x20xbf16>, vector<4x20xf32> -> vector<4x20xf32>
    %288 = arith.addf %282, %287 : vector<4x20xf32>
    %c48 = arith.constant 48 : index
    %c0_384 = arith.constant 0 : index
    %c0_385 = arith.constant 0 : index
    %289 = vector.load %arg4[%c48, %c0_384, %c0_385] : memref<49x4x4xbf16, #tpu.memory_space<vmem>>, vector<1x4x4xbf16>
    %290 = vector.shape_cast %289 : vector<1x4x4xbf16> to vector<4x4xbf16>
    %c0_386 = arith.constant 0 : index
    %c0_387 = arith.constant 0 : index
    %c10_388 = arith.constant 10 : index
    %c0_389 = arith.constant 0 : index
    %c6_390 = arith.constant 6 : index
    %291 = vector.load %arg2[%c0_386, %c0_387, %c10_388, %c0_389, %c6_390] : memref<1x1x16x4x30xbf16, #tpu.memory_space<vmem>>, vector<1x1x1x4x20xbf16>
    %292 = vector.shape_cast %291 : vector<1x1x1x4x20xbf16> to vector<4x20xbf16>
    %cst_391 = arith.constant dense<0.000000e+00> : vector<4x20xf32>
    %293 = tpu.matmul %290, %292, %cst_391 {dimension_numbers = #tpu.dot_dimension_numbers<[1], [0], [0], [1], [0, 0, 1, 1], [], []>} : vector<4x4xbf16>, vector<4x20xbf16>, vector<4x20xf32> -> vector<4x20xf32>
    %294 = arith.addf %288, %293 : vector<4x20xf32>
    %c0_392 = arith.constant 0 : index
    %c0_393 = arith.constant 0 : index
    %295 = vector.load %arg6[%c0_392, %c0_393] : memref<4x1xf32, #tpu.memory_space<vmem>>, vector<4x1xf32>
    %296 = vector.broadcast %295 : vector<4x1xf32> to vector<4x20xf32>
    %297 = arith.addf %294, %296 : vector<4x20xf32>
    %cst_394 = arith.constant 0.00999999977 : f32
    %298 = vector.broadcast %cst_394 : f32 to vector<4x20xf32>
    %299 = arith.mulf %298, %297 : vector<4x20xf32>
    %300 = arith.maximumf %297, %299 : vector<4x20xf32>
    %cst_395 = arith.constant 0.000000e+00 : f32
    %301 = vector.broadcast %cst_395 : f32 to vector<4x20xf32>
    %c0_396 = arith.constant 0 : index
    %c0_397 = arith.constant 0 : index
    %c0_398 = arith.constant 0 : index
    %302 = vector.load %arg5[%c0_396, %c0_397, %c0_398] : memref<9x4x4xbf16, #tpu.memory_space<vmem>>, vector<1x4x4xbf16>
    %303 = vector.shape_cast %302 : vector<1x4x4xbf16> to vector<4x4xbf16>
    %c0_399 = arith.constant 0 : index
    %c0_400 = arith.constant 0 : index
    %c0_401 = arith.constant 0 : index
    %c0_402 = arith.constant 0 : index
    %c0_403 = arith.constant 0 : index
    %304 = vector.load %arg3[%c0_399, %c0_400, %c0_401, %c0_402, %c0_403] : memref<1x1x4x4x30xbf16, #tpu.memory_space<vmem>>, vector<1x1x1x4x20xbf16>
    %305 = vector.shape_cast %304 : vector<1x1x1x4x20xbf16> to vector<4x20xbf16>
    %cst_404 = arith.constant dense<0.000000e+00> : vector<4x20xf32>
    %306 = tpu.matmul %303, %305, %cst_404 {dimension_numbers = #tpu.dot_dimension_numbers<[1], [0], [0], [1], [0, 0, 1, 1], [], []>} : vector<4x4xbf16>, vector<4x20xbf16>, vector<4x20xf32> -> vector<4x20xf32>
    %307 = arith.addf %301, %306 : vector<4x20xf32>
    %c1_405 = arith.constant 1 : index
    %c0_406 = arith.constant 0 : index
    %c0_407 = arith.constant 0 : index
    %308 = vector.load %arg5[%c1_405, %c0_406, %c0_407] : memref<9x4x4xbf16, #tpu.memory_space<vmem>>, vector<1x4x4xbf16>
    %309 = vector.shape_cast %308 : vector<1x4x4xbf16> to vector<4x4xbf16>
    %c0_408 = arith.constant 0 : index
    %c0_409 = arith.constant 0 : index
    %c1_410 = arith.constant 1 : index
    %c0_411 = arith.constant 0 : index
    %c0_412 = arith.constant 0 : index
    %310 = vector.load %arg3[%c0_408, %c0_409, %c1_410, %c0_411, %c0_412] : memref<1x1x4x4x30xbf16, #tpu.memory_space<vmem>>, vector<1x1x1x4x20xbf16>
    %311 = vector.shape_cast %310 : vector<1x1x1x4x20xbf16> to vector<4x20xbf16>
    %cst_413 = arith.constant dense<0.000000e+00> : vector<4x20xf32>
    %312 = tpu.matmul %309, %311, %cst_413 {dimension_numbers = #tpu.dot_dimension_numbers<[1], [0], [0], [1], [0, 0, 1, 1], [], []>} : vector<4x4xbf16>, vector<4x20xbf16>, vector<4x20xf32> -> vector<4x20xf32>
    %313 = arith.addf %307, %312 : vector<4x20xf32>
    %c2_414 = arith.constant 2 : index
    %c0_415 = arith.constant 0 : index
    %c0_416 = arith.constant 0 : index
    %314 = vector.load %arg5[%c2_414, %c0_415, %c0_416] : memref<9x4x4xbf16, #tpu.memory_space<vmem>>, vector<1x4x4xbf16>
    %315 = vector.shape_cast %314 : vector<1x4x4xbf16> to vector<4x4xbf16>
    %c0_417 = arith.constant 0 : index
    %c0_418 = arith.constant 0 : index
    %c0_419 = arith.constant 0 : index
    %c0_420 = arith.constant 0 : index
    %c1_421 = arith.constant 1 : index
    %316 = vector.load %arg3[%c0_417, %c0_418, %c0_419, %c0_420, %c1_421] : memref<1x1x4x4x30xbf16, #tpu.memory_space<vmem>>, vector<1x1x1x4x20xbf16>
    %317 = vector.shape_cast %316 : vector<1x1x1x4x20xbf16> to vector<4x20xbf16>
    %cst_422 = arith.constant dense<0.000000e+00> : vector<4x20xf32>
    %318 = tpu.matmul %315, %317, %cst_422 {dimension_numbers = #tpu.dot_dimension_numbers<[1], [0], [0], [1], [0, 0, 1, 1], [], []>} : vector<4x4xbf16>, vector<4x20xbf16>, vector<4x20xf32> -> vector<4x20xf32>
    %319 = arith.addf %313, %318 : vector<4x20xf32>
    %c3_423 = arith.constant 3 : index
    %c0_424 = arith.constant 0 : index
    %c0_425 = arith.constant 0 : index
    %320 = vector.load %arg5[%c3_423, %c0_424, %c0_425] : memref<9x4x4xbf16, #tpu.memory_space<vmem>>, vector<1x4x4xbf16>
    %321 = vector.shape_cast %320 : vector<1x4x4xbf16> to vector<4x4xbf16>
    %c0_426 = arith.constant 0 : index
    %c0_427 = arith.constant 0 : index
    %c2_428 = arith.constant 2 : index
    %c0_429 = arith.constant 0 : index
    %c0_430 = arith.constant 0 : index
    %322 = vector.load %arg3[%c0_426, %c0_427, %c2_428, %c0_429, %c0_430] : memref<1x1x4x4x30xbf16, #tpu.memory_space<vmem>>, vector<1x1x1x4x20xbf16>
    %323 = vector.shape_cast %322 : vector<1x1x1x4x20xbf16> to vector<4x20xbf16>
    %cst_431 = arith.constant dense<0.000000e+00> : vector<4x20xf32>
    %324 = tpu.matmul %321, %323, %cst_431 {dimension_numbers = #tpu.dot_dimension_numbers<[1], [0], [0], [1], [0, 0, 1, 1], [], []>} : vector<4x4xbf16>, vector<4x20xbf16>, vector<4x20xf32> -> vector<4x20xf32>
    %325 = arith.addf %319, %324 : vector<4x20xf32>
    %c4_432 = arith.constant 4 : index
    %c0_433 = arith.constant 0 : index
    %c0_434 = arith.constant 0 : index
    %326 = vector.load %arg5[%c4_432, %c0_433, %c0_434] : memref<9x4x4xbf16, #tpu.memory_space<vmem>>, vector<1x4x4xbf16>
    %327 = vector.shape_cast %326 : vector<1x4x4xbf16> to vector<4x4xbf16>
    %c0_435 = arith.constant 0 : index
    %c0_436 = arith.constant 0 : index
    %c3_437 = arith.constant 3 : index
    %c0_438 = arith.constant 0 : index
    %c0_439 = arith.constant 0 : index
    %328 = vector.load %arg3[%c0_435, %c0_436, %c3_437, %c0_438, %c0_439] : memref<1x1x4x4x30xbf16, #tpu.memory_space<vmem>>, vector<1x1x1x4x20xbf16>
    %329 = vector.shape_cast %328 : vector<1x1x1x4x20xbf16> to vector<4x20xbf16>
    %cst_440 = arith.constant dense<0.000000e+00> : vector<4x20xf32>
    %330 = tpu.matmul %327, %329, %cst_440 {dimension_numbers = #tpu.dot_dimension_numbers<[1], [0], [0], [1], [0, 0, 1, 1], [], []>} : vector<4x4xbf16>, vector<4x20xbf16>, vector<4x20xf32> -> vector<4x20xf32>
    %331 = arith.addf %325, %330 : vector<4x20xf32>
    %c5_441 = arith.constant 5 : index
    %c0_442 = arith.constant 0 : index
    %c0_443 = arith.constant 0 : index
    %332 = vector.load %arg5[%c5_441, %c0_442, %c0_443] : memref<9x4x4xbf16, #tpu.memory_space<vmem>>, vector<1x4x4xbf16>
    %333 = vector.shape_cast %332 : vector<1x4x4xbf16> to vector<4x4xbf16>
    %c0_444 = arith.constant 0 : index
    %c0_445 = arith.constant 0 : index
    %c2_446 = arith.constant 2 : index
    %c0_447 = arith.constant 0 : index
    %c1_448 = arith.constant 1 : index
    %334 = vector.load %arg3[%c0_444, %c0_445, %c2_446, %c0_447, %c1_448] : memref<1x1x4x4x30xbf16, #tpu.memory_space<vmem>>, vector<1x1x1x4x20xbf16>
    %335 = vector.shape_cast %334 : vector<1x1x1x4x20xbf16> to vector<4x20xbf16>
    %cst_449 = arith.constant dense<0.000000e+00> : vector<4x20xf32>
    %336 = tpu.matmul %333, %335, %cst_449 {dimension_numbers = #tpu.dot_dimension_numbers<[1], [0], [0], [1], [0, 0, 1, 1], [], []>} : vector<4x4xbf16>, vector<4x20xbf16>, vector<4x20xf32> -> vector<4x20xf32>
    %337 = arith.addf %331, %336 : vector<4x20xf32>
    %c6_450 = arith.constant 6 : index
    %c0_451 = arith.constant 0 : index
    %c0_452 = arith.constant 0 : index
    %338 = vector.load %arg5[%c6_450, %c0_451, %c0_452] : memref<9x4x4xbf16, #tpu.memory_space<vmem>>, vector<1x4x4xbf16>
    %339 = vector.shape_cast %338 : vector<1x4x4xbf16> to vector<4x4xbf16>
    %c0_453 = arith.constant 0 : index
    %c0_454 = arith.constant 0 : index
    %c0_455 = arith.constant 0 : index
    %c0_456 = arith.constant 0 : index
    %c5_457 = arith.constant 5 : index
    %340 = vector.load %arg3[%c0_453, %c0_454, %c0_455, %c0_456, %c5_457] : memref<1x1x4x4x30xbf16, #tpu.memory_space<vmem>>, vector<1x1x1x4x20xbf16>
    %341 = vector.shape_cast %340 : vector<1x1x1x4x20xbf16> to vector<4x20xbf16>
    %cst_458 = arith.constant dense<0.000000e+00> : vector<4x20xf32>
    %342 = tpu.matmul %339, %341, %cst_458 {dimension_numbers = #tpu.dot_dimension_numbers<[1], [0], [0], [1], [0, 0, 1, 1], [], []>} : vector<4x4xbf16>, vector<4x20xbf16>, vector<4x20xf32> -> vector<4x20xf32>
    %343 = arith.addf %337, %342 : vector<4x20xf32>
    %c7_459 = arith.constant 7 : index
    %c0_460 = arith.constant 0 : index
    %c0_461 = arith.constant 0 : index
    %344 = vector.load %arg5[%c7_459, %c0_460, %c0_461] : memref<9x4x4xbf16, #tpu.memory_space<vmem>>, vector<1x4x4xbf16>
    %345 = vector.shape_cast %344 : vector<1x4x4xbf16> to vector<4x4xbf16>
    %c0_462 = arith.constant 0 : index
    %c0_463 = arith.constant 0 : index
    %c1_464 = arith.constant 1 : index
    %c0_465 = arith.constant 0 : index
    %c5_466 = arith.constant 5 : index
    %346 = vector.load %arg3[%c0_462, %c0_463, %c1_464, %c0_465, %c5_466] : memref<1x1x4x4x30xbf16, #tpu.memory_space<vmem>>, vector<1x1x1x4x20xbf16>
    %347 = vector.shape_cast %346 : vector<1x1x1x4x20xbf16> to vector<4x20xbf16>
    %cst_467 = arith.constant dense<0.000000e+00> : vector<4x20xf32>
    %348 = tpu.matmul %345, %347, %cst_467 {dimension_numbers = #tpu.dot_dimension_numbers<[1], [0], [0], [1], [0, 0, 1, 1], [], []>} : vector<4x4xbf16>, vector<4x20xbf16>, vector<4x20xf32> -> vector<4x20xf32>
    %349 = arith.addf %343, %348 : vector<4x20xf32>
    %c8_468 = arith.constant 8 : index
    %c0_469 = arith.constant 0 : index
    %c0_470 = arith.constant 0 : index
    %350 = vector.load %arg5[%c8_468, %c0_469, %c0_470] : memref<9x4x4xbf16, #tpu.memory_space<vmem>>, vector<1x4x4xbf16>
    %351 = vector.shape_cast %350 : vector<1x4x4xbf16> to vector<4x4xbf16>
    %c0_471 = arith.constant 0 : index
    %c0_472 = arith.constant 0 : index
    %c0_473 = arith.constant 0 : index
    %c0_474 = arith.constant 0 : index
    %c6_475 = arith.constant 6 : index
    %352 = vector.load %arg3[%c0_471, %c0_472, %c0_473, %c0_474, %c6_475] : memref<1x1x4x4x30xbf16, #tpu.memory_space<vmem>>, vector<1x1x1x4x20xbf16>
    %353 = vector.shape_cast %352 : vector<1x1x1x4x20xbf16> to vector<4x20xbf16>
    %cst_476 = arith.constant dense<0.000000e+00> : vector<4x20xf32>
    %354 = tpu.matmul %351, %353, %cst_476 {dimension_numbers = #tpu.dot_dimension_numbers<[1], [0], [0], [1], [0, 0, 1, 1], [], []>} : vector<4x4xbf16>, vector<4x20xbf16>, vector<4x20xf32> -> vector<4x20xf32>
    %355 = arith.addf %349, %354 : vector<4x20xf32>
    %c0_477 = arith.constant 0 : index
    %c0_478 = arith.constant 0 : index
    %356 = vector.load %arg7[%c0_477, %c0_478] : memref<4x1xf32, #tpu.memory_space<vmem>>, vector<4x1xf32>
    %357 = vector.broadcast %356 : vector<4x1xf32> to vector<4x20xf32>
    %358 = arith.addf %355, %357 : vector<4x20xf32>
    %cst_479 = arith.constant 0.00999999977 : f32
    %359 = vector.broadcast %cst_479 : f32 to vector<4x20xf32>
    %360 = arith.mulf %359, %358 : vector<4x20xf32>
    %361 = arith.maximumf %358, %360 : vector<4x20xf32>
    %362 = arith.addf %300, %361 : vector<4x20xf32>
    %363 = arith.truncf %362 : vector<4x20xf32> to vector<4x20xbf16>
    %c0_480 = arith.constant 0 : index
    %c0_481 = arith.constant 0 : index
    %c0_482 = arith.constant 0 : index
    %c0_483 = arith.constant 0 : index
    %364 = vector.load %arg8[%c0_480, %c0_481, %c0_482, %c0_483] : memref<1x1x4x20xbf16, #tpu.memory_space<vmem>>, vector<1x1x4x20xbf16>
    %365 = vector.shape_cast %364 : vector<1x1x4x20xbf16> to vector<4x20xbf16>
    %366 = vector.shape_cast %363 : vector<4x20xbf16> to vector<1x1x4x20xbf16>
    tpu.vector_store %arg8[%c0_480, %c0_481, %c0_482, %c0_483], %366 {strides = array<i32>} : memref<1x1x4x20xbf16, #tpu.memory_space<vmem>>, vector<1x1x4x20xbf16>,
    return
  }
  func.func @transform_0(%arg0: i32, %arg1: i32) -> (i32, i32, i32, i32, i32) {
    %c0_i32 = arith.constant 0 : i32
    %c0_i32_0 = arith.constant 0 : i32
    %c0_i32_1 = arith.constant 0 : i32
    %c0_i32_2 = arith.constant 0 : i32
    return %arg0, %arg1, %c0_i32, %c0_i32_0, %c0_i32_1 : i32, i32, i32, i32, i32
  }
  func.func @transform_1(%arg0: i32, %arg1: i32) -> (i32, i32, i32, i32, i32) {
    %c0_i32 = arith.constant 0 : i32
    %c0_i32_0 = arith.constant 0 : i32
    %c0_i32_1 = arith.constant 0 : i32
    %c0_i32_2 = arith.constant 0 : i32
    return %arg0, %arg1, %c0_i32, %c0_i32_0, %c0_i32_1 : i32, i32, i32, i32, i32
  }
  func.func @transform_2(%arg0: i32, %arg1: i32) -> (i32, i32, i32) {
    %c0_i32 = arith.constant 0 : i32
    %c0_i32_0 = arith.constant 0 : i32
    %c0_i32_1 = arith.constant 0 : i32
    %c0_i32_2 = arith.constant 0 : i32
    return %c0_i32, %c0_i32_0, %c0_i32_1 : i32, i32, i32
  }
  func.func @transform_3(%arg0: i32, %arg1: i32) -> (i32, i32, i32) {
    %c0_i32 = arith.constant 0 : i32
    %c0_i32_0 = arith.constant 0 : i32
    %c0_i32_1 = arith.constant 0 : i32
    %c0_i32_2 = arith.constant 0 : i32
    return %c0_i32, %c0_i32_0, %c0_i32_1 : i32, i32, i32
  }
  func.func @transform_4(%arg0: i32, %arg1: i32) -> (i32, i32) {
    %c0_i32 = arith.constant 0 : i32
    %c0_i32_0 = arith.constant 0 : i32
    %c0_i32_1 = arith.constant 0 : i32
    return %c0_i32, %c0_i32_0 : i32, i32
  }
  func.func @transform_5(%arg0: i32, %arg1: i32) -> (i32, i32) {
    %c0_i32 = arith.constant 0 : i32
    %c0_i32_0 = arith.constant 0 : i32
    %c0_i32_1 = arith.constant 0 : i32
    return %c0_i32, %c0_i32_0 : i32, i32
  }
  func.func @transform_6(%arg0: i32, %arg1: i32) -> (i32, i32, i32, i32) {
    %c0_i32 = arith.constant 0 : i32
    %c0_i32_0 = arith.constant 0 : i32
    %c0_i32_1 = arith.constant 0 : i32
    return %arg0, %arg1, %c0_i32, %c0_i32_0 : i32, i32, i32, i32
  }
}

</mosaic_0001>

<llo_original>
// kernel: tpu_custom_call.1
$region0: #{tpu_custom_call.1}
  #allocation0 [shape = 'u32[]', space=smem, size = 0x4, offset = 0x4, fixed_abs, tag = 'smem constant byte address 0x4 - core index']
  #allocation1 [shape = 'u32[72,128]{1,0:T(1,128)}', space=vmem, size = 0x9000, scoped, tag = 'internal scratch']
  %s0 = inlined_call_operand.vmem [shape: bf16[2,1,16,4,30], index: 0, kind: input, shape index: {}]
  %s1 = inlined_call_operand.vmem [shape: bf16[2,1,4,4,30], index: 1, kind: input, shape index: {}]
  %s2 = inlined_call_operand.vmem [shape: bf16[49,4,4], index: 2, kind: input, shape index: {}]
  %s3 = inlined_call_operand.vmem [shape: bf16[9,4,4], index: 3, kind: input, shape index: {}]
  %s4 = inlined_call_operand.vmem [shape: f32[4,1], index: 4, kind: input, shape index: {}]
  %s5 = inlined_call_operand.vmem [shape: f32[4,1], index: 5, kind: input, shape index: {}]
  %s6 = inlined_call_operand.hbm [shape: bf16[2,1,4,20], index: 6, kind: output, shape index: {}]
  %s7 = sld [smem:[#allocation0]]
  $region57: #{tpu_custom_call.1} parent=0
    _
  %s9 = ssub.s32 1, %s7
  %s10 = scalar_select 0, %s9, %s7
  $region1: #{tpu_custom_call.1} parent=0
    #allocation2 [shape = 'u8[2048]{0}', space=vmem, size = 0x800, scoped, tag = 'output window, operand 0']
    #allocation3 [shape = 's32[2]{0}', space=sflag, size = 0x8, scoped, tag = 'scoped memory for tpu_custom_call.1']
    %11 = vsyncpa [#allocation3], 0
    %s12 = scalar_lea.sflag [#allocation3], 1
    %13 = vsyncpa %s12, 0
    loop: start=0, step=1, limit=4
    $region2: #{tpu_custom_call.1} parent=1 // loop_pre_header
      _
    $region3: #{tpu_custom_call.1} parent=1 // loop_header
      %s15 = sphi 0, %s19
      %p16 = scmp.ge.s32.totalorder %s15, 4
      %s22 = sphi 0, %s34
      %s23 = sphi 0, %s30
      %s24 = sphi 0, %s22
      %s25 = sphi 0, %s23
      %s26 = sphi 0, %s24
      %s27 = sphi 0, %s25
      %s39 = sphi 0, %s41
      %s42 = sphi 0, %s39
      %s43 = sphi 0, %s42
      %s59 = sphi 0, %s43
      %s67 = sphi 0, %s69
      %s70 = sphi 0, %s67
      %s71 = sphi 0, %s70
      %s87 = sphi 0, %s71
      %s91 = sphi 0, %s91
      %s93 = sphi 0, %s91
      %s94 = sphi 0, %s93
      %s108 = sphi 0, %s94
      %s112 = sphi 0, %s112
      %s114 = sphi 0, %s112
      %s115 = sphi 0, %s114
      %s129 = sphi 0, %s115
      %s133 = sphi 0, %s133
      %s135 = sphi 0, %s133
      %s136 = sphi 0, %s135
      %s150 = sphi 0, %s136
      %s154 = sphi 0, %s154
      %s156 = sphi 0, %s154
      %s157 = sphi 0, %s156
      %s171 = sphi 0, %s157
      %s179 = sphi 0, %s181
      %s182 = sphi 0, %s179
      %s183 = sphi 0, %s182
      %s199 = sphi 0, %s183
    $region4: #{tpu_custom_call.1} parent=1 // loop_header_branch
      %18 = sbr.rel (%p16) target = $region8
    $region5: #{tpu_custom_call.1} parent=1 // loop_body
      %s20 = ssub.s32 %s15, 1
      %s21 = ssub.s32 %s15, 2
      %s28 = sadd.s32 1, %s23
      %p29 = scmp.ge.s32.totalorder %s28, 1
      %s30 = scalar_select %p29, 0, %s28
      %s31 = sadd.s32 1, %s22
      %s32 = scalar_select %p29, %s31, %s22
      %p33 = scmp.ge.s32.totalorder %s32, 2
      %s34 = scalar_select %p33, 0, %s32
      %s35 = ssub.s32 %s22, %s34
      %s36 = ssub.s32 %s23, %s30
      %s37 = sor.u32 %s35, %s36
      %p38 = scmp.eq.s32.totalorder %s37, 0
      %s40 = sadd.s32 %s39, 1
      %s41 = scalar_select %p38, %s39, %s40
      %p44 = pneg %p38
      %p45 = scmp.eq.s32.totalorder %s15, 1
      %p46 = por %p44, %p45
      %p47 = scmp.ne.s32.totalorder %s39, %s42
      %p48 = scmp.eq.s32.totalorder %s15, 0
      %p49 = por %p47, %p48
      %p50 = scmp.ne.s32.totalorder %s39, %s42
      %p51 = scmp.eq.s32.totalorder %s20, 1
      %p52 = por %p50, %p51
      %p53 = scmp.ne.s32.totalorder %s42, %s43
      %p54 = scmp.eq.s32.totalorder %s20, 0
      %p55 = por %p53, %p54
      %p56 = scmp.ne.s32.totalorder %s42, %s43
      %p57 = scmp.eq.s32.totalorder %s21, 1
      %p58 = por %p56, %p57
      %p60 = scmp.ne.s32.totalorder %s43, %s59
      %p61 = scmp.eq.s32.totalorder %s21, 0
      %p62 = por %p60, %p61
      %s63 = ssub.s32 %s22, %s34
      %s64 = ssub.s32 %s23, %s30
      %s65 = sor.u32 %s63, %s64
      %p66 = scmp.eq.s32.totalorder %s65, 0
      %s68 = sadd.s32 %s67, 1
      %s69 = scalar_select %p66, %s67, %s68
      %p72 = pneg %p66
      %p73 = scmp.eq.s32.totalorder %s15, 1
      %p74 = por %p72, %p73
      %p75 = scmp.ne.s32.totalorder %s67, %s70
      %p76 = scmp.eq.s32.totalorder %s15, 0
      %p77 = por %p75, %p76
      %p78 = scmp.ne.s32.totalorder %s67, %s70
      %p79 = scmp.eq.s32.totalorder %s20, 1
      %p80 = por %p78, %p79
      %p81 = scmp.ne.s32.totalorder %s70, %s71
      %p82 = scmp.eq.s32.totalorder %s20, 0
      %p83 = por %p81, %p82
      %p84 = scmp.ne.s32.totalorder %s70, %s71
      %p85 = scmp.eq.s32.totalorder %s21, 1
      %p86 = por %p84, %p85
      %p88 = scmp.ne.s32.totalorder %s71, %s87
      %p89 = scmp.eq.s32.totalorder %s21, 0
      %p90 = por %p88, %p89
      %s92 = sadd.s32 %s91, 1
      %p95 = scmp.eq.s32.totalorder %s15, 1
      %p96 = scmp.ne.s32.totalorder %s91, %s93
      %p97 = scmp.eq.s32.totalorder %s15, 0
      %p98 = por %p96, %p97
      %p99 = scmp.ne.s32.totalorder %s91, %s93
      %p100 = scmp.eq.s32.totalorder %s20, 1
      %p101 = por %p99, %p100
      %p102 = scmp.ne.s32.totalorder %s93, %s94
      %p103 = scmp.eq.s32.totalorder %s20, 0
      %p104 = por %p102, %p103
      %p105 = scmp.ne.s32.totalorder %s93, %s94
      %p106 = scmp.eq.s32.totalorder %s21, 1
      %p107 = por %p105, %p106
      %p109 = scmp.ne.s32.totalorder %s94, %s108
      %p110 = scmp.eq.s32.totalorder %s21, 0
      %p111 = por %p109, %p110
      %s113 = sadd.s32 %s112, 1
      %p116 = scmp.eq.s32.totalorder %s15, 1
      %p117 = scmp.ne.s32.totalorder %s112, %s114
      %p118 = scmp.eq.s32.totalorder %s15, 0
      %p119 = por %p117, %p118
      %p120 = scmp.ne.s32.totalorder %s112, %s114
      %p121 = scmp.eq.s32.totalorder %s20, 1
      %p122 = por %p120, %p121
      %p123 = scmp.ne.s32.totalorder %s114, %s115
      %p124 = scmp.eq.s32.totalorder %s20, 0
      %p125 = por %p123, %p124
      %p126 = scmp.ne.s32.totalorder %s114, %s115
      %p127 = scmp.eq.s32.totalorder %s21, 1
      %p128 = por %p126, %p127
      %p130 = scmp.ne.s32.totalorder %s115, %s129
      %p131 = scmp.eq.s32.totalorder %s21, 0
      %p132 = por %p130, %p131
      %s134 = sadd.s32 %s133, 1
      %p137 = scmp.eq.s32.totalorder %s15, 1
      %p138 = scmp.ne.s32.totalorder %s133, %s135
      %p139 = scmp.eq.s32.totalorder %s15, 0
      %p140 = por %p138, %p139
      %p141 = scmp.ne.s32.totalorder %s133, %s135
      %p142 = scmp.eq.s32.totalorder %s20, 1
      %p143 = por %p141, %p142
      %p144 = scmp.ne.s32.totalorder %s135, %s136
      %p145 = scmp.eq.s32.totalorder %s20, 0
      %p146 = por %p144, %p145
      %p147 = scmp.ne.s32.totalorder %s135, %s136
      %p148 = scmp.eq.s32.totalorder %s21, 1
      %p149 = por %p147, %p148
      %p151 = scmp.ne.s32.totalorder %s136, %s150
      %p152 = scmp.eq.s32.totalorder %s21, 0
      %p153 = por %p151, %p152
      %s155 = sadd.s32 %s154, 1
      %p158 = scmp.eq.s32.totalorder %s15, 1
      %p159 = scmp.ne.s32.totalorder %s154, %s156
      %p160 = scmp.eq.s32.totalorder %s15, 0
      %p161 = por %p159, %p160
      %p162 = scmp.ne.s32.totalorder %s154, %s156
      %p163 = scmp.eq.s32.totalorder %s20, 1
      %p164 = por %p162, %p163
      %p165 = scmp.ne.s32.totalorder %s156, %s157
      %p166 = scmp.eq.s32.totalorder %s20, 0
      %p167 = por %p165, %p166
      %p168 = scmp.ne.s32.totalorder %s156, %s157
      %p169 = scmp.eq.s32.totalorder %s21, 1
      %p170 = por %p168, %p169
      %p172 = scmp.ne.s32.totalorder %s157, %s171
      %p173 = scmp.eq.s32.totalorder %s21, 0
      %p174 = por %p172, %p173
      %s175 = ssub.s32 %s22, %s34
      %s176 = ssub.s32 %s23, %s30
      %s177 = sor.u32 %s175, %s176
      %p178 = scmp.eq.s32.totalorder %s177, 0
      %s180 = sadd.s32 %s179, 1
      %s181 = scalar_select %p178, %s179, %s180
      %p184 = pneg %p178
      %p185 = scmp.eq.s32.totalorder %s15, 1
      %p186 = por %p184, %p185
      %p187 = scmp.ne.s32.totalorder %s179, %s182
      %p188 = scmp.eq.s32.totalorder %s15, 0
      %p189 = por %p187, %p188
      %p190 = scmp.ne.s32.totalorder %s179, %s182
      %p191 = scmp.eq.s32.totalorder %s20, 1
      %p192 = por %p190, %p191
      %p193 = scmp.ne.s32.totalorder %s182, %s183
      %p194 = scmp.eq.s32.totalorder %s20, 0
      %p195 = por %p193, %p194
      %p196 = scmp.ne.s32.totalorder %s182, %s183
      %p197 = scmp.eq.s32.totalorder %s21, 1
      %p198 = por %p196, %p197
      %p200 = scmp.ne.s32.totalorder %s183, %s199
      %p201 = scmp.eq.s32.totalorder %s21, 0
      %p202 = por %p200, %p201
      %p203 = scmp.le.s32.totalorder 1, %s15
      %p204 = scmp.lt.s32.totalorder %s15, 3
      %p205 = pnand %p203, %p204
      %p206 = pneg %p205
      // Predicated region
      $region9: #{tpu_custom_call.1} parent=5 // pred_check
        _
      $region10: #{tpu_custom_call.1} parent=5 // pred_check_branch
        %208 = sbr.rel (%p205) target = $region12
      $region11: #{tpu_custom_call.1} parent=5 // pred_region
        %s209 = ssub.s32 %s15, 1
        // Predicated region
        $region13: #{tpu_custom_call.1} parent=11 // pred_check
          %p210 = pneg %p104
        $region14: #{tpu_custom_call.1} parent=11 // pred_check_branch
          %212 = sbr.rel (%p210) target = $region16
        $region15: #{tpu_custom_call.1} parent=11 // pred_region
          _
        $region16: #{tpu_custom_call.1} parent=11 // pred_fallthru
          _
        // Predicated region
        $region17: #{tpu_custom_call.1} parent=11 // pred_check
          %p213 = pneg %p125
        $region18: #{tpu_custom_call.1} parent=11 // pred_check_branch
          %215 = sbr.rel (%p213) target = $region20
        $region19: #{tpu_custom_call.1} parent=11 // pred_region
          _
        $region20: #{tpu_custom_call.1} parent=11 // pred_fallthru
          _
        // Predicated region
        $region21: #{tpu_custom_call.1} parent=11 // pred_check
          %p216 = pneg %p146
        $region22: #{tpu_custom_call.1} parent=11 // pred_check_branch
          %218 = sbr.rel (%p216) target = $region24
        $region23: #{tpu_custom_call.1} parent=11 // pred_region
          _
        $region24: #{tpu_custom_call.1} parent=11 // pred_fallthru
          _
        // Predicated region
        $region25: #{tpu_custom_call.1} parent=11 // pred_check
          %p219 = pneg %p167
        $region26: #{tpu_custom_call.1} parent=11 // pred_check_branch
          %221 = sbr.rel (%p219) target = $region28
        $region27: #{tpu_custom_call.1} parent=11 // pred_region
          _
        $region28: #{tpu_custom_call.1} parent=11 // pred_fallthru
          _
      $region12: #{tpu_custom_call.1} parent=5 // pred_fallthru
        _
      %p222 = scmp.lt.s32.totalorder %s15, 2
      // Predicated region
      $region29: #{tpu_custom_call.1} parent=5 // pred_check
        %p223 = pneg %p222
      $region30: #{tpu_custom_call.1} parent=5 // pred_check_branch
        %225 = sbr.rel (%p223) target = $region32
      $region31: #{tpu_custom_call.1} parent=5 // pred_region
        // Predicated region
        $region33: #{tpu_custom_call.1} parent=31 // pred_check
          %p226 = pneg %p49
        $region34: #{tpu_custom_call.1} parent=31 // pred_check_branch
          %228 = sbr.rel (%p226) target = $region36
        $region35: #{tpu_custom_call.1} parent=31 // pred_region
          %p229 = scmp.lt.s32.totalorder %s22, 1
          %s230 = scalar_select %p229, %s22, 1
          %p231 = scmp.lt.s32.totalorder %s23, 0
          %s232 = scalar_select %p231, %s23, 0
          %s233 = smul.addr %s232, 16
          %s234 = smul.addr %s230, 16
          %s235 = sadd.s32 %s233, %s234
          %s236 = smul.addr %s235, 2
          %s237 = scalar_lea.vmem %s0, %s236
        $region36: #{tpu_custom_call.1} parent=31 // pred_fallthru
          _
        // Predicated region
        $region37: #{tpu_custom_call.1} parent=31 // pred_check
          %p238 = pneg %p77
        $region38: #{tpu_custom_call.1} parent=31 // pred_check_branch
          %240 = sbr.rel (%p238) target = $region40
        $region39: #{tpu_custom_call.1} parent=31 // pred_region
          %p241 = scmp.lt.s32.totalorder %s22, 1
          %s242 = scalar_select %p241, %s22, 1
          %p243 = scmp.lt.s32.totalorder %s23, 0
          %s244 = scalar_select %p243, %s23, 0
          %s245 = smul.addr %s244, 4
          %s246 = smul.addr %s242, 4
          %s247 = sadd.s32 %s245, %s246
          %s248 = smul.addr %s247, 2
          %s249 = scalar_lea.vmem %s1, %s248
        $region40: #{tpu_custom_call.1} parent=31 // pred_fallthru
          _
      $region32: #{tpu_custom_call.1} parent=5 // pred_fallthru
        _
      %p250 = scmp.le.s32.totalorder 1, %s15
      %p251 = scmp.lt.s32.totalorder %s15, 3
      %p252 = pnand %p250, %p251
      %p253 = pneg %p252
      // Predicated region
      $region41: #{tpu_custom_call.1} parent=5 // pred_check
        _
      $region42: #{tpu_custom_call.1} parent=5 // pred_check_branch
        %255 = sbr.rel (%p252) target = $region44
      $region43: #{tpu_custom_call.1} parent=5 // pred_region
        %s256 = ssub.s32 %s15, 1
        %p257 = scmp.lt.s32.totalorder %s24, 1
        %s258 = scalar_select %p257, %s24, 1
        %p259 = scmp.lt.s32.totalorder %s25, 0
        %s260 = scalar_select %p259, %s25, 0
        %s261 = smul.addr %s260, 16
        %s262 = smul.addr %s258, 16
        %s263 = sadd.s32 %s261, %s262
        %s264 = smul.addr %s263, 2
        %s265 = scalar_lea.vmem %s0, %s264
        %p266 = pneg %p55
        %p267 = pneg %p52
        %p268 = scmp.lt.s32.totalorder %s24, 1
        %s269 = scalar_select %p268, %s24, 1
        %p270 = scmp.lt.s32.totalorder %s25, 0
        %s271 = scalar_select %p270, %s25, 0
        %s272 = smul.addr %s271, 4
        %s273 = smul.addr %s269, 4
        %s274 = sadd.s32 %s272, %s273
        %s275 = smul.addr %s274, 2
        %s276 = scalar_lea.vmem %s1, %s275
        %p277 = pneg %p83
        %p278 = pneg %p80
        %p279 = pneg %p104
        %p280 = pneg %p101
        %p281 = pneg %p125
        %p282 = pneg %p122
        %p283 = pneg %p146
        %p284 = pneg %p143
        %p285 = pneg %p167
        %p286 = pneg %p164
        %p287 = pneg %p195
        %p288 = pneg %p192
        %s289 = sand.u32 %s182, 1
        %s290 = scalar_lea.sflag [#allocation3], %s289
        %s291 = sand.u32 %s182, 1
        %s292 = smul.addr %s291, 2
        %s293 = scalar_lea.vmem [#allocation2], %s292
        %p294 = scmp.lt.s32.totalorder %s24, 1
        %s295 = scalar_select %p294, %s24, 1
        %p296 = scmp.lt.s32.totalorder %s25, 0
        %s297 = scalar_select %p296, %s25, 0
        %s298 = smul.addr %s297, 16
        %s299 = smul.addr %s295, 16
        %s300 = sadd.s32 %s298, %s299
        %s301 = smul.addr %s300, 2
        %s302 = scalar_lea.vmem %s0, %s301
        %p303 = scmp.lt.s32.totalorder %s24, 1
        %s304 = scalar_select %p303, %s24, 1
        %p305 = scmp.lt.s32.totalorder %s25, 0
        %s306 = scalar_select %p305, %s25, 0
        %s307 = smul.addr %s306, 4
        %s308 = smul.addr %s304, 4
        %s309 = sadd.s32 %s307, %s308
        %s310 = smul.addr %s309, 2
        %s311 = scalar_lea.vmem %s1, %s310
        %v313 = vld [vmem:[%s2] sm:$0x3]
        %v314 = vld [vmem:[%s302] sm:$0x3]
        %s315 = scalar_lea.vmem %s2, 2
        %v316 = vld [vmem:[%s315] sm:$0x3]
        %s317 = scalar_lea.vmem %s302, 2
        %v318 = vld [vmem:[%s317] sm:$0x3]
        %vm319 = vcmask 31744
        %v321 = vsel %vm319, %v316, 0
        %vm323 = vcmask 1041408
        %v325 = vsel %vm323, %v318, 0
        %327 = vmatpush.bf16.msra.mxu0 0
        %328 = vmatpush.bf16.msra.mxu0 0
        %329 = vmatpush.bf16.msra.mxu0 0
        %330 = vmatpush.bf16.msra.mxu0 0
        %331 = vmatpush.bf16.msra.mxu0 0
        %332 = vmatpush.bf16.msra.mxu0 0
        %333 = vmatpush.bf16.msra.mxu0 0
        %334 = vmatpush.bf16.msra.mxu0 %v325
        %335 = vmatmul.bf16.gmra.mxu0 %v321
        %v336 = vpop.f32.mrf.mxu0
        %v337 = vadd.f32 0.0, %v336
        %v338 = vpop.f32.mrf.mxu0
        %339 = vdwg.mxu0
        %v341 = vsel %vm319, %v313, 0
        %v344 = vsel %vm323, %v314, 0
        %346 = vmatpush.bf16.msra.mxu0 0
        %347 = vmatpush.bf16.msra.mxu0 0
        %348 = vmatpush.bf16.msra.mxu0 0
        %349 = vmatpush.bf16.msra.mxu0 0
        %350 = vmatpush.bf16.msra.mxu0 0
        %351 = vmatpush.bf16.msra.mxu0 0
        %352 = vmatpush.bf16.msra.mxu0 0
        %353 = vmatpush.bf16.msra.mxu0 %v344
        %354 = vmatmul.bf16.gmra.mxu0 %v341
        %v355 = vpop.f32.mrf.mxu0
        %v356 = vadd.f32 %v337, %v355
        %v357 = vpop.f32.mrf.mxu0
        %358 = vdwg.mxu0
        %s359 = scalar_lea.vmem %s2, 4
        %v360 = vld [vmem:[%s359] sm:$0x3]
        %s361 = scalar_lea.vmem %s302, 4
        %v362 = vld [vmem:[%s361] sm:$0x3]
        %v364 = vsel %vm319, %v360, 0
        %v367 = vsel %vm323, %v362, 0
        %369 = vmatpush.bf16.msra.mxu0 0
        %370 = vmatpush.bf16.msra.mxu0 0
        %371 = vmatpush.bf16.msra.mxu0 0
        %372 = vmatpush.bf16.msra.mxu0 0
        %373 = vmatpush.bf16.msra.mxu0 0
        %374 = vmatpush.bf16.msra.mxu0 0
        %375 = vmatpush.bf16.msra.mxu0 0
        %376 = vmatpush.bf16.msra.mxu0 %v367
        %377 = vmatmul.bf16.gmra.mxu0 %v364
        %v378 = vpop.f32.mrf.mxu0
        %v379 = vadd.f32 0.0, %v378
        %v380 = vpop.f32.mrf.mxu0
        %381 = vdwg.mxu0
        %v382 = vadd.f32 %v356, %v379
        %s383 = scalar_lea.vmem %s2, 6
        %v384 = vld [vmem:[%s383] sm:$0x3]
        %s385 = scalar_lea.vmem %s302, 6
        %v386 = vld [vmem:[%s385] sm:$0x3]
        %v388 = vsel %vm319, %v384, 0
        %v391 = vsel %vm323, %v386, 0
        %393 = vmatpush.bf16.msra.mxu0 0
        %394 = vmatpush.bf16.msra.mxu0 0
        %395 = vmatpush.bf16.msra.mxu0 0
        %396 = vmatpush.bf16.msra.mxu0 0
        %397 = vmatpush.bf16.msra.mxu0 0
        %398 = vmatpush.bf16.msra.mxu0 0
        %399 = vmatpush.bf16.msra.mxu0 0
        %400 = vmatpush.bf16.msra.mxu0 %v391
        %401 = vmatmul.bf16.gmra.mxu0 %v388
        %v402 = vpop.f32.mrf.mxu0
        %v403 = vadd.f32 0.0, %v402
        %v404 = vpop.f32.mrf.mxu0
        %405 = vdwg.mxu0
        %v406 = vadd.f32 %v382, %v403
        %s407 = scalar_lea.vmem %s2, 8
        %v408 = vld [vmem:[%s407] sm:$0x3]
        %409 = vst [vmem:[#allocation1] ss:$4 sm:$0xff] %v314
        %v410 = vld.sshfl [vmem:[#allocation1] sm:$0xff pattern:$0x73625140]
        %412 = vrot.lane.b32.xlu0 %v410, 127
        %v413 = vpop.permute.xlu0 %412
        %v415 = vsel %vm319, %v408, 0
        %v418 = vsel %vm323, %v413, 0
        %420 = vmatpush.bf16.msra.mxu0 0
        %421 = vmatpush.bf16.msra.mxu0 0
        %422 = vmatpush.bf16.msra.mxu0 0
        %423 = vmatpush.bf16.msra.mxu0 0
        %424 = vmatpush.bf16.msra.mxu0 0
        %425 = vmatpush.bf16.msra.mxu0 0
        %426 = vmatpush.bf16.msra.mxu0 0
        %427 = vmatpush.bf16.msra.mxu0 %v418
        %428 = vmatmul.bf16.gmra.mxu0 %v415
        %v429 = vpop.f32.mrf.mxu0
        %v430 = vadd.f32 0.0, %v429
        %v431 = vpop.f32.mrf.mxu0
        %432 = vdwg.mxu0
        %v433 = vadd.f32 %v406, %v430
        %s434 = scalar_lea.vmem %s2, 10
        %v435 = vld [vmem:[%s434] sm:$0x3]
        %v436 = vld [vmem:[%s317] sm:$0x3]
        %438 = vst [vmem:[#allocation1] ss:$4 sm:$0xff] %v436
        %v439 = vld.sshfl [vmem:[#allocation1] sm:$0xff pattern:$0x73625140]
        %441 = vrot.lane.b32.xlu0 %v439, 127
        %v442 = vpop.permute.xlu0 %441
        %v444 = vsel %vm319, %v435, 0
        %v447 = vsel %vm323, %v442, 0
        %449 = vmatpush.bf16.msra.mxu0 0
        %450 = vmatpush.bf16.msra.mxu0 0
        %451 = vmatpush.bf16.msra.mxu0 0
        %452 = vmatpush.bf16.msra.mxu0 0
        %453 = vmatpush.bf16.msra.mxu0 0
        %454 = vmatpush.bf16.msra.mxu0 0
        %455 = vmatpush.bf16.msra.mxu0 0
        %456 = vmatpush.bf16.msra.mxu0 %v447
        %457 = vmatmul.bf16.gmra.mxu0 %v444
        %v458 = vpop.f32.mrf.mxu0
        %v459 = vadd.f32 0.0, %v458
        %v460 = vpop.f32.mrf.mxu0
        %461 = vdwg.mxu0
        %v462 = vadd.f32 %v433, %v459
        %s463 = scalar_lea.vmem %s2, 12
        %v464 = vld [vmem:[%s463] sm:$0x3]
        %v465 = vld [vmem:[%s361] sm:$0x3]
        %467 = vst [vmem:[#allocation1] ss:$4 sm:$0xff] %v465
        %v468 = vld.sshfl [vmem:[#allocation1] sm:$0xff pattern:$0x73625140]
        %470 = vrot.lane.b32.xlu0 %v468, 127
        %v471 = vpop.permute.xlu0 %470
        %v473 = vsel %vm319, %v464, 0
        %v476 = vsel %vm323, %v471, 0
        %478 = vmatpush.bf16.msra.mxu0 0
        %479 = vmatpush.bf16.msra.mxu0 0
        %480 = vmatpush.bf16.msra.mxu0 0
        %481 = vmatpush.bf16.msra.mxu0 0
        %482 = vmatpush.bf16.msra.mxu0 0
        %483 = vmatpush.bf16.msra.mxu0 0
        %484 = vmatpush.bf16.msra.mxu0 0
        %485 = vmatpush.bf16.msra.mxu0 %v476
        %486 = vmatmul.bf16.gmra.mxu0 %v473
        %v487 = vpop.f32.mrf.mxu0
        %v488 = vadd.f32 0.0, %v487
        %v489 = vpop.f32.mrf.mxu0
        %490 = vdwg.mxu0
        %v491 = vadd.f32 %v462, %v488
        %s492 = scalar_lea.vmem %s2, 14
        %v493 = vld [vmem:[%s492] sm:$0x3]
        %s494 = scalar_lea.vmem %s302, 8
        %v495 = vld [vmem:[%s494] sm:$0x3]
        %v497 = vsel %vm319, %v493, 0
        %v500 = vsel %vm323, %v495, 0
        %502 = vmatpush.bf16.msra.mxu0 0
        %503 = vmatpush.bf16.msra.mxu0 0
        %504 = vmatpush.bf16.msra.mxu0 0
        %505 = vmatpush.bf16.msra.mxu0 0
        %506 = vmatpush.bf16.msra.mxu0 0
        %507 = vmatpush.bf16.msra.mxu0 0
        %508 = vmatpush.bf16.msra.mxu0 0
        %509 = vmatpush.bf16.msra.mxu0 %v500
        %510 = vmatmul.bf16.gmra.mxu0 %v497
        %v511 = vpop.f32.mrf.mxu0
        %v512 = vadd.f32 0.0, %v511
        %v513 = vpop.f32.mrf.mxu0
        %514 = vdwg.mxu0
        %v515 = vadd.f32 %v491, %v512
        %s516 = scalar_lea.vmem %s2, 16
        %v517 = vld [vmem:[%s516] sm:$0x3]
        %s518 = scalar_lea.vmem %s302, 10
        %v519 = vld [vmem:[%s518] sm:$0x3]
        %v521 = vsel %vm319, %v517, 0
        %v524 = vsel %vm323, %v519, 0
        %526 = vmatpush.bf16.msra.mxu0 0
        %527 = vmatpush.bf16.msra.mxu0 0
        %528 = vmatpush.bf16.msra.mxu0 0
        %529 = vmatpush.bf16.msra.mxu0 0
        %530 = vmatpush.bf16.msra.mxu0 0
        %531 = vmatpush.bf16.msra.mxu0 0
        %532 = vmatpush.bf16.msra.mxu0 0
        %533 = vmatpush.bf16.msra.mxu0 %v524
        %534 = vmatmul.bf16.gmra.mxu0 %v521
        %v535 = vpop.f32.mrf.mxu0
        %v536 = vadd.f32 0.0, %v535
        %v537 = vpop.f32.mrf.mxu0
        %538 = vdwg.mxu0
        %v539 = vadd.f32 %v515, %v536
        %s540 = scalar_lea.vmem %s2, 18
        %v541 = vld [vmem:[%s540] sm:$0x3]
        %s542 = scalar_lea.vmem %s302, 12
        %v543 = vld [vmem:[%s542] sm:$0x3]
        %v545 = vsel %vm319, %v541, 0
        %v548 = vsel %vm323, %v543, 0
        %550 = vmatpush.bf16.msra.mxu0 0
        %551 = vmatpush.bf16.msra.mxu0 0
        %552 = vmatpush.bf16.msra.mxu0 0
        %553 = vmatpush.bf16.msra.mxu0 0
        %554 = vmatpush.bf16.msra.mxu0 0
        %555 = vmatpush.bf16.msra.mxu0 0
        %556 = vmatpush.bf16.msra.mxu0 0
        %557 = vmatpush.bf16.msra.mxu0 %v548
        %558 = vmatmul.bf16.gmra.mxu0 %v545
        %v559 = vpop.f32.mrf.mxu0
        %v560 = vadd.f32 0.0, %v559
        %v561 = vpop.f32.mrf.mxu0
        %562 = vdwg.mxu0
        %v563 = vadd.f32 %v539, %v560
        %s564 = scalar_lea.vmem %s2, 20
        %v565 = vld [vmem:[%s564] sm:$0x3]
        %s566 = scalar_lea.vmem %s302, 14
        %v567 = vld [vmem:[%s566] sm:$0x3]
        %v569 = vsel %vm319, %v565, 0
        %v572 = vsel %vm323, %v567, 0
        %574 = vmatpush.bf16.msra.mxu0 0
        %575 = vmatpush.bf16.msra.mxu0 0
        %576 = vmatpush.bf16.msra.mxu0 0
        %577 = vmatpush.bf16.msra.mxu0 0
        %578 = vmatpush.bf16.msra.mxu0 0
        %579 = vmatpush.bf16.msra.mxu0 0
        %580 = vmatpush.bf16.msra.mxu0 0
        %581 = vmatpush.bf16.msra.mxu0 %v572
        %582 = vmatmul.bf16.gmra.mxu0 %v569
        %v583 = vpop.f32.mrf.mxu0
        %v584 = vadd.f32 0.0, %v583
        %v585 = vpop.f32.mrf.mxu0
        %586 = vdwg.mxu0
        %v587 = vadd.f32 %v563, %v584
        %s588 = scalar_lea.vmem %s2, 22
        %v589 = vld [vmem:[%s588] sm:$0x3]
        %590 = vst [vmem:[#allocation1] ss:$4 sm:$0xff] %v495
        %v591 = vld.sshfl [vmem:[#allocation1] sm:$0xff pattern:$0x73625140]
        %593 = vrot.lane.b32.xlu0 %v591, 127
        %v594 = vpop.permute.xlu0 %593
        %v596 = vsel %vm319, %v589, 0
        %v599 = vsel %vm323, %v594, 0
        %601 = vmatpush.bf16.msra.mxu0 0
        %602 = vmatpush.bf16.msra.mxu0 0
        %603 = vmatpush.bf16.msra.mxu0 0
        %604 = vmatpush.bf16.msra.mxu0 0
        %605 = vmatpush.bf16.msra.mxu0 0
        %606 = vmatpush.bf16.msra.mxu0 0
        %607 = vmatpush.bf16.msra.mxu0 0
        %608 = vmatpush.bf16.msra.mxu0 %v599
        %609 = vmatmul.bf16.gmra.mxu0 %v596
        %v610 = vpop.f32.mrf.mxu0
        %v611 = vadd.f32 0.0, %v610
        %v612 = vpop.f32.mrf.mxu0
        %613 = vdwg.mxu0
        %v614 = vadd.f32 %v587, %v611
        %s615 = scalar_lea.vmem %s2, 24
        %v616 = vld [vmem:[%s615] sm:$0x3]
        %v617 = vld [vmem:[%s518] sm:$0x3]
        %619 = vst [vmem:[#allocation1] ss:$4 sm:$0xff] %v617
        %v620 = vld.sshfl [vmem:[#allocation1] sm:$0xff pattern:$0x73625140]
        %622 = vrot.lane.b32.xlu0 %v620, 127
        %v623 = vpop.permute.xlu0 %622
        %v625 = vsel %vm319, %v616, 0
        %v628 = vsel %vm323, %v623, 0
        %630 = vmatpush.bf16.msra.mxu0 0
        %631 = vmatpush.bf16.msra.mxu0 0
        %632 = vmatpush.bf16.msra.mxu0 0
        %633 = vmatpush.bf16.msra.mxu0 0
        %634 = vmatpush.bf16.msra.mxu0 0
        %635 = vmatpush.bf16.msra.mxu0 0
        %636 = vmatpush.bf16.msra.mxu0 0
        %637 = vmatpush.bf16.msra.mxu0 %v628
        %638 = vmatmul.bf16.gmra.mxu0 %v625
        %v639 = vpop.f32.mrf.mxu0
        %v640 = vadd.f32 0.0, %v639
        %v641 = vpop.f32.mrf.mxu0
        %642 = vdwg.mxu0
        %v643 = vadd.f32 %v614, %v640
        %s644 = scalar_lea.vmem %s2, 26
        %v645 = vld [vmem:[%s644] sm:$0x3]
        %v646 = vld [vmem:[%s542] sm:$0x3]
        %648 = vst [vmem:[#allocation1] ss:$4 sm:$0xff] %v646
        %v649 = vld.sshfl [vmem:[#allocation1] sm:$0xff pattern:$0x73625140]
        %651 = vrot.lane.b32.xlu0 %v649, 127
        %v652 = vpop.permute.xlu0 %651
        %v654 = vsel %vm319, %v645, 0
        %v657 = vsel %vm323, %v652, 0
        %659 = vmatpush.bf16.msra.mxu0 0
        %660 = vmatpush.bf16.msra.mxu0 0
        %661 = vmatpush.bf16.msra.mxu0 0
        %662 = vmatpush.bf16.msra.mxu0 0
        %663 = vmatpush.bf16.msra.mxu0 0
        %664 = vmatpush.bf16.msra.mxu0 0
        %665 = vmatpush.bf16.msra.mxu0 0
        %666 = vmatpush.bf16.msra.mxu0 %v657
        %667 = vmatmul.bf16.gmra.mxu0 %v654
        %v668 = vpop.f32.mrf.mxu0
        %v669 = vadd.f32 0.0, %v668
        %v670 = vpop.f32.mrf.mxu0
        %671 = vdwg.mxu0
        %v672 = vadd.f32 %v643, %v669
        %s673 = scalar_lea.vmem %s2, 28
        %v674 = vld [vmem:[%s673] sm:$0x3]
        %s675 = scalar_lea.vmem %s302, 16
        %v676 = vld [vmem:[%s675] sm:$0x3]
        %v678 = vsel %vm319, %v674, 0
        %v681 = vsel %vm323, %v676, 0
        %683 = vmatpush.bf16.msra.mxu0 0
        %684 = vmatpush.bf16.msra.mxu0 0
        %685 = vmatpush.bf16.msra.mxu0 0
        %686 = vmatpush.bf16.msra.mxu0 0
        %687 = vmatpush.bf16.msra.mxu0 0
        %688 = vmatpush.bf16.msra.mxu0 0
        %689 = vmatpush.bf16.msra.mxu0 0
        %690 = vmatpush.bf16.msra.mxu0 %v681
        %691 = vmatmul.bf16.gmra.mxu0 %v678
        %v692 = vpop.f32.mrf.mxu0
        %v693 = vadd.f32 0.0, %v692
        %v694 = vpop.f32.mrf.mxu0
        %695 = vdwg.mxu0
        %v696 = vadd.f32 %v672, %v693
        %s697 = scalar_lea.vmem %s2, 30
        %v698 = vld [vmem:[%s697] sm:$0x3]
        %s699 = scalar_lea.vmem %s302, 18
        %v700 = vld [vmem:[%s699] sm:$0x3]
        %v702 = vsel %vm319, %v698, 0
        %v705 = vsel %vm323, %v700, 0
        %707 = vmatpush.bf16.msra.mxu0 0
        %708 = vmatpush.bf16.msra.mxu0 0
        %709 = vmatpush.bf16.msra.mxu0 0
        %710 = vmatpush.bf16.msra.mxu0 0
        %711 = vmatpush.bf16.msra.mxu0 0
        %712 = vmatpush.bf16.msra.mxu0 0
        %713 = vmatpush.bf16.msra.mxu0 0
        %714 = vmatpush.bf16.msra.mxu0 %v705
        %715 = vmatmul.bf16.gmra.mxu0 %v702
        %v716 = vpop.f32.mrf.mxu0
        %v717 = vadd.f32 0.0, %v716
        %v718 = vpop.f32.mrf.mxu0
        %719 = vdwg.mxu0
        %v720 = vadd.f32 %v696, %v717
        %s721 = scalar_lea.vmem %s2, 32
        %v722 = vld [vmem:[%s721] sm:$0x3]
        %s723 = scalar_lea.vmem %s302, 20
        %v724 = vld [vmem:[%s723] sm:$0x3]
        %v726 = vsel %vm319, %v722, 0
        %v729 = vsel %vm323, %v724, 0
        %731 = vmatpush.bf16.msra.mxu0 0
        %732 = vmatpush.bf16.msra.mxu0 0
        %733 = vmatpush.bf16.msra.mxu0 0
        %734 = vmatpush.bf16.msra.mxu0 0
        %735 = vmatpush.bf16.msra.mxu0 0
        %736 = vmatpush.bf16.msra.mxu0 0
        %737 = vmatpush.bf16.msra.mxu0 0
        %738 = vmatpush.bf16.msra.mxu0 %v729
        %739 = vmatmul.bf16.gmra.mxu0 %v726
        %v740 = vpop.f32.mrf.mxu0
        %v741 = vadd.f32 0.0, %v740
        %v742 = vpop.f32.mrf.mxu0
        %743 = vdwg.mxu0
        %v744 = vadd.f32 %v720, %v741
        %s745 = scalar_lea.vmem %s2, 34
        %v746 = vld [vmem:[%s745] sm:$0x3]
        %s747 = scalar_lea.vmem %s302, 22
        %v748 = vld [vmem:[%s747] sm:$0x3]
        %v750 = vsel %vm319, %v746, 0
        %v753 = vsel %vm323, %v748, 0
        %755 = vmatpush.bf16.msra.mxu0 0
        %756 = vmatpush.bf16.msra.mxu0 0
        %757 = vmatpush.bf16.msra.mxu0 0
        %758 = vmatpush.bf16.msra.mxu0 0
        %759 = vmatpush.bf16.msra.mxu0 0
        %760 = vmatpush.bf16.msra.mxu0 0
        %761 = vmatpush.bf16.msra.mxu0 0
        %762 = vmatpush.bf16.msra.mxu0 %v753
        %763 = vmatmul.bf16.gmra.mxu0 %v750
        %v764 = vpop.f32.mrf.mxu0
        %v765 = vadd.f32 0.0, %v764
        %v766 = vpop.f32.mrf.mxu0
        %767 = vdwg.mxu0
        %v768 = vadd.f32 %v744, %v765
        %s769 = scalar_lea.vmem %s2, 36
        %v770 = vld [vmem:[%s769] sm:$0x3]
        %771 = vst [vmem:[#allocation1] ss:$4 sm:$0xff] %v676
        %v772 = vld.sshfl [vmem:[#allocation1] sm:$0xff pattern:$0x73625140]
        %774 = vrot.lane.b32.xlu0 %v772, 127
        %v775 = vpop.permute.xlu0 %774
        %v777 = vsel %vm319, %v770, 0
        %v780 = vsel %vm323, %v775, 0
        %782 = vmatpush.bf16.msra.mxu0 0
        %783 = vmatpush.bf16.msra.mxu0 0
        %784 = vmatpush.bf16.msra.mxu0 0
        %785 = vmatpush.bf16.msra.mxu0 0
        %786 = vmatpush.bf16.msra.mxu0 0
        %787 = vmatpush.bf16.msra.mxu0 0
        %788 = vmatpush.bf16.msra.mxu0 0
        %789 = vmatpush.bf16.msra.mxu0 %v780
        %790 = vmatmul.bf16.gmra.mxu0 %v777
        %v791 = vpop.f32.mrf.mxu0
        %v792 = vadd.f32 0.0, %v791
        %v793 = vpop.f32.mrf.mxu0
        %794 = vdwg.mxu0
        %v795 = vadd.f32 %v768, %v792
        %s796 = scalar_lea.vmem %s2, 38
        %v797 = vld [vmem:[%s796] sm:$0x3]
        %v798 = vld [vmem:[%s699] sm:$0x3]
        %800 = vst [vmem:[#allocation1] ss:$4 sm:$0xff] %v798
        %v801 = vld.sshfl [vmem:[#allocation1] sm:$0xff pattern:$0x73625140]
        %803 = vrot.lane.b32.xlu0 %v801, 127
        %v804 = vpop.permute.xlu0 %803
        %v806 = vsel %vm319, %v797, 0
        %v809 = vsel %vm323, %v804, 0
        %811 = vmatpush.bf16.msra.mxu0 0
        %812 = vmatpush.bf16.msra.mxu0 0
        %813 = vmatpush.bf16.msra.mxu0 0
        %814 = vmatpush.bf16.msra.mxu0 0
        %815 = vmatpush.bf16.msra.mxu0 0
        %816 = vmatpush.bf16.msra.mxu0 0
        %817 = vmatpush.bf16.msra.mxu0 0
        %818 = vmatpush.bf16.msra.mxu0 %v809
        %819 = vmatmul.bf16.gmra.mxu0 %v806
        %v820 = vpop.f32.mrf.mxu0
        %v821 = vadd.f32 0.0, %v820
        %v822 = vpop.f32.mrf.mxu0
        %823 = vdwg.mxu0
        %v824 = vadd.f32 %v795, %v821
        %s825 = scalar_lea.vmem %s2, 40
        %v826 = vld [vmem:[%s825] sm:$0x3]
        %v827 = vld [vmem:[%s723] sm:$0x3]
        %829 = vst [vmem:[#allocation1] ss:$4 sm:$0xff] %v827
        %v830 = vld.sshfl [vmem:[#allocation1] sm:$0xff pattern:$0x73625140]
        %832 = vrot.lane.b32.xlu0 %v830, 127
        %v833 = vpop.permute.xlu0 %832
        %v835 = vsel %vm319, %v826, 0
        %v838 = vsel %vm323, %v833, 0
        %840 = vmatpush.bf16.msra.mxu0 0
        %841 = vmatpush.bf16.msra.mxu0 0
        %842 = vmatpush.bf16.msra.mxu0 0
        %843 = vmatpush.bf16.msra.mxu0 0
        %844 = vmatpush.bf16.msra.mxu0 0
        %845 = vmatpush.bf16.msra.mxu0 0
        %846 = vmatpush.bf16.msra.mxu0 0
        %847 = vmatpush.bf16.msra.mxu0 %v838
        %848 = vmatmul.bf16.gmra.mxu0 %v835
        %v849 = vpop.f32.mrf.mxu0
        %v850 = vadd.f32 0.0, %v849
        %v851 = vpop.f32.mrf.mxu0
        %852 = vdwg.mxu0
        %v853 = vadd.f32 %v824, %v850
        %s854 = scalar_lea.vmem %s2, 42
        %v855 = vld [vmem:[%s854] sm:$0x3]
        %s856 = scalar_lea.vmem %s302, 24
        %v857 = vld [vmem:[%s856] sm:$0x3]
        %v859 = vsel %vm319, %v855, 0
        %v862 = vsel %vm323, %v857, 0
        %864 = vmatpush.bf16.msra.mxu0 0
        %865 = vmatpush.bf16.msra.mxu0 0
        %866 = vmatpush.bf16.msra.mxu0 0
        %867 = vmatpush.bf16.msra.mxu0 0
        %868 = vmatpush.bf16.msra.mxu0 0
        %869 = vmatpush.bf16.msra.mxu0 0
        %870 = vmatpush.bf16.msra.mxu0 0
        %871 = vmatpush.bf16.msra.mxu0 %v862
        %872 = vmatmul.bf16.gmra.mxu0 %v859
        %v873 = vpop.f32.mrf.mxu0
        %v874 = vadd.f32 0.0, %v873
        %v875 = vpop.f32.mrf.mxu0
        %876 = vdwg.mxu0
        %v877 = vadd.f32 %v853, %v874
        %s878 = scalar_lea.vmem %s2, 44
        %v879 = vld [vmem:[%s878] sm:$0x3]
        %s880 = scalar_lea.vmem %s302, 26
        %v881 = vld [vmem:[%s880] sm:$0x3]
        %v883 = vsel %vm319, %v879, 0
        %v886 = vsel %vm323, %v881, 0
        %888 = vmatpush.bf16.msra.mxu0 0
        %889 = vmatpush.bf16.msra.mxu0 0
        %890 = vmatpush.bf16.msra.mxu0 0
        %891 = vmatpush.bf16.msra.mxu0 0
        %892 = vmatpush.bf16.msra.mxu0 0
        %893 = vmatpush.bf16.msra.mxu0 0
        %894 = vmatpush.bf16.msra.mxu0 0
        %895 = vmatpush.bf16.msra.mxu0 %v886
        %896 = vmatmul.bf16.gmra.mxu0 %v883
        %v897 = vpop.f32.mrf.mxu0
        %v898 = vadd.f32 0.0, %v897
        %v899 = vpop.f32.mrf.mxu0
        %900 = vdwg.mxu0
        %v901 = vadd.f32 %v877, %v898
        %s902 = scalar_lea.vmem %s2, 46
        %v903 = vld [vmem:[%s902] sm:$0x3]
        %s904 = scalar_lea.vmem %s302, 28
        %v905 = vld [vmem:[%s904] sm:$0x3]
        %v907 = vsel %vm319, %v903, 0
        %v910 = vsel %vm323, %v905, 0
        %912 = vmatpush.bf16.msra.mxu0 0
        %913 = vmatpush.bf16.msra.mxu0 0
        %914 = vmatpush.bf16.msra.mxu0 0
        %915 = vmatpush.bf16.msra.mxu0 0
        %916 = vmatpush.bf16.msra.mxu0 0
        %917 = vmatpush.bf16.msra.mxu0 0
        %918 = vmatpush.bf16.msra.mxu0 0
        %919 = vmatpush.bf16.msra.mxu0 %v910
        %920 = vmatmul.bf16.gmra.mxu0 %v907
        %v921 = vpop.f32.mrf.mxu0
        %v922 = vadd.f32 0.0, %v921
        %v923 = vpop.f32.mrf.mxu0
        %924 = vdwg.mxu0
        %v925 = vadd.f32 %v901, %v922
        %s926 = scalar_lea.vmem %s2, 48
        %v927 = vld [vmem:[%s926] sm:$0x3]
        %s928 = scalar_lea.vmem %s302, 30
        %v929 = vld [vmem:[%s928] sm:$0x3]
        %v931 = vsel %vm319, %v927, 0
        %v934 = vsel %vm323, %v929, 0
        %936 = vmatpush.bf16.msra.mxu0 0
        %937 = vmatpush.bf16.msra.mxu0 0
        %938 = vmatpush.bf16.msra.mxu0 0
        %939 = vmatpush.bf16.msra.mxu0 0
        %940 = vmatpush.bf16.msra.mxu0 0
        %941 = vmatpush.bf16.msra.mxu0 0
        %942 = vmatpush.bf16.msra.mxu0 0
        %943 = vmatpush.bf16.msra.mxu0 %v934
        %944 = vmatmul.bf16.gmra.mxu0 %v931
        %v945 = vpop.f32.mrf.mxu0
        %v946 = vadd.f32 0.0, %v945
        %v947 = vpop.f32.mrf.mxu0
        %948 = vdwg.mxu0
        %v949 = vadd.f32 %v925, %v946
        %s950 = scalar_lea.vmem %s2, 50
        %v951 = vld [vmem:[%s950] sm:$0x3]
        %952 = vst [vmem:[#allocation1] ss:$4 sm:$0xff] %v857
        %v953 = vld.sshfl [vmem:[#allocation1] sm:$0xff pattern:$0x73625140]
        %955 = vrot.lane.b32.xlu0 %v953, 127
        %v956 = vpop.permute.xlu0 %955
        %v958 = vsel %vm319, %v951, 0
        %v961 = vsel %vm323, %v956, 0
        %963 = vmatpush.bf16.msra.mxu0 0
        %964 = vmatpush.bf16.msra.mxu0 0
        %965 = vmatpush.bf16.msra.mxu0 0
        %966 = vmatpush.bf16.msra.mxu0 0
        %967 = vmatpush.bf16.msra.mxu0 0
        %968 = vmatpush.bf16.msra.mxu0 0
        %969 = vmatpush.bf16.msra.mxu0 0
        %970 = vmatpush.bf16.msra.mxu0 %v961
        %971 = vmatmul.bf16.gmra.mxu0 %v958
        %v972 = vpop.f32.mrf.mxu0
        %v973 = vadd.f32 0.0, %v972
        %v974 = vpop.f32.mrf.mxu0
        %975 = vdwg.mxu0
        %v976 = vadd.f32 %v949, %v973
        %s977 = scalar_lea.vmem %s2, 52
        %v978 = vld [vmem:[%s977] sm:$0x3]
        %v979 = vld [vmem:[%s880] sm:$0x3]
        %981 = vst [vmem:[#allocation1] ss:$4 sm:$0xff] %v979
        %v982 = vld.sshfl [vmem:[#allocation1] sm:$0xff pattern:$0x73625140]
        %984 = vrot.lane.b32.xlu0 %v982, 127
        %v985 = vpop.permute.xlu0 %984
        %v987 = vsel %vm319, %v978, 0
        %v990 = vsel %vm323, %v985, 0
        %992 = vmatpush.bf16.msra.mxu0 0
        %993 = vmatpush.bf16.msra.mxu0 0
        %994 = vmatpush.bf16.msra.mxu0 0
        %995 = vmatpush.bf16.msra.mxu0 0
        %996 = vmatpush.bf16.msra.mxu0 0
        %997 = vmatpush.bf16.msra.mxu0 0
        %998 = vmatpush.bf16.msra.mxu0 0
        %999 = vmatpush.bf16.msra.mxu0 %v990
        %1000 = vmatmul.bf16.gmra.mxu0 %v987
        %v1001 = vpop.f32.mrf.mxu0
        %v1002 = vadd.f32 0.0, %v1001
        %v1003 = vpop.f32.mrf.mxu0
        %1004 = vdwg.mxu0
        %v1005 = vadd.f32 %v976, %v1002
        %s1006 = scalar_lea.vmem %s2, 54
        %v1007 = vld [vmem:[%s1006] sm:$0x3]
        %v1008 = vld [vmem:[%s904] sm:$0x3]
        %1010 = vst [vmem:[#allocation1] ss:$4 sm:$0xff] %v1008
        %v1011 = vld.sshfl [vmem:[#allocation1] sm:$0xff pattern:$0x73625140]
        %1013 = vrot.lane.b32.xlu0 %v1011, 127
        %v1014 = vpop.permute.xlu0 %1013
        %v1016 = vsel %vm319, %v1007, 0
        %v1019 = vsel %vm323, %v1014, 0
        %1021 = vmatpush.bf16.msra.mxu0 0
        %1022 = vmatpush.bf16.msra.mxu0 0
        %1023 = vmatpush.bf16.msra.mxu0 0
        %1024 = vmatpush.bf16.msra.mxu0 0
        %1025 = vmatpush.bf16.msra.mxu0 0
        %1026 = vmatpush.bf16.msra.mxu0 0
        %1027 = vmatpush.bf16.msra.mxu0 0
        %1028 = vmatpush.bf16.msra.mxu0 %v1019
        %1029 = vmatmul.bf16.gmra.mxu0 %v1016
        %v1030 = vpop.f32.mrf.mxu0
        %v1031 = vadd.f32 0.0, %v1030
        %v1032 = vpop.f32.mrf.mxu0
        %1033 = vdwg.mxu0
        %v1034 = vadd.f32 %v1005, %v1031
        %s1035 = scalar_lea.vmem %s2, 56
        %v1036 = vld [vmem:[%s1035] sm:$0x3]
        %v1037 = vld [vmem:[%s302] sm:$0x3]
        %1039 = vst [vmem:[#allocation1] ss:$4 sm:$0xff] %v1037
        %v1040 = vld.sshfl [vmem:[#allocation1] sm:$0xff pattern:$0x73625140]
        %1042 = vrot.lane.b32.xlu0 %v1040, 123
        %v1043 = vpop.permute.xlu0 %1042
        %v1045 = vsel %vm319, %v1036, 0
        %v1048 = vsel %vm323, %v1043, 0
        %1050 = vmatpush.bf16.msra.mxu0 0
        %1051 = vmatpush.bf16.msra.mxu0 0
        %1052 = vmatpush.bf16.msra.mxu0 0
        %1053 = vmatpush.bf16.msra.mxu0 0
        %1054 = vmatpush.bf16.msra.mxu0 0
        %1055 = vmatpush.bf16.msra.mxu0 0
        %1056 = vmatpush.bf16.msra.mxu0 0
        %1057 = vmatpush.bf16.msra.mxu0 %v1048
        %1058 = vmatmul.bf16.gmra.mxu0 %v1045
        %v1059 = vpop.f32.mrf.mxu0
        %v1060 = vadd.f32 0.0, %v1059
        %v1061 = vpop.f32.mrf.mxu0
        %1062 = vdwg.mxu0
        %v1063 = vadd.f32 %v1034, %v1060
        %s1064 = scalar_lea.vmem %s2, 58
        %v1065 = vld [vmem:[%s1064] sm:$0x3]
        %v1066 = vld [vmem:[%s317] sm:$0x3]
        %1068 = vst [vmem:[#allocation1] ss:$4 sm:$0xff] %v1066
        %v1069 = vld.sshfl [vmem:[#allocation1] sm:$0xff pattern:$0x73625140]
        %1071 = vrot.lane.b32.xlu0 %v1069, 123
        %v1072 = vpop.permute.xlu0 %1071
        %v1074 = vsel %vm319, %v1065, 0
        %v1077 = vsel %vm323, %v1072, 0
        %1079 = vmatpush.bf16.msra.mxu0 0
        %1080 = vmatpush.bf16.msra.mxu0 0
        %1081 = vmatpush.bf16.msra.mxu0 0
        %1082 = vmatpush.bf16.msra.mxu0 0
        %1083 = vmatpush.bf16.msra.mxu0 0
        %1084 = vmatpush.bf16.msra.mxu0 0
        %1085 = vmatpush.bf16.msra.mxu0 0
        %1086 = vmatpush.bf16.msra.mxu0 %v1077
        %1087 = vmatmul.bf16.gmra.mxu0 %v1074
        %v1088 = vpop.f32.mrf.mxu0
        %v1089 = vadd.f32 0.0, %v1088
        %v1090 = vpop.f32.mrf.mxu0
        %1091 = vdwg.mxu0
        %v1092 = vadd.f32 %v1063, %v1089
        %s1093 = scalar_lea.vmem %s2, 60
        %v1094 = vld [vmem:[%s1093] sm:$0x3]
        %v1095 = vld [vmem:[%s361] sm:$0x3]
        %1097 = vst [vmem:[#allocation1] ss:$4 sm:$0xff] %v1095
        %v1098 = vld.sshfl [vmem:[#allocation1] sm:$0xff pattern:$0x73625140]
        %1100 = vrot.lane.b32.xlu0 %v1098, 123
        %v1101 = vpop.permute.xlu0 %1100
        %v1103 = vsel %vm319, %v1094, 0
        %v1106 = vsel %vm323, %v1101, 0
        %1108 = vmatpush.bf16.msra.mxu0 0
        %1109 = vmatpush.bf16.msra.mxu0 0
        %1110 = vmatpush.bf16.msra.mxu0 0
        %1111 = vmatpush.bf16.msra.mxu0 0
        %1112 = vmatpush.bf16.msra.mxu0 0
        %1113 = vmatpush.bf16.msra.mxu0 0
        %1114 = vmatpush.bf16.msra.mxu0 0
        %1115 = vmatpush.bf16.msra.mxu0 %v1106
        %1116 = vmatmul.bf16.gmra.mxu0 %v1103
        %v1117 = vpop.f32.mrf.mxu0
        %v1118 = vadd.f32 0.0, %v1117
        %v1119 = vpop.f32.mrf.mxu0
        %1120 = vdwg.mxu0
        %v1121 = vadd.f32 %v1092, %v1118
        %s1122 = scalar_lea.vmem %s2, 62
        %v1123 = vld [vmem:[%s1122] sm:$0x3]
        %v1124 = vld [vmem:[%s385] sm:$0x3]
        %1126 = vst [vmem:[#allocation1] ss:$4 sm:$0xff] %v1124
        %v1127 = vld.sshfl [vmem:[#allocation1] sm:$0xff pattern:$0x73625140]
        %1129 = vrot.lane.b32.xlu0 %v1127, 123
        %v1130 = vpop.permute.xlu0 %1129
        %v1132 = vsel %vm319, %v1123, 0
        %v1135 = vsel %vm323, %v1130, 0
        %1137 = vmatpush.bf16.msra.mxu0 0
        %1138 = vmatpush.bf16.msra.mxu0 0
        %1139 = vmatpush.bf16.msra.mxu0 0
        %1140 = vmatpush.bf16.msra.mxu0 0
        %1141 = vmatpush.bf16.msra.mxu0 0
        %1142 = vmatpush.bf16.msra.mxu0 0
        %1143 = vmatpush.bf16.msra.mxu0 0
        %1144 = vmatpush.bf16.msra.mxu0 %v1135
        %1145 = vmatmul.bf16.gmra.mxu0 %v1132
        %v1146 = vpop.f32.mrf.mxu0
        %v1147 = vadd.f32 0.0, %v1146
        %v1148 = vpop.f32.mrf.mxu0
        %1149 = vdwg.mxu0
        %v1150 = vadd.f32 %v1121, %v1147
        %s1151 = scalar_lea.vmem %s2, 64
        %v1152 = vld [vmem:[%s1151] sm:$0x3]
        %v1153 = vld [vmem:[%s302] sm:$0x3]
        %1155 = vst [vmem:[#allocation1] ss:$4 sm:$0xff] %v1153
        %v1156 = vld.sshfl [vmem:[#allocation1] sm:$0xff pattern:$0x73625140]
        %1158 = vrot.lane.b32.xlu0 %v1156, 122
        %v1159 = vpop.permute.xlu0 %1158
        %v1161 = vsel %vm319, %v1152, 0
        %v1164 = vsel %vm323, %v1159, 0
        %1166 = vmatpush.bf16.msra.mxu0 0
        %1167 = vmatpush.bf16.msra.mxu0 0
        %1168 = vmatpush.bf16.msra.mxu0 0
        %1169 = vmatpush.bf16.msra.mxu0 0
        %1170 = vmatpush.bf16.msra.mxu0 0
        %1171 = vmatpush.bf16.msra.mxu0 0
        %1172 = vmatpush.bf16.msra.mxu0 0
        %1173 = vmatpush.bf16.msra.mxu0 %v1164
        %1174 = vmatmul.bf16.gmra.mxu0 %v1161
        %v1175 = vpop.f32.mrf.mxu0
        %v1176 = vadd.f32 0.0, %v1175
        %v1177 = vpop.f32.mrf.mxu0
        %1178 = vdwg.mxu0
        %v1179 = vadd.f32 %v1150, %v1176
        %s1180 = scalar_lea.vmem %s2, 66
        %v1181 = vld [vmem:[%s1180] sm:$0x3]
        %v1182 = vld [vmem:[%s317] sm:$0x3]
        %1184 = vst [vmem:[#allocation1] ss:$4 sm:$0xff] %v1182
        %v1185 = vld.sshfl [vmem:[#allocation1] sm:$0xff pattern:$0x73625140]
        %1187 = vrot.lane.b32.xlu0 %v1185, 122
        %v1188 = vpop.permute.xlu0 %1187
        %v1190 = vsel %vm319, %v1181, 0
        %v1193 = vsel %vm323, %v1188, 0
        %1195 = vmatpush.bf16.msra.mxu0 0
        %1196 = vmatpush.bf16.msra.mxu0 0
        %1197 = vmatpush.bf16.msra.mxu0 0
        %1198 = vmatpush.bf16.msra.mxu0 0
        %1199 = vmatpush.bf16.msra.mxu0 0
        %1200 = vmatpush.bf16.msra.mxu0 0
        %1201 = vmatpush.bf16.msra.mxu0 0
        %1202 = vmatpush.bf16.msra.mxu0 %v1193
        %1203 = vmatmul.bf16.gmra.mxu0 %v1190
        %v1204 = vpop.f32.mrf.mxu0
        %v1205 = vadd.f32 0.0, %v1204
        %v1206 = vpop.f32.mrf.mxu0
        %1207 = vdwg.mxu0
        %v1208 = vadd.f32 %v1179, %v1205
        %s1209 = scalar_lea.vmem %s2, 68
        %v1210 = vld [vmem:[%s1209] sm:$0x3]
        %v1211 = vld [vmem:[%s361] sm:$0x3]
        %1213 = vst [vmem:[#allocation1] ss:$4 sm:$0xff] %v1211
        %v1214 = vld.sshfl [vmem:[#allocation1] sm:$0xff pattern:$0x73625140]
        %1216 = vrot.lane.b32.xlu0 %v1214, 122
        %v1217 = vpop.permute.xlu0 %1216
        %v1219 = vsel %vm319, %v1210, 0
        %v1222 = vsel %vm323, %v1217, 0
        %1224 = vmatpush.bf16.msra.mxu0 0
        %1225 = vmatpush.bf16.msra.mxu0 0
        %1226 = vmatpush.bf16.msra.mxu0 0
        %1227 = vmatpush.bf16.msra.mxu0 0
        %1228 = vmatpush.bf16.msra.mxu0 0
        %1229 = vmatpush.bf16.msra.mxu0 0
        %1230 = vmatpush.bf16.msra.mxu0 0
        %1231 = vmatpush.bf16.msra.mxu0 %v1222
        %1232 = vmatmul.bf16.gmra.mxu0 %v1219
        %v1233 = vpop.f32.mrf.mxu0
        %v1234 = vadd.f32 0.0, %v1233
        %v1235 = vpop.f32.mrf.mxu0
        %1236 = vdwg.mxu0
        %v1237 = vadd.f32 %v1208, %v1234
        %s1238 = scalar_lea.vmem %s2, 70
        %v1239 = vld [vmem:[%s1238] sm:$0x3]
        %v1240 = vld [vmem:[%s494] sm:$0x3]
        %1242 = vst [vmem:[#allocation1] ss:$4 sm:$0xff] %v1240
        %v1243 = vld.sshfl [vmem:[#allocation1] sm:$0xff pattern:$0x73625140]
        %1245 = vrot.lane.b32.xlu0 %v1243, 123
        %v1246 = vpop.permute.xlu0 %1245
        %v1248 = vsel %vm319, %v1239, 0
        %v1251 = vsel %vm323, %v1246, 0
        %1253 = vmatpush.bf16.msra.mxu0 0
        %1254 = vmatpush.bf16.msra.mxu0 0
        %1255 = vmatpush.bf16.msra.mxu0 0
        %1256 = vmatpush.bf16.msra.mxu0 0
        %1257 = vmatpush.bf16.msra.mxu0 0
        %1258 = vmatpush.bf16.msra.mxu0 0
        %1259 = vmatpush.bf16.msra.mxu0 0
        %1260 = vmatpush.bf16.msra.mxu0 %v1251
        %1261 = vmatmul.bf16.gmra.mxu0 %v1248
        %v1262 = vpop.f32.mrf.mxu0
        %v1263 = vadd.f32 0.0, %v1262
        %v1264 = vpop.f32.mrf.mxu0
        %1265 = vdwg.mxu0
        %v1266 = vadd.f32 %v1237, %v1263
        %s1267 = scalar_lea.vmem %s2, 72
        %v1268 = vld [vmem:[%s1267] sm:$0x3]
        %v1269 = vld [vmem:[%s518] sm:$0x3]
        %1271 = vst [vmem:[#allocation1] ss:$4 sm:$0xff] %v1269
        %v1272 = vld.sshfl [vmem:[#allocation1] sm:$0xff pattern:$0x73625140]
        %1274 = vrot.lane.b32.xlu0 %v1272, 123
        %v1275 = vpop.permute.xlu0 %1274
        %v1277 = vsel %vm319, %v1268, 0
        %v1280 = vsel %vm323, %v1275, 0
        %1282 = vmatpush.bf16.msra.mxu0 0
        %1283 = vmatpush.bf16.msra.mxu0 0
        %1284 = vmatpush.bf16.msra.mxu0 0
        %1285 = vmatpush.bf16.msra.mxu0 0
        %1286 = vmatpush.bf16.msra.mxu0 0
        %1287 = vmatpush.bf16.msra.mxu0 0
        %1288 = vmatpush.bf16.msra.mxu0 0
        %1289 = vmatpush.bf16.msra.mxu0 %v1280
        %1290 = vmatmul.bf16.gmra.mxu0 %v1277
        %v1291 = vpop.f32.mrf.mxu0
        %v1292 = vadd.f32 0.0, %v1291
        %v1293 = vpop.f32.mrf.mxu0
        %1294 = vdwg.mxu0
        %v1295 = vadd.f32 %v1266, %v1292
        %s1296 = scalar_lea.vmem %s2, 74
        %v1297 = vld [vmem:[%s1296] sm:$0x3]
        %v1298 = vld [vmem:[%s542] sm:$0x3]
        %1300 = vst [vmem:[#allocation1] ss:$4 sm:$0xff] %v1298
        %v1301 = vld.sshfl [vmem:[#allocation1] sm:$0xff pattern:$0x73625140]
        %1303 = vrot.lane.b32.xlu0 %v1301, 123
        %v1304 = vpop.permute.xlu0 %1303
        %v1306 = vsel %vm319, %v1297, 0
        %v1309 = vsel %vm323, %v1304, 0
        %1311 = vmatpush.bf16.msra.mxu0 0
        %1312 = vmatpush.bf16.msra.mxu0 0
        %1313 = vmatpush.bf16.msra.mxu0 0
        %1314 = vmatpush.bf16.msra.mxu0 0
        %1315 = vmatpush.bf16.msra.mxu0 0
        %1316 = vmatpush.bf16.msra.mxu0 0
        %1317 = vmatpush.bf16.msra.mxu0 0
        %1318 = vmatpush.bf16.msra.mxu0 %v1309
        %1319 = vmatmul.bf16.gmra.mxu0 %v1306
        %v1320 = vpop.f32.mrf.mxu0
        %v1321 = vadd.f32 0.0, %v1320
        %v1322 = vpop.f32.mrf.mxu0
        %1323 = vdwg.mxu0
        %v1324 = vadd.f32 %v1295, %v1321
        %s1325 = scalar_lea.vmem %s2, 76
        %v1326 = vld [vmem:[%s1325] sm:$0x3]
        %v1327 = vld [vmem:[%s566] sm:$0x3]
        %1329 = vst [vmem:[#allocation1] ss:$4 sm:$0xff] %v1327
        %v1330 = vld.sshfl [vmem:[#allocation1] sm:$0xff pattern:$0x73625140]
        %1332 = vrot.lane.b32.xlu0 %v1330, 123
        %v1333 = vpop.permute.xlu0 %1332
        %v1335 = vsel %vm319, %v1326, 0
        %v1338 = vsel %vm323, %v1333, 0
        %1340 = vmatpush.bf16.msra.mxu0 0
        %1341 = vmatpush.bf16.msra.mxu0 0
        %1342 = vmatpush.bf16.msra.mxu0 0
        %1343 = vmatpush.bf16.msra.mxu0 0
        %1344 = vmatpush.bf16.msra.mxu0 0
        %1345 = vmatpush.bf16.msra.mxu0 0
        %1346 = vmatpush.bf16.msra.mxu0 0
        %1347 = vmatpush.bf16.msra.mxu0 %v1338
        %1348 = vmatmul.bf16.gmra.mxu0 %v1335
        %v1349 = vpop.f32.mrf.mxu0
        %v1350 = vadd.f32 0.0, %v1349
        %v1351 = vpop.f32.mrf.mxu0
        %1352 = vdwg.mxu0
        %v1353 = vadd.f32 %v1324, %v1350
        %s1354 = scalar_lea.vmem %s2, 78
        %v1355 = vld [vmem:[%s1354] sm:$0x3]
        %v1356 = vld [vmem:[%s494] sm:$0x3]
        %1358 = vst [vmem:[#allocation1] ss:$4 sm:$0xff] %v1356
        %v1359 = vld.sshfl [vmem:[#allocation1] sm:$0xff pattern:$0x73625140]
        %1361 = vrot.lane.b32.xlu0 %v1359, 122
        %v1362 = vpop.permute.xlu0 %1361
        %v1364 = vsel %vm319, %v1355, 0
        %v1367 = vsel %vm323, %v1362, 0
        %1369 = vmatpush.bf16.msra.mxu0 0
        %1370 = vmatpush.bf16.msra.mxu0 0
        %1371 = vmatpush.bf16.msra.mxu0 0
        %1372 = vmatpush.bf16.msra.mxu0 0
        %1373 = vmatpush.bf16.msra.mxu0 0
        %1374 = vmatpush.bf16.msra.mxu0 0
        %1375 = vmatpush.bf16.msra.mxu0 0
        %1376 = vmatpush.bf16.msra.mxu0 %v1367
        %1377 = vmatmul.bf16.gmra.mxu0 %v1364
        %v1378 = vpop.f32.mrf.mxu0
        %v1379 = vadd.f32 0.0, %v1378
        %v1380 = vpop.f32.mrf.mxu0
        %1381 = vdwg.mxu0
        %v1382 = vadd.f32 %v1353, %v1379
        %s1383 = scalar_lea.vmem %s2, 80
        %v1384 = vld [vmem:[%s1383] sm:$0x3]
        %v1385 = vld [vmem:[%s518] sm:$0x3]
        %1387 = vst [vmem:[#allocation1] ss:$4 sm:$0xff] %v1385
        %v1388 = vld.sshfl [vmem:[#allocation1] sm:$0xff pattern:$0x73625140]
        %1390 = vrot.lane.b32.xlu0 %v1388, 122
        %v1391 = vpop.permute.xlu0 %1390
        %v1393 = vsel %vm319, %v1384, 0
        %v1396 = vsel %vm323, %v1391, 0
        %1398 = vmatpush.bf16.msra.mxu0 0
        %1399 = vmatpush.bf16.msra.mxu0 0
        %1400 = vmatpush.bf16.msra.mxu0 0
        %1401 = vmatpush.bf16.msra.mxu0 0
        %1402 = vmatpush.bf16.msra.mxu0 0
        %1403 = vmatpush.bf16.msra.mxu0 0
        %1404 = vmatpush.bf16.msra.mxu0 0
        %1405 = vmatpush.bf16.msra.mxu0 %v1396
        %1406 = vmatmul.bf16.gmra.mxu0 %v1393
        %v1407 = vpop.f32.mrf.mxu0
        %v1408 = vadd.f32 0.0, %v1407
        %v1409 = vpop.f32.mrf.mxu0
        %1410 = vdwg.mxu0
        %v1411 = vadd.f32 %v1382, %v1408
        %s1412 = scalar_lea.vmem %s2, 82
        %v1413 = vld [vmem:[%s1412] sm:$0x3]
        %v1414 = vld [vmem:[%s542] sm:$0x3]
        %1416 = vst [vmem:[#allocation1] ss:$4 sm:$0xff] %v1414
        %v1417 = vld.sshfl [vmem:[#allocation1] sm:$0xff pattern:$0x73625140]
        %1419 = vrot.lane.b32.xlu0 %v1417, 122
        %v1420 = vpop.permute.xlu0 %1419
        %v1422 = vsel %vm319, %v1413, 0
        %v1425 = vsel %vm323, %v1420, 0
        %1427 = vmatpush.bf16.msra.mxu0 0
        %1428 = vmatpush.bf16.msra.mxu0 0
        %1429 = vmatpush.bf16.msra.mxu0 0
        %1430 = vmatpush.bf16.msra.mxu0 0
        %1431 = vmatpush.bf16.msra.mxu0 0
        %1432 = vmatpush.bf16.msra.mxu0 0
        %1433 = vmatpush.bf16.msra.mxu0 0
        %1434 = vmatpush.bf16.msra.mxu0 %v1425
        %1435 = vmatmul.bf16.gmra.mxu0 %v1422
        %v1436 = vpop.f32.mrf.mxu0
        %v1437 = vadd.f32 0.0, %v1436
        %v1438 = vpop.f32.mrf.mxu0
        %1439 = vdwg.mxu0
        %v1440 = vadd.f32 %v1411, %v1437
        %s1441 = scalar_lea.vmem %s2, 84
        %v1442 = vld [vmem:[%s1441] sm:$0x3]
        %v1443 = vld [vmem:[%s675] sm:$0x3]
        %1445 = vst [vmem:[#allocation1] ss:$4 sm:$0xff] %v1443
        %v1446 = vld.sshfl [vmem:[#allocation1] sm:$0xff pattern:$0x73625140]
        %1448 = vrot.lane.b32.xlu0 %v1446, 123
        %v1449 = vpop.permute.xlu0 %1448
        %v1451 = vsel %vm319, %v1442, 0
        %v1454 = vsel %vm323, %v1449, 0
        %1456 = vmatpush.bf16.msra.mxu0 0
        %1457 = vmatpush.bf16.msra.mxu0 0
        %1458 = vmatpush.bf16.msra.mxu0 0
        %1459 = vmatpush.bf16.msra.mxu0 0
        %1460 = vmatpush.bf16.msra.mxu0 0
        %1461 = vmatpush.bf16.msra.mxu0 0
        %1462 = vmatpush.bf16.msra.mxu0 0
        %1463 = vmatpush.bf16.msra.mxu0 %v1454
        %1464 = vmatmul.bf16.gmra.mxu0 %v1451
        %v1465 = vpop.f32.mrf.mxu0
        %v1466 = vadd.f32 0.0, %v1465
        %v1467 = vpop.f32.mrf.mxu0
        %1468 = vdwg.mxu0
        %v1469 = vadd.f32 %v1440, %v1466
        %s1470 = scalar_lea.vmem %s2, 86
        %v1471 = vld [vmem:[%s1470] sm:$0x3]
        %v1472 = vld [vmem:[%s699] sm:$0x3]
        %1474 = vst [vmem:[#allocation1] ss:$4 sm:$0xff] %v1472
        %v1475 = vld.sshfl [vmem:[#allocation1] sm:$0xff pattern:$0x73625140]
        %1477 = vrot.lane.b32.xlu0 %v1475, 123
        %v1478 = vpop.permute.xlu0 %1477
        %v1480 = vsel %vm319, %v1471, 0
        %v1483 = vsel %vm323, %v1478, 0
        %1485 = vmatpush.bf16.msra.mxu0 0
        %1486 = vmatpush.bf16.msra.mxu0 0
        %1487 = vmatpush.bf16.msra.mxu0 0
        %1488 = vmatpush.bf16.msra.mxu0 0
        %1489 = vmatpush.bf16.msra.mxu0 0
        %1490 = vmatpush.bf16.msra.mxu0 0
        %1491 = vmatpush.bf16.msra.mxu0 0
        %1492 = vmatpush.bf16.msra.mxu0 %v1483
        %1493 = vmatmul.bf16.gmra.mxu0 %v1480
        %v1494 = vpop.f32.mrf.mxu0
        %v1495 = vadd.f32 0.0, %v1494
        %v1496 = vpop.f32.mrf.mxu0
        %1497 = vdwg.mxu0
        %v1498 = vadd.f32 %v1469, %v1495
        %s1499 = scalar_lea.vmem %s2, 88
        %v1500 = vld [vmem:[%s1499] sm:$0x3]
        %v1501 = vld [vmem:[%s723] sm:$0x3]
        %1503 = vst [vmem:[#allocation1] ss:$4 sm:$0xff] %v1501
        %v1504 = vld.sshfl [vmem:[#allocation1] sm:$0xff pattern:$0x73625140]
        %1506 = vrot.lane.b32.xlu0 %v1504, 123
        %v1507 = vpop.permute.xlu0 %1506
        %v1509 = vsel %vm319, %v1500, 0
        %v1512 = vsel %vm323, %v1507, 0
        %1514 = vmatpush.bf16.msra.mxu0 0
        %1515 = vmatpush.bf16.msra.mxu0 0
        %1516 = vmatpush.bf16.msra.mxu0 0
        %1517 = vmatpush.bf16.msra.mxu0 0
        %1518 = vmatpush.bf16.msra.mxu0 0
        %1519 = vmatpush.bf16.msra.mxu0 0
        %1520 = vmatpush.bf16.msra.mxu0 0
        %1521 = vmatpush.bf16.msra.mxu0 %v1512
        %1522 = vmatmul.bf16.gmra.mxu0 %v1509
        %v1523 = vpop.f32.mrf.mxu0
        %v1524 = vadd.f32 0.0, %v1523
        %v1525 = vpop.f32.mrf.mxu0
        %1526 = vdwg.mxu0
        %v1527 = vadd.f32 %v1498, %v1524
        %s1528 = scalar_lea.vmem %s2, 90
        %v1529 = vld [vmem:[%s1528] sm:$0x3]
        %v1530 = vld [vmem:[%s747] sm:$0x3]
        %1532 = vst [vmem:[#allocation1] ss:$4 sm:$0xff] %v1530
        %v1533 = vld.sshfl [vmem:[#allocation1] sm:$0xff pattern:$0x73625140]
        %1535 = vrot.lane.b32.xlu0 %v1533, 123
        %v1536 = vpop.permute.xlu0 %1535
        %v1538 = vsel %vm319, %v1529, 0
        %v1541 = vsel %vm323, %v1536, 0
        %1543 = vmatpush.bf16.msra.mxu0 0
        %1544 = vmatpush.bf16.msra.mxu0 0
        %1545 = vmatpush.bf16.msra.mxu0 0
        %1546 = vmatpush.bf16.msra.mxu0 0
        %1547 = vmatpush.bf16.msra.mxu0 0
        %1548 = vmatpush.bf16.msra.mxu0 0
        %1549 = vmatpush.bf16.msra.mxu0 0
        %1550 = vmatpush.bf16.msra.mxu0 %v1541
        %1551 = vmatmul.bf16.gmra.mxu0 %v1538
        %v1552 = vpop.f32.mrf.mxu0
        %v1553 = vadd.f32 0.0, %v1552
        %v1554 = vpop.f32.mrf.mxu0
        %1555 = vdwg.mxu0
        %v1556 = vadd.f32 %v1527, %v1553
        %s1557 = scalar_lea.vmem %s2, 92
        %v1558 = vld [vmem:[%s1557] sm:$0x3]
        %v1559 = vld [vmem:[%s675] sm:$0x3]
        %1561 = vst [vmem:[#allocation1] ss:$4 sm:$0xff] %v1559
        %v1562 = vld.sshfl [vmem:[#allocation1] sm:$0xff pattern:$0x73625140]
        %1564 = vrot.lane.b32.xlu0 %v1562, 122
        %v1565 = vpop.permute.xlu0 %1564
        %v1567 = vsel %vm319, %v1558, 0
        %v1570 = vsel %vm323, %v1565, 0
        %1572 = vmatpush.bf16.msra.mxu0 0
        %1573 = vmatpush.bf16.msra.mxu0 0
        %1574 = vmatpush.bf16.msra.mxu0 0
        %1575 = vmatpush.bf16.msra.mxu0 0
        %1576 = vmatpush.bf16.msra.mxu0 0
        %1577 = vmatpush.bf16.msra.mxu0 0
        %1578 = vmatpush.bf16.msra.mxu0 0
        %1579 = vmatpush.bf16.msra.mxu0 %v1570
        %1580 = vmatmul.bf16.gmra.mxu0 %v1567
        %v1581 = vpop.f32.mrf.mxu0
        %v1582 = vadd.f32 0.0, %v1581
        %v1583 = vpop.f32.mrf.mxu0
        %1584 = vdwg.mxu0
        %v1585 = vadd.f32 %v1556, %v1582
        %s1586 = scalar_lea.vmem %s2, 94
        %v1587 = vld [vmem:[%s1586] sm:$0x3]
        %v1588 = vld [vmem:[%s699] sm:$0x3]
        %1590 = vst [vmem:[#allocation1] ss:$4 sm:$0xff] %v1588
        %v1591 = vld.sshfl [vmem:[#allocation1] sm:$0xff pattern:$0x73625140]
        %1593 = vrot.lane.b32.xlu0 %v1591, 122
        %v1594 = vpop.permute.xlu0 %1593
        %v1596 = vsel %vm319, %v1587, 0
        %v1599 = vsel %vm323, %v1594, 0
        %1601 = vmatpush.bf16.msra.mxu0 0
        %1602 = vmatpush.bf16.msra.mxu0 0
        %1603 = vmatpush.bf16.msra.mxu0 0
        %1604 = vmatpush.bf16.msra.mxu0 0
        %1605 = vmatpush.bf16.msra.mxu0 0
        %1606 = vmatpush.bf16.msra.mxu0 0
        %1607 = vmatpush.bf16.msra.mxu0 0
        %1608 = vmatpush.bf16.msra.mxu0 %v1599
        %1609 = vmatmul.bf16.gmra.mxu0 %v1596
        %v1610 = vpop.f32.mrf.mxu0
        %v1611 = vadd.f32 0.0, %v1610
        %v1612 = vpop.f32.mrf.mxu0
        %1613 = vdwg.mxu0
        %v1614 = vadd.f32 %v1585, %v1611
        %s1615 = scalar_lea.vmem %s2, 96
        %v1616 = vld [vmem:[%s1615] sm:$0x3]
        %v1617 = vld [vmem:[%s723] sm:$0x3]
        %1619 = vst [vmem:[#allocation1] ss:$4 sm:$0xff] %v1617
        %v1620 = vld.sshfl [vmem:[#allocation1] sm:$0xff pattern:$0x73625140]
        %1622 = vrot.lane.b32.xlu0 %v1620, 122
        %v1623 = vpop.permute.xlu0 %1622
        %v1625 = vsel %vm319, %v1616, 0
        %v1628 = vsel %vm323, %v1623, 0
        %1630 = vmatpush.bf16.msra.mxu0 0
        %1631 = vmatpush.bf16.msra.mxu0 0
        %1632 = vmatpush.bf16.msra.mxu0 0
        %1633 = vmatpush.bf16.msra.mxu0 0
        %1634 = vmatpush.bf16.msra.mxu0 0
        %1635 = vmatpush.bf16.msra.mxu0 0
        %1636 = vmatpush.bf16.msra.mxu0 0
        %1637 = vmatpush.bf16.msra.mxu0 %v1628
        %1638 = vmatmul.bf16.gmra.mxu0 %v1625
        %v1639 = vpop.f32.mrf.mxu0
        %v1640 = vadd.f32 0.0, %v1639
        %v1641 = vpop.f32.mrf.mxu0
        %1642 = vdwg.mxu0
        %v1643 = vadd.f32 %v1614, %v1640
        %v1644 = vld [vmem:[%s4] sm:$0xf]
        %1646 = vset.pattern.permute.xlu0 0
        %1647 = vperm.xlu0 %1646, %v1644
        %v1648 = vpop.permute.xlu0 %1647
        %v1650 = vadd.f32 %v1643, %v1648
        %v1651 = vmul.f32 %v1650, 0.01
        %v1652 = vmax.f32 %v1650, %v1651
        %v1653 = vld [vmem:[%s3] sm:$0x3]
        %v1654 = vld [vmem:[%s311] sm:$0x3]
        %s1655 = scalar_lea.vmem %s3, 2
        %v1656 = vld [vmem:[%s1655] sm:$0x3]
        %s1657 = scalar_lea.vmem %s311, 2
        %v1658 = vld [vmem:[%s1657] sm:$0x3]
        %v1660 = vsel %vm319, %v1656, 0
        %v1663 = vsel %vm323, %v1658, 0
        %1665 = vmatpush.bf16.msra.mxu0 0
        %1666 = vmatpush.bf16.msra.mxu0 0
        %1667 = vmatpush.bf16.msra.mxu0 0
        %1668 = vmatpush.bf16.msra.mxu0 0
        %1669 = vmatpush.bf16.msra.mxu0 0
        %1670 = vmatpush.bf16.msra.mxu0 0
        %1671 = vmatpush.bf16.msra.mxu0 0
        %1672 = vmatpush.bf16.msra.mxu0 %v1663
        %1673 = vmatmul.bf16.gmra.mxu0 %v1660
        %v1674 = vpop.f32.mrf.mxu0
        %v1675 = vadd.f32 0.0, %v1674
        %v1676 = vpop.f32.mrf.mxu0
        %1677 = vdwg.mxu0
        %v1679 = vsel %vm319, %v1653, 0
        %v1682 = vsel %vm323, %v1654, 0
        %1684 = vmatpush.bf16.msra.mxu0 0
        %1685 = vmatpush.bf16.msra.mxu0 0
        %1686 = vmatpush.bf16.msra.mxu0 0
        %1687 = vmatpush.bf16.msra.mxu0 0
        %1688 = vmatpush.bf16.msra.mxu0 0
        %1689 = vmatpush.bf16.msra.mxu0 0
        %1690 = vmatpush.bf16.msra.mxu0 0
        %1691 = vmatpush.bf16.msra.mxu0 %v1682
        %1692 = vmatmul.bf16.gmra.mxu0 %v1679
        %v1693 = vpop.f32.mrf.mxu0
        %v1694 = vadd.f32 %v1675, %v1693
        %v1695 = vpop.f32.mrf.mxu0
        %1696 = vdwg.mxu0
        %s1697 = scalar_lea.vmem %s3, 4
        %v1698 = vld [vmem:[%s1697] sm:$0x3]
        %1699 = vst [vmem:[#allocation1] ss:$4 sm:$0xff] %v1654
        %v1700 = vld.sshfl [vmem:[#allocation1] sm:$0xff pattern:$0x73625140]
        %1702 = vrot.lane.b32.xlu0 %v1700, 127
        %v1703 = vpop.permute.xlu0 %1702
        %v1705 = vsel %vm319, %v1698, 0
        %v1708 = vsel %vm323, %v1703, 0
        %1710 = vmatpush.bf16.msra.mxu0 0
        %1711 = vmatpush.bf16.msra.mxu0 0
        %1712 = vmatpush.bf16.msra.mxu0 0
        %1713 = vmatpush.bf16.msra.mxu0 0
        %1714 = vmatpush.bf16.msra.mxu0 0
        %1715 = vmatpush.bf16.msra.mxu0 0
        %1716 = vmatpush.bf16.msra.mxu0 0
        %1717 = vmatpush.bf16.msra.mxu0 %v1708
        %1718 = vmatmul.bf16.gmra.mxu0 %v1705
        %v1719 = vpop.f32.mrf.mxu0
        %v1720 = vadd.f32 0.0, %v1719
        %v1721 = vpop.f32.mrf.mxu0
        %1722 = vdwg.mxu0
        %v1723 = vadd.f32 %v1694, %v1720
        %s1724 = scalar_lea.vmem %s3, 6
        %v1725 = vld [vmem:[%s1724] sm:$0x3]
        %s1726 = scalar_lea.vmem %s311, 4
        %v1727 = vld [vmem:[%s1726] sm:$0x3]
        %v1729 = vsel %vm319, %v1725, 0
        %v1732 = vsel %vm323, %v1727, 0
        %1734 = vmatpush.bf16.msra.mxu0 0
        %1735 = vmatpush.bf16.msra.mxu0 0
        %1736 = vmatpush.bf16.msra.mxu0 0
        %1737 = vmatpush.bf16.msra.mxu0 0
        %1738 = vmatpush.bf16.msra.mxu0 0
        %1739 = vmatpush.bf16.msra.mxu0 0
        %1740 = vmatpush.bf16.msra.mxu0 0
        %1741 = vmatpush.bf16.msra.mxu0 %v1732
        %1742 = vmatmul.bf16.gmra.mxu0 %v1729
        %v1743 = vpop.f32.mrf.mxu0
        %v1744 = vadd.f32 0.0, %v1743
        %v1745 = vpop.f32.mrf.mxu0
        %1746 = vdwg.mxu0
        %v1747 = vadd.f32 %v1723, %v1744
        %s1748 = scalar_lea.vmem %s3, 8
        %v1749 = vld [vmem:[%s1748] sm:$0x3]
        %s1750 = scalar_lea.vmem %s311, 6
        %v1751 = vld [vmem:[%s1750] sm:$0x3]
        %v1753 = vsel %vm319, %v1749, 0
        %v1756 = vsel %vm323, %v1751, 0
        %1758 = vmatpush.bf16.msra.mxu0 0
        %1759 = vmatpush.bf16.msra.mxu0 0
        %1760 = vmatpush.bf16.msra.mxu0 0
        %1761 = vmatpush.bf16.msra.mxu0 0
        %1762 = vmatpush.bf16.msra.mxu0 0
        %1763 = vmatpush.bf16.msra.mxu0 0
        %1764 = vmatpush.bf16.msra.mxu0 0
        %1765 = vmatpush.bf16.msra.mxu0 %v1756
        %1766 = vmatmul.bf16.gmra.mxu0 %v1753
        %v1767 = vpop.f32.mrf.mxu0
        %v1768 = vadd.f32 0.0, %v1767
        %v1769 = vpop.f32.mrf.mxu0
        %1770 = vdwg.mxu0
        %v1771 = vadd.f32 %v1747, %v1768
        %s1772 = scalar_lea.vmem %s3, 10
        %v1773 = vld [vmem:[%s1772] sm:$0x3]
        %1774 = vst [vmem:[#allocation1] ss:$4 sm:$0xff] %v1727
        %v1775 = vld.sshfl [vmem:[#allocation1] sm:$0xff pattern:$0x73625140]
        %1777 = vrot.lane.b32.xlu0 %v1775, 127
        %v1778 = vpop.permute.xlu0 %1777
        %v1780 = vsel %vm319, %v1773, 0
        %v1783 = vsel %vm323, %v1778, 0
        %1785 = vmatpush.bf16.msra.mxu0 0
        %1786 = vmatpush.bf16.msra.mxu0 0
        %1787 = vmatpush.bf16.msra.mxu0 0
        %1788 = vmatpush.bf16.msra.mxu0 0
        %1789 = vmatpush.bf16.msra.mxu0 0
        %1790 = vmatpush.bf16.msra.mxu0 0
        %1791 = vmatpush.bf16.msra.mxu0 0
        %1792 = vmatpush.bf16.msra.mxu0 %v1783
        %1793 = vmatmul.bf16.gmra.mxu0 %v1780
        %v1794 = vpop.f32.mrf.mxu0
        %v1795 = vadd.f32 0.0, %v1794
        %v1796 = vpop.f32.mrf.mxu0
        %1797 = vdwg.mxu0
        %v1798 = vadd.f32 %v1771, %v1795
        %s1799 = scalar_lea.vmem %s3, 12
        %v1800 = vld [vmem:[%s1799] sm:$0x3]
        %v1801 = vld [vmem:[%s311] sm:$0x3]
        %1803 = vst [vmem:[#allocation1] ss:$4 sm:$0xff] %v1801
        %v1804 = vld.sshfl [vmem:[#allocation1] sm:$0xff pattern:$0x73625140]
        %1806 = vrot.lane.b32.xlu0 %v1804, 123
        %v1807 = vpop.permute.xlu0 %1806
        %v1809 = vsel %vm319, %v1800, 0
        %v1812 = vsel %vm323, %v1807, 0
        %1814 = vmatpush.bf16.msra.mxu0 0
        %1815 = vmatpush.bf16.msra.mxu0 0
        %1816 = vmatpush.bf16.msra.mxu0 0
        %1817 = vmatpush.bf16.msra.mxu0 0
        %1818 = vmatpush.bf16.msra.mxu0 0
        %1819 = vmatpush.bf16.msra.mxu0 0
        %1820 = vmatpush.bf16.msra.mxu0 0
        %1821 = vmatpush.bf16.msra.mxu0 %v1812
        %1822 = vmatmul.bf16.gmra.mxu0 %v1809
        %v1823 = vpop.f32.mrf.mxu0
        %v1824 = vadd.f32 0.0, %v1823
        %v1825 = vpop.f32.mrf.mxu0
        %1826 = vdwg.mxu0
        %v1827 = vadd.f32 %v1798, %v1824
        %s1828 = scalar_lea.vmem %s3, 14
        %v1829 = vld [vmem:[%s1828] sm:$0x3]
        %v1830 = vld [vmem:[%s1657] sm:$0x3]
        %1832 = vst [vmem:[#allocation1] ss:$4 sm:$0xff] %v1830
        %v1833 = vld.sshfl [vmem:[#allocation1] sm:$0xff pattern:$0x73625140]
        %1835 = vrot.lane.b32.xlu0 %v1833, 123
        %v1836 = vpop.permute.xlu0 %1835
        %v1838 = vsel %vm319, %v1829, 0
        %v1841 = vsel %vm323, %v1836, 0
        %1843 = vmatpush.bf16.msra.mxu0 0
        %1844 = vmatpush.bf16.msra.mxu0 0
        %1845 = vmatpush.bf16.msra.mxu0 0
        %1846 = vmatpush.bf16.msra.mxu0 0
        %1847 = vmatpush.bf16.msra.mxu0 0
        %1848 = vmatpush.bf16.msra.mxu0 0
        %1849 = vmatpush.bf16.msra.mxu0 0
        %1850 = vmatpush.bf16.msra.mxu0 %v1841
        %1851 = vmatmul.bf16.gmra.mxu0 %v1838
        %v1852 = vpop.f32.mrf.mxu0
        %v1853 = vadd.f32 0.0, %v1852
        %v1854 = vpop.f32.mrf.mxu0
        %1855 = vdwg.mxu0
        %v1856 = vadd.f32 %v1827, %v1853
        %s1857 = scalar_lea.vmem %s3, 16
        %v1858 = vld [vmem:[%s1857] sm:$0x3]
        %v1859 = vld [vmem:[%s311] sm:$0x3]
        %1861 = vst [vmem:[#allocation1] ss:$4 sm:$0xff] %v1859
        %v1862 = vld.sshfl [vmem:[#allocation1] sm:$0xff pattern:$0x73625140]
        %1864 = vrot.lane.b32.xlu0 %v1862, 122
        %v1865 = vpop.permute.xlu0 %1864
        %v1867 = vsel %vm319, %v1858, 0
        %v1870 = vsel %vm323, %v1865, 0
        %1872 = vmatpush.bf16.msra.mxu0 0
        %1873 = vmatpush.bf16.msra.mxu0 0
        %1874 = vmatpush.bf16.msra.mxu0 0
        %1875 = vmatpush.bf16.msra.mxu0 0
        %1876 = vmatpush.bf16.msra.mxu0 0
        %1877 = vmatpush.bf16.msra.mxu0 0
        %1878 = vmatpush.bf16.msra.mxu0 0
        %1879 = vmatpush.bf16.msra.mxu0 %v1870
        %1880 = vmatmul.bf16.gmra.mxu0 %v1867
        %v1881 = vpop.f32.mrf.mxu0
        %v1882 = vadd.f32 0.0, %v1881
        %v1883 = vpop.f32.mrf.mxu0
        %1884 = vdwg.mxu0
        %v1885 = vadd.f32 %v1856, %v1882
        %v1886 = vld [vmem:[%s5] sm:$0xf]
        %1888 = vset.pattern.permute.xlu0 0
        %1889 = vperm.xlu0 %1888, %v1886
        %v1890 = vpop.permute.xlu0 %1889
        %v1892 = vadd.f32 %v1885, %v1890
        %v1893 = vmul.f32 %v1892, 0.01
        %v1894 = vmax.f32 %v1892, %v1893
        %v1895 = vadd.f32 %v1652, %v1894
        %v1896 = vpack.c.bf16 %v1895, %v1895
        %vm1897 = vcmask 156672
        %1898 = vst.msk [vmem:[%s293] sm:$0x3] %vm1897, %v1896
        %s1899 = sand.u32 %s182, 1
        %s1900 = scalar_lea.sflag [#allocation3], %s1899
        %s1901 = sand.u32 %s182, 1
        %s1902 = smul.addr %s1901, 2
        %s1903 = scalar_lea.vmem [#allocation2], %s1902
        // Predicated region
        $region45: #{tpu_custom_call.1} parent=43 // pred_check
          %p1904 = pneg %p192
        $region46: #{tpu_custom_call.1} parent=43 // pred_check_branch
          %1906 = sbr.rel (%p1904) target = $region48
        $region47: #{tpu_custom_call.1} parent=43 // pred_region
          %1908 = vsyncadd %s1900, 0
          %s1909 = sadd.s32 %s25, %s24
          %s1910 = smul.addr %s1909, 2
          %s1911 = scalar_lea.hbm %s6, %s1910
          %s1913 = sshll.u32 %s1903, 4
          %s1914 = int_to_ptr.vmem [resolvable:$true] %s1913
          %s1915 = sshll.u32 %s1911, 4
          %s1916 = int_to_ptr.hbm [resolvable:$true] %s1915
          %1918 = dma.vmem_to_hbm [thread:$0]  %s1914, 32, %s1916, %s1900
        $region48: #{tpu_custom_call.1} parent=43 // pred_fallthru
          _
      $region44: #{tpu_custom_call.1} parent=5 // pred_fallthru
        _
      %p1919 = scmp.le.s32.totalorder 2, %s15
      // Predicated region
      $region49: #{tpu_custom_call.1} parent=5 // pred_check
        %p1920 = pneg %p1919
      $region50: #{tpu_custom_call.1} parent=5 // pred_check_branch
        %1922 = sbr.rel (%p1920) target = $region52
      $region51: #{tpu_custom_call.1} parent=5 // pred_region
        %s1923 = ssub.s32 %s15, 2
        // Predicated region
        $region53: #{tpu_custom_call.1} parent=51 // pred_check
          %p1924 = pneg %p198
        $region54: #{tpu_custom_call.1} parent=51 // pred_check_branch
          %1926 = sbr.rel (%p1924) target = $region56
        $region55: #{tpu_custom_call.1} parent=51 // pred_region
          %s1927 = sand.u32 %s183, 1
          %s1928 = scalar_lea.sflag [#allocation3], %s1927
          %s1929 = sand.u32 %s183, 1
          %s1930 = smul.addr %s1929, 2
          %s1931 = scalar_lea.vmem [#allocation2], %s1930
          %1933 = dma.done %s1928, 32
        $region56: #{tpu_custom_call.1} parent=51 // pred_fallthru
          _
      $region52: #{tpu_custom_call.1} parent=5 // pred_fallthru
        _
    $region6: #{tpu_custom_call.1} parent=1 // loop_footer
      %s19 = sadd.s32 1, %s15
    $region7: #{tpu_custom_call.1} parent=1 // loop_footer_branch
      %14 = sbr.rel target = $region3
    $region8: #{tpu_custom_call.1} parent=1 // loop_exit
      _
    %1934 = vsyncpa [#allocation3], 1
    %s1935 = scalar_lea.sflag [#allocation3], 1
    %1936 = vsyncpa %s1935, 1

</llo_original>
